<compile_context>
chip_gen: v6e
topology: v6e:2x2x1
jax: 0.10.0
libtpu: 0.0.40
codegen_flags: <defaults>
</compile_context>

<pallas_src>
import jax
import jax.numpy as jnp
from jax import lax
from jax.experimental import pallas as pl
from jax.experimental.pallas import tpu as pltpu

NEG_SLOPE = 0.01  # F.leaky_relu default


def _leaky(x):
    return jnp.where(x > 0, x, NEG_SLOPE * x)


def _vmem():
    return pl.BlockSpec(memory_space=pltpu.MemorySpace.VMEM)


# ---------------------------------------------------------------------------
# Single fused kernel: diff-MLP + embedding + fused bidirectional GRU +
# fused conv branches (im2col) + pooling + head.
# All activations are time-major [T, B, C] inside the kernel.
# ---------------------------------------------------------------------------
def _bsa_kernel(gnn_ref,
                dw1_ref, db1_ref, dw2_ref, db2_ref,
                fw_ref, fb_ref,
                wih_ref, bih_ref, whh_ref, bhh_ref,
                cw1_ref, cb1_ref, cw2_ref, cb2_ref,
                lw1_ref, lb1_ref, lw2_ref, lb2_ref,
                rnn_out_ref, diff_out_ref, head_out_ref,
                gx_scr, hf_scr, hb_scr):
    T, B, F = gnn_ref.shape
    H = whh_ref.shape[0] // 2
    two_h = 2 * H
    C = two_h                                  # conv_out_dim = hidden * num_dir
    two_oc = cb1_ref.shape[1]                  # 2 * out_c (both branches)
    K1 = cw1_ref.shape[0] // C                 # 7 (branch-1 K=5 zero-embedded)
    K2 = cw2_ref.shape[0] // two_oc            # 3
    p1, p2 = K1 // 2, K2 // 2

    gnn = gnn_ref[...]                                           # [T, B, F]

    # ---- temporal diff + diff_mlp + leaky_relu --------------------------
    diff = jnp.concatenate(
        [jnp.zeros((1, B, F), jnp.float32), gnn[1:] - gnn[:-1]], axis=0)
    dh = jnp.maximum(
        jnp.einsum('tbf,fk->tbk', diff, dw1_ref[...],
                   preferred_element_type=jnp.float32) + db1_ref[...], 0.0)
    do = jnp.einsum('tbk,ko->tbo', dh, dw2_ref[...],
                    preferred_element_type=jnp.float32) + db2_ref[...]
    diff_out_ref[...] = _leaky(do)                               # [T, B, 1]

    # ---- x_emb = leaky(feature_linear(leaky(gnn))) ------------------------
    xe = _leaky(jnp.einsum('tbf,fe->tbe', _leaky(gnn), fw_ref[...],
                           preferred_element_type=jnp.float32) + fb_ref[...])

    # ---- GRU input projection for BOTH directions in one matmul ----------
    # gate-major packed columns: [r_f, r_b, z_f, z_b, n_f, n_b]
    gx_scr[...] = (jnp.einsum('tbe,eg->tbg', xe, wih_ref[...],
                              preferred_element_type=jnp.float32)
                   + bih_ref[...])                               # [T, B, 6H]

    # ---- fused bidirectional GRU (block-diagonal recurrent weight) --------
    whh = whh_ref[...]                                           # [2H, 6H]
    bhh = bhh_ref[...]                                           # [1, 6H]
    col = lax.broadcasted_iota(jnp.int32, (B, 6 * H), 1)
    fwd_cols = (col % two_h) < H    # True for forward-direction gate columns

    def step(s, h):                                              # h: [B, 2H]
        gx = jnp.where(fwd_cols, gx_scr[s], gx_scr[T - 1 - s])   # [B, 6H]
        gh = jnp.dot(h, whh, preferred_element_type=jnp.float32) + bhh
        r = jax.nn.sigmoid(gx[:, :two_h] + gh[:, :two_h])
        z = jax.nn.sigmoid(gx[:, two_h:2 * two_h] + gh[:, two_h:2 * two_h])
        n = jnp.tanh(gx[:, 2 * two_h:] + r * gh[:, 2 * two_h:])
        h_new = (1.0 - z) * n + z * h
        hf_scr[s] = h_new[:, :H]                 # forward hidden at time s
        hb_scr[T - 1 - s] = h_new[:, H:]         # backward hidden at time T-1-s
        return h_new

    lax.fori_loop(0, T, step, jnp.zeros((B, two_h), jnp.float32), unroll=True)

    h_all = jnp.concatenate([hf_scr[...], hb_scr[...]], axis=-1)  # [T, B, 2H]
    rnn_out_ref[...] = h_all

    # ---- fused conv branches: Conv1d(K)+ReLU -> Conv1d(3)+ReLU -> +res ----
    zp1 = jnp.zeros((p1, B, C), jnp.float32)
    xpad = jnp.concatenate([zp1, h_all, zp1], axis=0)             # [T+K1-1,B,C]
    cols1 = jnp.concatenate([xpad[k:k + T] for k in range(K1)], axis=-1)
    y = jnp.maximum(
        jnp.einsum('tbk,ko->tbo', cols1, cw1_ref[...],
                   preferred_element_type=jnp.float32) + cb1_ref[...], 0.0)

    zp2 = jnp.zeros((p2, B, two_oc), jnp.float32)
    ypad = jnp.concatenate([zp2, y, zp2], axis=0)                 # [T+K2-1,B,2OC]
    cols2 = jnp.concatenate([ypad[k:k + T] for k in range(K2)], axis=-1)
    z = jnp.maximum(
        jnp.einsum('tbk,kc->tbc', cols2, cw2_ref[...],
                   preferred_element_type=jnp.float32) + cb2_ref[...], 0.0)

    z = z + jnp.concatenate([h_all, h_all], axis=-1)              # residual/branch

    # adaptive_avg_pool1d(1): mean over time (unrolled static sum, no reshape)
    acc = z[0]
    for t in range(1, T):
        acc = acc + z[t]
    pooled = acc * (1.0 / T)                                      # [B, 2C]

    # ---- head: relu(Linear) -> Linear --------------------------------------
    hid = jnp.maximum(
        jnp.dot(pooled, lw1_ref[...], preferred_element_type=jnp.float32)
        + lb1_ref[...], 0.0)
    head_out_ref[...] = (jnp.dot(hid, lw2_ref[...],
                                 preferred_element_type=jnp.float32)
                         + lb2_ref[...])                          # [B, 1]


# ---------------------------------------------------------------------------
# Parameters (deterministic, synthetic) — stored in the "natural" per-direction
# / per-branch layout, then packed for the fused kernel.
# ---------------------------------------------------------------------------
def make_params(key, F, E, H, out_c=64, mlp_hidden=64):
    C = 2 * H  # conv_out_dim = hidden_size * num_direction
    keys = iter(jax.random.split(key, 32))

    def nrm(shape, fan_in):
        return (jax.random.normal(next(keys), shape, jnp.float32) /
                jnp.sqrt(jnp.float32(fan_in)))

    p = {}
    # diff_mlp = MLP(2, gnn_out_features, 64, 1)
    p['dw1'] = nrm((F, mlp_hidden), F); p['db1'] = jnp.zeros((1, mlp_hidden), jnp.float32)
    p['dw2'] = nrm((mlp_hidden, 1), mlp_hidden); p['db2'] = jnp.zeros((1, 1), jnp.float32)
    # feature_linear
    p['fw'] = nrm((F, E), F); p['fb'] = jnp.zeros((1, E), jnp.float32)
    # bidirectional GRU, 1 layer (gate order r, z, n per PyTorch)
    for d in ('f', 'b'):
        p[f'wih_{d}'] = nrm((E, 3 * H), E)
        p[f'whh_{d}'] = nrm((H, 3 * H), H)
        p[f'bih_{d}'] = jnp.zeros((1, 3 * H), jnp.float32)
        p[f'bhh_{d}'] = jnp.zeros((1, 3 * H), jnp.float32)
    # conv branches, Ks = [7, 5], second conv K=3; weights as [K, C_in, C_out]
    for bi, K in enumerate((7, 5)):
        p[f'cw1_{bi}'] = nrm((K, C, out_c), C * K)
        p[f'cb1_{bi}'] = jnp.zeros((1, out_c), jnp.float32)
        p[f'cw2_{bi}'] = nrm((3, out_c, C), out_c * 3)
        p[f'cb2_{bi}'] = jnp.zeros((1, C), jnp.float32)
    # head
    p['lw1'] = nrm((2 * C, C), 2 * C); p['lb1'] = jnp.zeros((1, C), jnp.float32)
    p['lw2'] = nrm((C, 1), C); p['lb2'] = jnp.zeros((1, 1), jnp.float32)
    return p


def pack_params(p):
    """Pack per-direction / per-branch weights into the fused-kernel layout."""
    H = p['whh_f'].shape[0]
    C = 2 * H
    OC = p['cw1_0'].shape[2]

    def gate_interleave(a_f, a_b):
        # [in, 3H] each (gate order r,z,n) -> [in, 6H] as [r_f,r_b,z_f,z_b,n_f,n_b]
        parts = []
        for g in range(3):
            parts.append(a_f[:, g * H:(g + 1) * H])
            parts.append(a_b[:, g * H:(g + 1) * H])
        return jnp.concatenate(parts, axis=1)

    zero3h = jnp.zeros((H, 3 * H), jnp.float32)
    whh = jnp.concatenate(
        [gate_interleave(p['whh_f'], zero3h),
         gate_interleave(zero3h, p['whh_b'])], axis=0)            # [2H, 6H]

    # first conv: embed branch-1 (K=5, pad 2) into the K=7, pad 3 frame
    K1a, K1b = p['cw1_0'].shape[0], p['cw1_1'].shape[0]           # 7, 5
    padk = (K1a - K1b) // 2
    zk = jnp.zeros((padk, C, OC), jnp.float32)
    w1b = jnp.concatenate([zk, p['cw1_1'], zk], axis=0)           # [7, C, OC]
    cw1 = jnp.concatenate([p['cw1_0'], w1b], axis=-1).reshape(K1a * C, 2 * OC)

    # second conv: block-diagonal per tap so both branches share one matmul
    K2 = p['cw2_0'].shape[0]                                      # 3
    blocks = []
    for k in range(K2):
        top = jnp.concatenate([p['cw2_0'][k], jnp.zeros((OC, C), jnp.float32)], axis=1)
        bot = jnp.concatenate([jnp.zeros((OC, C), jnp.float32), p['cw2_1'][k]], axis=1)
        blocks.append(jnp.concatenate([top, bot], axis=0))        # [2OC, 2C]
    cw2 = jnp.concatenate(blocks, axis=0)                         # [K2*2OC, 2C]

    return dict(
        dw1=p['dw1'], db1=p['db1'], dw2=p['dw2'], db2=p['db2'],
        fw=p['fw'], fb=p['fb'],
        wih=gate_interleave(p['wih_f'], p['wih_b']),
        bih=gate_interleave(p['bih_f'], p['bih_b']),
        whh=whh,
        bhh=gate_interleave(p['bhh_f'], p['bhh_b']),
        cw1=cw1, cb1=jnp.concatenate([p['cb1_0'], p['cb1_1']], axis=-1),
        cw2=cw2, cb2=jnp.concatenate([p['cb2_0'], p['cb2_1']], axis=-1),
        lw1=p['lw1'], lb1=p['lb1'], lw2=p['lw2'], lb2=p['lb2'],
    )


# ---------------------------------------------------------------------------
# Forward: one pallas_call; only layout plumbing (transposes) in the wrapper.
# ---------------------------------------------------------------------------
@jax.jit
def bsa_forward(outputs_gnn, q):
    B, T, F = outputs_gnn.shape
    H = q['whh'].shape[0] // 2

    gnn_tm = jnp.swapaxes(outputs_gnn, 0, 1)                      # [T, B, F]

    rnn_tm, diff_tm, head = pl.pallas_call(
        _bsa_kernel,
        out_shape=(jax.ShapeDtypeStruct((T, B, 2 * H), jnp.float32),
                   jax.ShapeDtypeStruct((T, B, 1), jnp.float32),
                   jax.ShapeDtypeStruct((B, 1), jnp.float32)),
        in_specs=[_vmem()] * 19,
        out_specs=(_vmem(), _vmem(), _vmem()),
        scratch_shapes=[pltpu.VMEM((T, B, 6 * H), jnp.float32),   # gate precompute
                        pltpu.VMEM((T, B, H), jnp.float32),       # fwd hidden
                        pltpu.VMEM((T, B, H), jnp.float32)],      # bwd hidden
    )(gnn_tm,
      q['dw1'], q['db1'], q['dw2'], q['db2'],
      q['fw'], q['fb'],
      q['wih'], q['bih'], q['whh'], q['bhh'],
      q['cw1'], q['cb1'], q['cw2'], q['cb2'],
      q['lw1'], q['lb1'], q['lw2'], q['lb2'])

    outputs = jnp.swapaxes(rnn_tm, 0, 1)                          # [B, T, 2H]
    diff_out = jnp.transpose(diff_tm, (1, 0, 2)).reshape(-1)      # [B*T], b-major

    # (Aw / middle_feature come from the GNN which is not provided; omitted.)
    return head, outputs_gnn, outputs, diff_out


if __name__ == "__main__":
    # Small shapes: batch=2, n_seq=8, gnn_out_features=32, emb=32, hidden=32
    # (bidirectional -> conv_out_dim = 64)
    B, T, F, E, H = 2, 8, 32, 32, 32
    key = jax.random.PRNGKey(0)
    kx, kp = jax.random.split(key)
    outputs_gnn = jax.random.normal(kx, (B, T, F), jnp.float32)   # stands in for BGA output
    params = make_params(kp, F, E, H)
    q = pack_params(params)

    x_out, gnn_out, rnn_out, diff_out = bsa_forward(outputs_gnn, q)
    jax.block_until_ready((x_out, rnn_out, diff_out))

    assert x_out.shape == (B, 1)
    assert gnn_out.shape == (B, T, F)
    assert rnn_out.shape == (B, T, 2 * H)
    assert diff_out.shape == (B * T,)
    assert jnp.all(jnp.isfinite(x_out)) and jnp.all(jnp.isfinite(rnn_out)) and jnp.all(jnp.isfinite(diff_out))
    print("KERNEL_OK")
</pallas_src>

<mosaic_0001>
module attributes {stable_mosaic.version = 11 : i64} {
  func.func @_bsa_kernel(%arg0: memref<8x2x32xf32, #tpu.memory_space<vmem>>, %arg1: memref<32x64xf32, #tpu.memory_space<vmem>>, %arg2: memref<1x64xf32, #tpu.memory_space<vmem>>, %arg3: memref<64x1xf32, #tpu.memory_space<vmem>>, %arg4: memref<1x1xf32, #tpu.memory_space<vmem>>, %arg5: memref<32x32xf32, #tpu.memory_space<vmem>>, %arg6: memref<1x32xf32, #tpu.memory_space<vmem>>, %arg7: memref<32x192xf32, #tpu.memory_space<vmem>>, %arg8: memref<1x192xf32, #tpu.memory_space<vmem>>, %arg9: memref<64x192xf32, #tpu.memory_space<vmem>>, %arg10: memref<1x192xf32, #tpu.memory_space<vmem>>, %arg11: memref<448x128xf32, #tpu.memory_space<vmem>>, %arg12: memref<1x128xf32, #tpu.memory_space<vmem>>, %arg13: memref<384x128xf32, #tpu.memory_space<vmem>>, %arg14: memref<1x128xf32, #tpu.memory_space<vmem>>, %arg15: memref<128x64xf32, #tpu.memory_space<vmem>>, %arg16: memref<1x64xf32, #tpu.memory_space<vmem>>, %arg17: memref<64x1xf32, #tpu.memory_space<vmem>>, %arg18: memref<1x1xf32, #tpu.memory_space<vmem>>, %arg19: memref<8x2x64xf32, #tpu.memory_space<vmem>>, %arg20: memref<8x2x1xf32, #tpu.memory_space<vmem>>, %arg21: memref<2x1xf32, #tpu.memory_space<vmem>>, %arg22: memref<8x2x192xf32, #tpu.memory_space<vmem>>, %arg23: memref<8x2x32xf32, #tpu.memory_space<vmem>>, %arg24: memref<8x2x32xf32, #tpu.memory_space<vmem>>) attributes {dimension_semantics = [], scalar_prefetch = 0 : i64, scratch_operands = 3 : i64, tpu.core_type = #tpu.core_type<tc>} {
    %c0 = arith.constant 0 : index
    %c0_0 = arith.constant 0 : index
    %c0_1 = arith.constant 0 : index
    %0 = vector.load %arg0[%c0, %c0_0, %c0_1] : memref<8x2x32xf32, #tpu.memory_space<vmem>>, vector<8x2x32xf32>
    %cst = arith.constant 0.000000e+00 : f32
    %1 = vector.broadcast %cst : f32 to vector<1x2x32xf32>
    %2 = vector.extract_strided_slice %0 {offsets = [1, 0, 0], sizes = [7, 2, 32], strides = [1, 1, 1]} : vector<8x2x32xf32> to vector<7x2x32xf32>
    %3 = vector.extract_strided_slice %0 {offsets = [0, 0, 0], sizes = [7, 2, 32], strides = [1, 1, 1]} : vector<8x2x32xf32> to vector<7x2x32xf32>
    %4 = arith.subf %2, %3 : vector<7x2x32xf32>
    %5 = tpu.concatenate %1, %4 in 0 : vector<1x2x32xf32>, vector<7x2x32xf32> -> vector<8x2x32xf32>
    %c0_2 = arith.constant 0 : index
    %c0_3 = arith.constant 0 : index
    %6 = vector.load %arg1[%c0_2, %c0_3] : memref<32x64xf32, #tpu.memory_space<vmem>>, vector<32x64xf32>
    "tpu.trace_start"() <{level = 10 : i32, message = "tbf,fk->tbk"}> : () -> ()
    %cst_4 = arith.constant dense<0.000000e+00> : vector<8x2x64xf32>
    %7 = tpu.matmul %5, %6, %cst_4 {dimension_numbers = #tpu.dot_dimension_numbers<[2], [0], [0, 1], [1], [0, 0, 0, 1, 1, 1], [], []>} : vector<8x2x32xf32>, vector<32x64xf32>, vector<8x2x64xf32> -> vector<8x2x64xf32>
    "tpu.trace_stop"() : () -> ()
    %c0_5 = arith.constant 0 : index
    %c0_6 = arith.constant 0 : index
    %8 = vector.load %arg2[%c0_5, %c0_6] : memref<1x64xf32, #tpu.memory_space<vmem>>, vector<1x64xf32>
    %9 = vector.shape_cast %8 : vector<1x64xf32> to vector<1x1x64xf32>
    %10 = vector.broadcast %9 : vector<1x1x64xf32> to vector<8x2x64xf32>
    %11 = arith.addf %7, %10 : vector<8x2x64xf32>
    %cst_7 = arith.constant 0.000000e+00 : f32
    %12 = vector.broadcast %cst_7 : f32 to vector<8x2x64xf32>
    %13 = arith.maximumf %11, %12 : vector<8x2x64xf32>
    %c0_8 = arith.constant 0 : index
    %c0_9 = arith.constant 0 : index
    %14 = vector.load %arg3[%c0_8, %c0_9] : memref<64x1xf32, #tpu.memory_space<vmem>>, vector<64x1xf32>
    "tpu.trace_start"() <{level = 10 : i32, message = "tbk,ko->tbo"}> : () -> ()
    %cst_10 = arith.constant dense<0.000000e+00> : vector<8x2x1xf32>
    %15 = tpu.matmul %13, %14, %cst_10 {dimension_numbers = #tpu.dot_dimension_numbers<[2], [0], [0, 1], [1], [0, 0, 0, 1, 1, 1], [], []>} : vector<8x2x64xf32>, vector<64x1xf32>, vector<8x2x1xf32> -> vector<8x2x1xf32>
    "tpu.trace_stop"() : () -> ()
    %c0_11 = arith.constant 0 : index
    %c0_12 = arith.constant 0 : index
    %16 = vector.load %arg4[%c0_11, %c0_12] : memref<1x1xf32, #tpu.memory_space<vmem>>, vector<1x1xf32>
    %17 = vector.shape_cast %16 : vector<1x1xf32> to vector<1x1x1xf32>
    %18 = vector.broadcast %17 : vector<1x1x1xf32> to vector<8x2x1xf32>
    %19 = arith.addf %15, %18 : vector<8x2x1xf32>
    %cst_13 = arith.constant 0.000000e+00 : f32
    %20 = vector.broadcast %cst_13 : f32 to vector<8x2x1xf32>
    %21 = arith.cmpf ogt, %19, %20 : vector<8x2x1xf32>
    %cst_14 = arith.constant 0.00999999977 : f32
    %22 = vector.broadcast %cst_14 : f32 to vector<8x2x1xf32>
    %23 = arith.mulf %22, %19 : vector<8x2x1xf32>
    %24 = arith.select %21, %19, %23 : vector<8x2x1xi1>, vector<8x2x1xf32>
    %c0_15 = arith.constant 0 : index
    %c0_16 = arith.constant 0 : index
    %c0_17 = arith.constant 0 : index
    %25 = vector.load %arg20[%c0_15, %c0_16, %c0_17] : memref<8x2x1xf32, #tpu.memory_space<vmem>>, vector<8x2x1xf32>
    tpu.vector_store %arg20[%c0_15, %c0_16, %c0_17], %24 {strides = array<i32>} : memref<8x2x1xf32, #tpu.memory_space<vmem>>, vector<8x2x1xf32>,
    %cst_18 = arith.constant 0.000000e+00 : f32
    %26 = vector.broadcast %cst_18 : f32 to vector<8x2x32xf32>
    %27 = arith.cmpf ogt, %0, %26 : vector<8x2x32xf32>
    %cst_19 = arith.constant 0.00999999977 : f32
    %28 = vector.broadcast %cst_19 : f32 to vector<8x2x32xf32>
    %29 = arith.mulf %28, %0 : vector<8x2x32xf32>
    %30 = arith.select %27, %0, %29 : vector<8x2x32xi1>, vector<8x2x32xf32>
    %c0_20 = arith.constant 0 : index
    %c0_21 = arith.constant 0 : index
    %31 = vector.load %arg5[%c0_20, %c0_21] : memref<32x32xf32, #tpu.memory_space<vmem>>, vector<32x32xf32>
    "tpu.trace_start"() <{level = 10 : i32, message = "tbf,fe->tbe"}> : () -> ()
    %cst_22 = arith.constant dense<0.000000e+00> : vector<8x2x32xf32>
    %32 = tpu.matmul %30, %31, %cst_22 {dimension_numbers = #tpu.dot_dimension_numbers<[2], [0], [0, 1], [1], [0, 0, 0, 1, 1, 1], [], []>} : vector<8x2x32xf32>, vector<32x32xf32>, vector<8x2x32xf32> -> vector<8x2x32xf32>
    "tpu.trace_stop"() : () -> ()
    %c0_23 = arith.constant 0 : index
    %c0_24 = arith.constant 0 : index
    %33 = vector.load %arg6[%c0_23, %c0_24] : memref<1x32xf32, #tpu.memory_space<vmem>>, vector<1x32xf32>
    %34 = vector.shape_cast %33 : vector<1x32xf32> to vector<1x1x32xf32>
    %35 = vector.broadcast %34 : vector<1x1x32xf32> to vector<8x2x32xf32>
    %36 = arith.addf %32, %35 : vector<8x2x32xf32>
    %cst_25 = arith.constant 0.000000e+00 : f32
    %37 = vector.broadcast %cst_25 : f32 to vector<8x2x32xf32>
    %38 = arith.cmpf ogt, %36, %37 : vector<8x2x32xf32>
    %cst_26 = arith.constant 0.00999999977 : f32
    %39 = vector.broadcast %cst_26 : f32 to vector<8x2x32xf32>
    %40 = arith.mulf %39, %36 : vector<8x2x32xf32>
    %41 = arith.select %38, %36, %40 : vector<8x2x32xi1>, vector<8x2x32xf32>
    %c0_27 = arith.constant 0 : index
    %c0_28 = arith.constant 0 : index
    %42 = vector.load %arg7[%c0_27, %c0_28] : memref<32x192xf32, #tpu.memory_space<vmem>>, vector<32x192xf32>
    "tpu.trace_start"() <{level = 10 : i32, message = "tbe,eg->tbg"}> : () -> ()
    %cst_29 = arith.constant dense<0.000000e+00> : vector<8x2x192xf32>
    %43 = tpu.matmul %41, %42, %cst_29 {dimension_numbers = #tpu.dot_dimension_numbers<[2], [0], [0, 1], [1], [0, 0, 0, 1, 1, 1], [], []>} : vector<8x2x32xf32>, vector<32x192xf32>, vector<8x2x192xf32> -> vector<8x2x192xf32>
    "tpu.trace_stop"() : () -> ()
    %c0_30 = arith.constant 0 : index
    %c0_31 = arith.constant 0 : index
    %44 = vector.load %arg8[%c0_30, %c0_31] : memref<1x192xf32, #tpu.memory_space<vmem>>, vector<1x192xf32>
    %45 = vector.shape_cast %44 : vector<1x192xf32> to vector<1x1x192xf32>
    %46 = vector.broadcast %45 : vector<1x1x192xf32> to vector<8x2x192xf32>
    %47 = arith.addf %43, %46 : vector<8x2x192xf32>
    %c0_32 = arith.constant 0 : index
    %c0_33 = arith.constant 0 : index
    %c0_34 = arith.constant 0 : index
    %48 = vector.load %arg22[%c0_32, %c0_33, %c0_34] : memref<8x2x192xf32, #tpu.memory_space<vmem>>, vector<8x2x192xf32>
    tpu.vector_store %arg22[%c0_32, %c0_33, %c0_34], %47 {strides = array<i32>} : memref<8x2x192xf32, #tpu.memory_space<vmem>>, vector<8x2x192xf32>,
    %c0_35 = arith.constant 0 : index
    %c0_36 = arith.constant 0 : index
    %49 = vector.load %arg9[%c0_35, %c0_36] : memref<64x192xf32, #tpu.memory_space<vmem>>, vector<64x192xf32>
    %c0_37 = arith.constant 0 : index
    %c0_38 = arith.constant 0 : index
    %50 = vector.load %arg10[%c0_37, %c0_38] : memref<1x192xf32, #tpu.memory_space<vmem>>, vector<1x192xf32>
    %51 = tpu.iota {dimensions = array<i32: 1>} : vector<2x192xi32>
    %c64_i32 = arith.constant 64 : i32
    %c0_i32 = arith.constant 0 : i32
    %52 = arith.cmpi eq, %c64_i32, %c0_i32 : i32
    %c1_i32 = arith.constant 1 : i32
    %53 = arith.select %52, %c1_i32, %c64_i32 : i32
    %54 = vector.broadcast %53 : i32 to vector<2x192xi32>
    %55 = arith.remsi %51, %54 : vector<2x192xi32>
    %c0_i32_39 = arith.constant 0 : i32
    %56 = vector.broadcast %c0_i32_39 : i32 to vector<2x192xi32>
    %57 = arith.cmpi ne, %55, %56 : vector<2x192xi32>
    %c0_i32_40 = arith.constant 0 : i32
    %58 = vector.broadcast %c0_i32_40 : i32 to vector<2x192xi32>
    %59 = arith.cmpi slt, %55, %58 : vector<2x192xi32>
    %c0_i32_41 = arith.constant 0 : i32
    %60 = arith.cmpi slt, %53, %c0_i32_41 : i32
    %61 = vector.broadcast %60 : i1 to vector<2x192xi1>
    %62 = vector.broadcast %61 : vector<2x192xi1> to vector<2x192xi1>
    %63 = arith.xori %59, %62 : vector<2x192xi1>
    %64 = arith.andi %63, %57 : vector<2x192xi1>
    %65 = vector.broadcast %53 : i32 to vector<2x192xi32>
    %66 = arith.addi %55, %65 : vector<2x192xi32>
    %67 = arith.select %64, %66, %55 : vector<2x192xi1>, vector<2x192xi32>
    %c32_i32 = arith.constant 32 : i32
    %68 = vector.broadcast %c32_i32 : i32 to vector<2x192xi32>
    %69 = arith.cmpi slt, %67, %68 : vector<2x192xi32>
    %cst_42 = arith.constant 0.000000e+00 : f32
    %70 = vector.broadcast %cst_42 : f32 to vector<2x64xf32>
    %c0_i32_43 = arith.constant 0 : i32
    %71 = arith.index_cast %c0_i32_43 : i32 to index
    %c0_44 = arith.constant 0 : index
    %c0_45 = arith.constant 0 : index
    %72 = vector.load %arg22[%71, %c0_44, %c0_45] : memref<8x2x192xf32, #tpu.memory_space<vmem>>, vector<1x2x192xf32>
    %73 = vector.shape_cast %72 : vector<1x2x192xf32> to vector<2x192xf32>
    %c7_i32 = arith.constant 7 : i32
    %74 = arith.subi %c7_i32, %c0_i32_43 : i32
    %75 = arith.index_cast %74 : i32 to index
    %c0_46 = arith.constant 0 : index
    %c0_47 = arith.constant 0 : index
    %76 = vector.load %arg22[%75, %c0_46, %c0_47] : memref<8x2x192xf32, #tpu.memory_space<vmem>>, vector<1x2x192xf32>
    %77 = vector.shape_cast %76 : vector<1x2x192xf32> to vector<2x192xf32>
    %78 = arith.select %69, %73, %77 : vector<2x192xi1>, vector<2x192xf32>
    %cst_48 = arith.constant dense<0.000000e+00> : vector<2x192xf32>
    %79 = tpu.matmul %70, %49, %cst_48 {dimension_numbers = #tpu.dot_dimension_numbers<[1], [0], [0], [1], [0, 0, 1, 1], [], []>} : vector<2x64xf32>, vector<64x192xf32>, vector<2x192xf32> -> vector<2x192xf32>
    %80 = vector.broadcast %50 : vector<1x192xf32> to vector<2x192xf32>
    %81 = arith.addf %79, %80 : vector<2x192xf32>
    %82 = vector.extract_strided_slice %78 {offsets = [0, 0], sizes = [2, 64], strides = [1, 1]} : vector<2x192xf32> to vector<2x64xf32>
    %83 = vector.extract_strided_slice %81 {offsets = [0, 0], sizes = [2, 64], strides = [1, 1]} : vector<2x192xf32> to vector<2x64xf32>
    %84 = arith.addf %82, %83 : vector<2x64xf32>
    %85 = arith.negf %84 : vector<2x64xf32>
    %86 = math.exp %85 : vector<2x64xf32>
    %cst_49 = arith.constant 1.000000e+00 : f32
    %87 = vector.broadcast %cst_49 : f32 to vector<2x64xf32>
    %88 = arith.addf %87, %86 : vector<2x64xf32>
    %89 = arith.divf %87, %88 : vector<2x64xf32>
    %90 = vector.extract_strided_slice %78 {offsets = [0, 64], sizes = [2, 64], strides = [1, 1]} : vector<2x192xf32> to vector<2x64xf32>
    %91 = vector.extract_strided_slice %81 {offsets = [0, 64], sizes = [2, 64], strides = [1, 1]} : vector<2x192xf32> to vector<2x64xf32>
    %92 = arith.addf %90, %91 : vector<2x64xf32>
    %93 = arith.negf %92 : vector<2x64xf32>
    %94 = math.exp %93 : vector<2x64xf32>
    %cst_50 = arith.constant 1.000000e+00 : f32
    %95 = vector.broadcast %cst_50 : f32 to vector<2x64xf32>
    %96 = arith.addf %95, %94 : vector<2x64xf32>
    %97 = arith.divf %95, %96 : vector<2x64xf32>
    %98 = vector.extract_strided_slice %78 {offsets = [0, 128], sizes = [2, 64], strides = [1, 1]} : vector<2x192xf32> to vector<2x64xf32>
    %99 = vector.extract_strided_slice %81 {offsets = [0, 128], sizes = [2, 64], strides = [1, 1]} : vector<2x192xf32> to vector<2x64xf32>
    %100 = arith.mulf %89, %99 : vector<2x64xf32>
    %101 = arith.addf %98, %100 : vector<2x64xf32>
    %102 = math.tanh %101 : vector<2x64xf32>
    %cst_51 = arith.constant 1.000000e+00 : f32
    %103 = vector.broadcast %cst_51 : f32 to vector<2x64xf32>
    %104 = arith.subf %103, %97 : vector<2x64xf32>
    %105 = arith.mulf %104, %102 : vector<2x64xf32>
    %106 = arith.mulf %97, %70 : vector<2x64xf32>
    %107 = arith.addf %105, %106 : vector<2x64xf32>
    %108 = vector.extract_strided_slice %107 {offsets = [0, 0], sizes = [2, 32], strides = [1, 1]} : vector<2x64xf32> to vector<2x32xf32>
    %109 = arith.index_cast %c0_i32_43 : i32 to index
    %c0_52 = arith.constant 0 : index
    %c0_53 = arith.constant 0 : index
    %110 = vector.load %arg23[%109, %c0_52, %c0_53] : memref<8x2x32xf32, #tpu.memory_space<vmem>>, vector<1x2x32xf32>
    %111 = vector.shape_cast %110 : vector<1x2x32xf32> to vector<2x32xf32>
    %112 = vector.shape_cast %108 : vector<2x32xf32> to vector<1x2x32xf32>
    tpu.vector_store %arg23[%109, %c0_52, %c0_53], %112 {strides = array<i32>} : memref<8x2x32xf32, #tpu.memory_space<vmem>>, vector<1x2x32xf32>,
    %113 = vector.extract_strided_slice %107 {offsets = [0, 32], sizes = [2, 32], strides = [1, 1]} : vector<2x64xf32> to vector<2x32xf32>
    %c7_i32_54 = arith.constant 7 : i32
    %114 = arith.subi %c7_i32_54, %c0_i32_43 : i32
    %115 = arith.index_cast %114 : i32 to index
    %c0_55 = arith.constant 0 : index
    %c0_56 = arith.constant 0 : index
    %116 = vector.load %arg24[%115, %c0_55, %c0_56] : memref<8x2x32xf32, #tpu.memory_space<vmem>>, vector<1x2x32xf32>
    %117 = vector.shape_cast %116 : vector<1x2x32xf32> to vector<2x32xf32>
    %118 = vector.shape_cast %113 : vector<2x32xf32> to vector<1x2x32xf32>
    tpu.vector_store %arg24[%115, %c0_55, %c0_56], %118 {strides = array<i32>} : memref<8x2x32xf32, #tpu.memory_space<vmem>>, vector<1x2x32xf32>,
    %c1_i32_57 = arith.constant 1 : i32
    %119 = arith.index_cast %c1_i32_57 : i32 to index
    %c0_58 = arith.constant 0 : index
    %c0_59 = arith.constant 0 : index
    %120 = vector.load %arg22[%119, %c0_58, %c0_59] : memref<8x2x192xf32, #tpu.memory_space<vmem>>, vector<1x2x192xf32>
    %121 = vector.shape_cast %120 : vector<1x2x192xf32> to vector<2x192xf32>
    %c7_i32_60 = arith.constant 7 : i32
    %122 = arith.subi %c7_i32_60, %c1_i32_57 : i32
    %123 = arith.index_cast %122 : i32 to index
    %c0_61 = arith.constant 0 : index
    %c0_62 = arith.constant 0 : index
    %124 = vector.load %arg22[%123, %c0_61, %c0_62] : memref<8x2x192xf32, #tpu.memory_space<vmem>>, vector<1x2x192xf32>
    %125 = vector.shape_cast %124 : vector<1x2x192xf32> to vector<2x192xf32>
    %126 = arith.select %69, %121, %125 : vector<2x192xi1>, vector<2x192xf32>
    %cst_63 = arith.constant dense<0.000000e+00> : vector<2x192xf32>
    %127 = tpu.matmul %107, %49, %cst_63 {dimension_numbers = #tpu.dot_dimension_numbers<[1], [0], [0], [1], [0, 0, 1, 1], [], []>} : vector<2x64xf32>, vector<64x192xf32>, vector<2x192xf32> -> vector<2x192xf32>
    %128 = vector.broadcast %50 : vector<1x192xf32> to vector<2x192xf32>
    %129 = arith.addf %127, %128 : vector<2x192xf32>
    %130 = vector.extract_strided_slice %126 {offsets = [0, 0], sizes = [2, 64], strides = [1, 1]} : vector<2x192xf32> to vector<2x64xf32>
    %131 = vector.extract_strided_slice %129 {offsets = [0, 0], sizes = [2, 64], strides = [1, 1]} : vector<2x192xf32> to vector<2x64xf32>
    %132 = arith.addf %130, %131 : vector<2x64xf32>
    %133 = arith.negf %132 : vector<2x64xf32>
    %134 = math.exp %133 : vector<2x64xf32>
    %cst_64 = arith.constant 1.000000e+00 : f32
    %135 = vector.broadcast %cst_64 : f32 to vector<2x64xf32>
    %136 = arith.addf %135, %134 : vector<2x64xf32>
    %137 = arith.divf %135, %136 : vector<2x64xf32>
    %138 = vector.extract_strided_slice %126 {offsets = [0, 64], sizes = [2, 64], strides = [1, 1]} : vector<2x192xf32> to vector<2x64xf32>
    %139 = vector.extract_strided_slice %129 {offsets = [0, 64], sizes = [2, 64], strides = [1, 1]} : vector<2x192xf32> to vector<2x64xf32>
    %140 = arith.addf %138, %139 : vector<2x64xf32>
    %141 = arith.negf %140 : vector<2x64xf32>
    %142 = math.exp %141 : vector<2x64xf32>
    %cst_65 = arith.constant 1.000000e+00 : f32
    %143 = vector.broadcast %cst_65 : f32 to vector<2x64xf32>
    %144 = arith.addf %143, %142 : vector<2x64xf32>
    %145 = arith.divf %143, %144 : vector<2x64xf32>
    %146 = vector.extract_strided_slice %126 {offsets = [0, 128], sizes = [2, 64], strides = [1, 1]} : vector<2x192xf32> to vector<2x64xf32>
    %147 = vector.extract_strided_slice %129 {offsets = [0, 128], sizes = [2, 64], strides = [1, 1]} : vector<2x192xf32> to vector<2x64xf32>
    %148 = arith.mulf %137, %147 : vector<2x64xf32>
    %149 = arith.addf %146, %148 : vector<2x64xf32>
    %150 = math.tanh %149 : vector<2x64xf32>
    %cst_66 = arith.constant 1.000000e+00 : f32
    %151 = vector.broadcast %cst_66 : f32 to vector<2x64xf32>
    %152 = arith.subf %151, %145 : vector<2x64xf32>
    %153 = arith.mulf %152, %150 : vector<2x64xf32>
    %154 = arith.mulf %145, %107 : vector<2x64xf32>
    %155 = arith.addf %153, %154 : vector<2x64xf32>
    %156 = vector.extract_strided_slice %155 {offsets = [0, 0], sizes = [2, 32], strides = [1, 1]} : vector<2x64xf32> to vector<2x32xf32>
    %157 = arith.index_cast %c1_i32_57 : i32 to index
    %c0_67 = arith.constant 0 : index
    %c0_68 = arith.constant 0 : index
    %158 = vector.load %arg23[%157, %c0_67, %c0_68] : memref<8x2x32xf32, #tpu.memory_space<vmem>>, vector<1x2x32xf32>
    %159 = vector.shape_cast %158 : vector<1x2x32xf32> to vector<2x32xf32>
    %160 = vector.shape_cast %156 : vector<2x32xf32> to vector<1x2x32xf32>
    tpu.vector_store %arg23[%157, %c0_67, %c0_68], %160 {strides = array<i32>} : memref<8x2x32xf32, #tpu.memory_space<vmem>>, vector<1x2x32xf32>,
    %161 = vector.extract_strided_slice %155 {offsets = [0, 32], sizes = [2, 32], strides = [1, 1]} : vector<2x64xf32> to vector<2x32xf32>
    %c7_i32_69 = arith.constant 7 : i32
    %162 = arith.subi %c7_i32_69, %c1_i32_57 : i32
    %163 = arith.index_cast %162 : i32 to index
    %c0_70 = arith.constant 0 : index
    %c0_71 = arith.constant 0 : index
    %164 = vector.load %arg24[%163, %c0_70, %c0_71] : memref<8x2x32xf32, #tpu.memory_space<vmem>>, vector<1x2x32xf32>
    %165 = vector.shape_cast %164 : vector<1x2x32xf32> to vector<2x32xf32>
    %166 = vector.shape_cast %161 : vector<2x32xf32> to vector<1x2x32xf32>
    tpu.vector_store %arg24[%163, %c0_70, %c0_71], %166 {strides = array<i32>} : memref<8x2x32xf32, #tpu.memory_space<vmem>>, vector<1x2x32xf32>,
    %c2_i32 = arith.constant 2 : i32
    %167 = arith.index_cast %c2_i32 : i32 to index
    %c0_72 = arith.constant 0 : index
    %c0_73 = arith.constant 0 : index
    %168 = vector.load %arg22[%167, %c0_72, %c0_73] : memref<8x2x192xf32, #tpu.memory_space<vmem>>, vector<1x2x192xf32>
    %169 = vector.shape_cast %168 : vector<1x2x192xf32> to vector<2x192xf32>
    %c7_i32_74 = arith.constant 7 : i32
    %170 = arith.subi %c7_i32_74, %c2_i32 : i32
    %171 = arith.index_cast %170 : i32 to index
    %c0_75 = arith.constant 0 : index
    %c0_76 = arith.constant 0 : index
    %172 = vector.load %arg22[%171, %c0_75, %c0_76] : memref<8x2x192xf32, #tpu.memory_space<vmem>>, vector<1x2x192xf32>
    %173 = vector.shape_cast %172 : vector<1x2x192xf32> to vector<2x192xf32>
    %174 = arith.select %69, %169, %173 : vector<2x192xi1>, vector<2x192xf32>
    %cst_77 = arith.constant dense<0.000000e+00> : vector<2x192xf32>
    %175 = tpu.matmul %155, %49, %cst_77 {dimension_numbers = #tpu.dot_dimension_numbers<[1], [0], [0], [1], [0, 0, 1, 1], [], []>} : vector<2x64xf32>, vector<64x192xf32>, vector<2x192xf32> -> vector<2x192xf32>
    %176 = vector.broadcast %50 : vector<1x192xf32> to vector<2x192xf32>
    %177 = arith.addf %175, %176 : vector<2x192xf32>
    %178 = vector.extract_strided_slice %174 {offsets = [0, 0], sizes = [2, 64], strides = [1, 1]} : vector<2x192xf32> to vector<2x64xf32>
    %179 = vector.extract_strided_slice %177 {offsets = [0, 0], sizes = [2, 64], strides = [1, 1]} : vector<2x192xf32> to vector<2x64xf32>
    %180 = arith.addf %178, %179 : vector<2x64xf32>
    %181 = arith.negf %180 : vector<2x64xf32>
    %182 = math.exp %181 : vector<2x64xf32>
    %cst_78 = arith.constant 1.000000e+00 : f32
    %183 = vector.broadcast %cst_78 : f32 to vector<2x64xf32>
    %184 = arith.addf %183, %182 : vector<2x64xf32>
    %185 = arith.divf %183, %184 : vector<2x64xf32>
    %186 = vector.extract_strided_slice %174 {offsets = [0, 64], sizes = [2, 64], strides = [1, 1]} : vector<2x192xf32> to vector<2x64xf32>
    %187 = vector.extract_strided_slice %177 {offsets = [0, 64], sizes = [2, 64], strides = [1, 1]} : vector<2x192xf32> to vector<2x64xf32>
    %188 = arith.addf %186, %187 : vector<2x64xf32>
    %189 = arith.negf %188 : vector<2x64xf32>
    %190 = math.exp %189 : vector<2x64xf32>
    %cst_79 = arith.constant 1.000000e+00 : f32
    %191 = vector.broadcast %cst_79 : f32 to vector<2x64xf32>
    %192 = arith.addf %191, %190 : vector<2x64xf32>
    %193 = arith.divf %191, %192 : vector<2x64xf32>
    %194 = vector.extract_strided_slice %174 {offsets = [0, 128], sizes = [2, 64], strides = [1, 1]} : vector<2x192xf32> to vector<2x64xf32>
    %195 = vector.extract_strided_slice %177 {offsets = [0, 128], sizes = [2, 64], strides = [1, 1]} : vector<2x192xf32> to vector<2x64xf32>
    %196 = arith.mulf %185, %195 : vector<2x64xf32>
    %197 = arith.addf %194, %196 : vector<2x64xf32>
    %198 = math.tanh %197 : vector<2x64xf32>
    %cst_80 = arith.constant 1.000000e+00 : f32
    %199 = vector.broadcast %cst_80 : f32 to vector<2x64xf32>
    %200 = arith.subf %199, %193 : vector<2x64xf32>
    %201 = arith.mulf %200, %198 : vector<2x64xf32>
    %202 = arith.mulf %193, %155 : vector<2x64xf32>
    %203 = arith.addf %201, %202 : vector<2x64xf32>
    %204 = vector.extract_strided_slice %203 {offsets = [0, 0], sizes = [2, 32], strides = [1, 1]} : vector<2x64xf32> to vector<2x32xf32>
    %205 = arith.index_cast %c2_i32 : i32 to index
    %c0_81 = arith.constant 0 : index
    %c0_82 = arith.constant 0 : index
    %206 = vector.load %arg23[%205, %c0_81, %c0_82] : memref<8x2x32xf32, #tpu.memory_space<vmem>>, vector<1x2x32xf32>
    %207 = vector.shape_cast %206 : vector<1x2x32xf32> to vector<2x32xf32>
    %208 = vector.shape_cast %204 : vector<2x32xf32> to vector<1x2x32xf32>
    tpu.vector_store %arg23[%205, %c0_81, %c0_82], %208 {strides = array<i32>} : memref<8x2x32xf32, #tpu.memory_space<vmem>>, vector<1x2x32xf32>,
    %209 = vector.extract_strided_slice %203 {offsets = [0, 32], sizes = [2, 32], strides = [1, 1]} : vector<2x64xf32> to vector<2x32xf32>
    %c7_i32_83 = arith.constant 7 : i32
    %210 = arith.subi %c7_i32_83, %c2_i32 : i32
    %211 = arith.index_cast %210 : i32 to index
    %c0_84 = arith.constant 0 : index
    %c0_85 = arith.constant 0 : index
    %212 = vector.load %arg24[%211, %c0_84, %c0_85] : memref<8x2x32xf32, #tpu.memory_space<vmem>>, vector<1x2x32xf32>
    %213 = vector.shape_cast %212 : vector<1x2x32xf32> to vector<2x32xf32>
    %214 = vector.shape_cast %209 : vector<2x32xf32> to vector<1x2x32xf32>
    tpu.vector_store %arg24[%211, %c0_84, %c0_85], %214 {strides = array<i32>} : memref<8x2x32xf32, #tpu.memory_space<vmem>>, vector<1x2x32xf32>,
    %c3_i32 = arith.constant 3 : i32
    %215 = arith.index_cast %c3_i32 : i32 to index
    %c0_86 = arith.constant 0 : index
    %c0_87 = arith.constant 0 : index
    %216 = vector.load %arg22[%215, %c0_86, %c0_87] : memref<8x2x192xf32, #tpu.memory_space<vmem>>, vector<1x2x192xf32>
    %217 = vector.shape_cast %216 : vector<1x2x192xf32> to vector<2x192xf32>
    %c7_i32_88 = arith.constant 7 : i32
    %218 = arith.subi %c7_i32_88, %c3_i32 : i32
    %219 = arith.index_cast %218 : i32 to index
    %c0_89 = arith.constant 0 : index
    %c0_90 = arith.constant 0 : index
    %220 = vector.load %arg22[%219, %c0_89, %c0_90] : memref<8x2x192xf32, #tpu.memory_space<vmem>>, vector<1x2x192xf32>
    %221 = vector.shape_cast %220 : vector<1x2x192xf32> to vector<2x192xf32>
    %222 = arith.select %69, %217, %221 : vector<2x192xi1>, vector<2x192xf32>
    %cst_91 = arith.constant dense<0.000000e+00> : vector<2x192xf32>
    %223 = tpu.matmul %203, %49, %cst_91 {dimension_numbers = #tpu.dot_dimension_numbers<[1], [0], [0], [1], [0, 0, 1, 1], [], []>} : vector<2x64xf32>, vector<64x192xf32>, vector<2x192xf32> -> vector<2x192xf32>
    %224 = vector.broadcast %50 : vector<1x192xf32> to vector<2x192xf32>
    %225 = arith.addf %223, %224 : vector<2x192xf32>
    %226 = vector.extract_strided_slice %222 {offsets = [0, 0], sizes = [2, 64], strides = [1, 1]} : vector<2x192xf32> to vector<2x64xf32>
    %227 = vector.extract_strided_slice %225 {offsets = [0, 0], sizes = [2, 64], strides = [1, 1]} : vector<2x192xf32> to vector<2x64xf32>
    %228 = arith.addf %226, %227 : vector<2x64xf32>
    %229 = arith.negf %228 : vector<2x64xf32>
    %230 = math.exp %229 : vector<2x64xf32>
    %cst_92 = arith.constant 1.000000e+00 : f32
    %231 = vector.broadcast %cst_92 : f32 to vector<2x64xf32>
    %232 = arith.addf %231, %230 : vector<2x64xf32>
    %233 = arith.divf %231, %232 : vector<2x64xf32>
    %234 = vector.extract_strided_slice %222 {offsets = [0, 64], sizes = [2, 64], strides = [1, 1]} : vector<2x192xf32> to vector<2x64xf32>
    %235 = vector.extract_strided_slice %225 {offsets = [0, 64], sizes = [2, 64], strides = [1, 1]} : vector<2x192xf32> to vector<2x64xf32>
    %236 = arith.addf %234, %235 : vector<2x64xf32>
    %237 = arith.negf %236 : vector<2x64xf32>
    %238 = math.exp %237 : vector<2x64xf32>
    %cst_93 = arith.constant 1.000000e+00 : f32
    %239 = vector.broadcast %cst_93 : f32 to vector<2x64xf32>
    %240 = arith.addf %239, %238 : vector<2x64xf32>
    %241 = arith.divf %239, %240 : vector<2x64xf32>
    %242 = vector.extract_strided_slice %222 {offsets = [0, 128], sizes = [2, 64], strides = [1, 1]} : vector<2x192xf32> to vector<2x64xf32>
    %243 = vector.extract_strided_slice %225 {offsets = [0, 128], sizes = [2, 64], strides = [1, 1]} : vector<2x192xf32> to vector<2x64xf32>
    %244 = arith.mulf %233, %243 : vector<2x64xf32>
    %245 = arith.addf %242, %244 : vector<2x64xf32>
    %246 = math.tanh %245 : vector<2x64xf32>
    %cst_94 = arith.constant 1.000000e+00 : f32
    %247 = vector.broadcast %cst_94 : f32 to vector<2x64xf32>
    %248 = arith.subf %247, %241 : vector<2x64xf32>
    %249 = arith.mulf %248, %246 : vector<2x64xf32>
    %250 = arith.mulf %241, %203 : vector<2x64xf32>
    %251 = arith.addf %249, %250 : vector<2x64xf32>
    %252 = vector.extract_strided_slice %251 {offsets = [0, 0], sizes = [2, 32], strides = [1, 1]} : vector<2x64xf32> to vector<2x32xf32>
    %253 = arith.index_cast %c3_i32 : i32 to index
    %c0_95 = arith.constant 0 : index
    %c0_96 = arith.constant 0 : index
    %254 = vector.load %arg23[%253, %c0_95, %c0_96] : memref<8x2x32xf32, #tpu.memory_space<vmem>>, vector<1x2x32xf32>
    %255 = vector.shape_cast %254 : vector<1x2x32xf32> to vector<2x32xf32>
    %256 = vector.shape_cast %252 : vector<2x32xf32> to vector<1x2x32xf32>
    tpu.vector_store %arg23[%253, %c0_95, %c0_96], %256 {strides = array<i32>} : memref<8x2x32xf32, #tpu.memory_space<vmem>>, vector<1x2x32xf32>,
    %257 = vector.extract_strided_slice %251 {offsets = [0, 32], sizes = [2, 32], strides = [1, 1]} : vector<2x64xf32> to vector<2x32xf32>
    %c7_i32_97 = arith.constant 7 : i32
    %258 = arith.subi %c7_i32_97, %c3_i32 : i32
    %259 = arith.index_cast %258 : i32 to index
    %c0_98 = arith.constant 0 : index
    %c0_99 = arith.constant 0 : index
    %260 = vector.load %arg24[%259, %c0_98, %c0_99] : memref<8x2x32xf32, #tpu.memory_space<vmem>>, vector<1x2x32xf32>
    %261 = vector.shape_cast %260 : vector<1x2x32xf32> to vector<2x32xf32>
    %262 = vector.shape_cast %257 : vector<2x32xf32> to vector<1x2x32xf32>
    tpu.vector_store %arg24[%259, %c0_98, %c0_99], %262 {strides = array<i32>} : memref<8x2x32xf32, #tpu.memory_space<vmem>>, vector<1x2x32xf32>,
    %c4_i32 = arith.constant 4 : i32
    %263 = arith.index_cast %c4_i32 : i32 to index
    %c0_100 = arith.constant 0 : index
    %c0_101 = arith.constant 0 : index
    %264 = vector.load %arg22[%263, %c0_100, %c0_101] : memref<8x2x192xf32, #tpu.memory_space<vmem>>, vector<1x2x192xf32>
    %265 = vector.shape_cast %264 : vector<1x2x192xf32> to vector<2x192xf32>
    %c7_i32_102 = arith.constant 7 : i32
    %266 = arith.subi %c7_i32_102, %c4_i32 : i32
    %267 = arith.index_cast %266 : i32 to index
    %c0_103 = arith.constant 0 : index
    %c0_104 = arith.constant 0 : index
    %268 = vector.load %arg22[%267, %c0_103, %c0_104] : memref<8x2x192xf32, #tpu.memory_space<vmem>>, vector<1x2x192xf32>
    %269 = vector.shape_cast %268 : vector<1x2x192xf32> to vector<2x192xf32>
    %270 = arith.select %69, %265, %269 : vector<2x192xi1>, vector<2x192xf32>
    %cst_105 = arith.constant dense<0.000000e+00> : vector<2x192xf32>
    %271 = tpu.matmul %251, %49, %cst_105 {dimension_numbers = #tpu.dot_dimension_numbers<[1], [0], [0], [1], [0, 0, 1, 1], [], []>} : vector<2x64xf32>, vector<64x192xf32>, vector<2x192xf32> -> vector<2x192xf32>
    %272 = vector.broadcast %50 : vector<1x192xf32> to vector<2x192xf32>
    %273 = arith.addf %271, %272 : vector<2x192xf32>
    %274 = vector.extract_strided_slice %270 {offsets = [0, 0], sizes = [2, 64], strides = [1, 1]} : vector<2x192xf32> to vector<2x64xf32>
    %275 = vector.extract_strided_slice %273 {offsets = [0, 0], sizes = [2, 64], strides = [1, 1]} : vector<2x192xf32> to vector<2x64xf32>
    %276 = arith.addf %274, %275 : vector<2x64xf32>
    %277 = arith.negf %276 : vector<2x64xf32>
    %278 = math.exp %277 : vector<2x64xf32>
    %cst_106 = arith.constant 1.000000e+00 : f32
    %279 = vector.broadcast %cst_106 : f32 to vector<2x64xf32>
    %280 = arith.addf %279, %278 : vector<2x64xf32>
    %281 = arith.divf %279, %280 : vector<2x64xf32>
    %282 = vector.extract_strided_slice %270 {offsets = [0, 64], sizes = [2, 64], strides = [1, 1]} : vector<2x192xf32> to vector<2x64xf32>
    %283 = vector.extract_strided_slice %273 {offsets = [0, 64], sizes = [2, 64], strides = [1, 1]} : vector<2x192xf32> to vector<2x64xf32>
    %284 = arith.addf %282, %283 : vector<2x64xf32>
    %285 = arith.negf %284 : vector<2x64xf32>
    %286 = math.exp %285 : vector<2x64xf32>
    %cst_107 = arith.constant 1.000000e+00 : f32
    %287 = vector.broadcast %cst_107 : f32 to vector<2x64xf32>
    %288 = arith.addf %287, %286 : vector<2x64xf32>
    %289 = arith.divf %287, %288 : vector<2x64xf32>
    %290 = vector.extract_strided_slice %270 {offsets = [0, 128], sizes = [2, 64], strides = [1, 1]} : vector<2x192xf32> to vector<2x64xf32>
    %291 = vector.extract_strided_slice %273 {offsets = [0, 128], sizes = [2, 64], strides = [1, 1]} : vector<2x192xf32> to vector<2x64xf32>
    %292 = arith.mulf %281, %291 : vector<2x64xf32>
    %293 = arith.addf %290, %292 : vector<2x64xf32>
    %294 = math.tanh %293 : vector<2x64xf32>
    %cst_108 = arith.constant 1.000000e+00 : f32
    %295 = vector.broadcast %cst_108 : f32 to vector<2x64xf32>
    %296 = arith.subf %295, %289 : vector<2x64xf32>
    %297 = arith.mulf %296, %294 : vector<2x64xf32>
    %298 = arith.mulf %289, %251 : vector<2x64xf32>
    %299 = arith.addf %297, %298 : vector<2x64xf32>
    %300 = vector.extract_strided_slice %299 {offsets = [0, 0], sizes = [2, 32], strides = [1, 1]} : vector<2x64xf32> to vector<2x32xf32>
    %301 = arith.index_cast %c4_i32 : i32 to index
    %c0_109 = arith.constant 0 : index
    %c0_110 = arith.constant 0 : index
    %302 = vector.load %arg23[%301, %c0_109, %c0_110] : memref<8x2x32xf32, #tpu.memory_space<vmem>>, vector<1x2x32xf32>
    %303 = vector.shape_cast %302 : vector<1x2x32xf32> to vector<2x32xf32>
    %304 = vector.shape_cast %300 : vector<2x32xf32> to vector<1x2x32xf32>
    tpu.vector_store %arg23[%301, %c0_109, %c0_110], %304 {strides = array<i32>} : memref<8x2x32xf32, #tpu.memory_space<vmem>>, vector<1x2x32xf32>,
    %305 = vector.extract_strided_slice %299 {offsets = [0, 32], sizes = [2, 32], strides = [1, 1]} : vector<2x64xf32> to vector<2x32xf32>
    %c7_i32_111 = arith.constant 7 : i32
    %306 = arith.subi %c7_i32_111, %c4_i32 : i32
    %307 = arith.index_cast %306 : i32 to index
    %c0_112 = arith.constant 0 : index
    %c0_113 = arith.constant 0 : index
    %308 = vector.load %arg24[%307, %c0_112, %c0_113] : memref<8x2x32xf32, #tpu.memory_space<vmem>>, vector<1x2x32xf32>
    %309 = vector.shape_cast %308 : vector<1x2x32xf32> to vector<2x32xf32>
    %310 = vector.shape_cast %305 : vector<2x32xf32> to vector<1x2x32xf32>
    tpu.vector_store %arg24[%307, %c0_112, %c0_113], %310 {strides = array<i32>} : memref<8x2x32xf32, #tpu.memory_space<vmem>>, vector<1x2x32xf32>,
    %c5_i32 = arith.constant 5 : i32
    %311 = arith.index_cast %c5_i32 : i32 to index
    %c0_114 = arith.constant 0 : index
    %c0_115 = arith.constant 0 : index
    %312 = vector.load %arg22[%311, %c0_114, %c0_115] : memref<8x2x192xf32, #tpu.memory_space<vmem>>, vector<1x2x192xf32>
    %313 = vector.shape_cast %312 : vector<1x2x192xf32> to vector<2x192xf32>
    %c7_i32_116 = arith.constant 7 : i32
    %314 = arith.subi %c7_i32_116, %c5_i32 : i32
    %315 = arith.index_cast %314 : i32 to index
    %c0_117 = arith.constant 0 : index
    %c0_118 = arith.constant 0 : index
    %316 = vector.load %arg22[%315, %c0_117, %c0_118] : memref<8x2x192xf32, #tpu.memory_space<vmem>>, vector<1x2x192xf32>
    %317 = vector.shape_cast %316 : vector<1x2x192xf32> to vector<2x192xf32>
    %318 = arith.select %69, %313, %317 : vector<2x192xi1>, vector<2x192xf32>
    %cst_119 = arith.constant dense<0.000000e+00> : vector<2x192xf32>
    %319 = tpu.matmul %299, %49, %cst_119 {dimension_numbers = #tpu.dot_dimension_numbers<[1], [0], [0], [1], [0, 0, 1, 1], [], []>} : vector<2x64xf32>, vector<64x192xf32>, vector<2x192xf32> -> vector<2x192xf32>
    %320 = vector.broadcast %50 : vector<1x192xf32> to vector<2x192xf32>
    %321 = arith.addf %319, %320 : vector<2x192xf32>
    %322 = vector.extract_strided_slice %318 {offsets = [0, 0], sizes = [2, 64], strides = [1, 1]} : vector<2x192xf32> to vector<2x64xf32>
    %323 = vector.extract_strided_slice %321 {offsets = [0, 0], sizes = [2, 64], strides = [1, 1]} : vector<2x192xf32> to vector<2x64xf32>
    %324 = arith.addf %322, %323 : vector<2x64xf32>
    %325 = arith.negf %324 : vector<2x64xf32>
    %326 = math.exp %325 : vector<2x64xf32>
    %cst_120 = arith.constant 1.000000e+00 : f32
    %327 = vector.broadcast %cst_120 : f32 to vector<2x64xf32>
    %328 = arith.addf %327, %326 : vector<2x64xf32>
    %329 = arith.divf %327, %328 : vector<2x64xf32>
    %330 = vector.extract_strided_slice %318 {offsets = [0, 64], sizes = [2, 64], strides = [1, 1]} : vector<2x192xf32> to vector<2x64xf32>
    %331 = vector.extract_strided_slice %321 {offsets = [0, 64], sizes = [2, 64], strides = [1, 1]} : vector<2x192xf32> to vector<2x64xf32>
    %332 = arith.addf %330, %331 : vector<2x64xf32>
    %333 = arith.negf %332 : vector<2x64xf32>
    %334 = math.exp %333 : vector<2x64xf32>
    %cst_121 = arith.constant 1.000000e+00 : f32
    %335 = vector.broadcast %cst_121 : f32 to vector<2x64xf32>
    %336 = arith.addf %335, %334 : vector<2x64xf32>
    %337 = arith.divf %335, %336 : vector<2x64xf32>
    %338 = vector.extract_strided_slice %318 {offsets = [0, 128], sizes = [2, 64], strides = [1, 1]} : vector<2x192xf32> to vector<2x64xf32>
    %339 = vector.extract_strided_slice %321 {offsets = [0, 128], sizes = [2, 64], strides = [1, 1]} : vector<2x192xf32> to vector<2x64xf32>
    %340 = arith.mulf %329, %339 : vector<2x64xf32>
    %341 = arith.addf %338, %340 : vector<2x64xf32>
    %342 = math.tanh %341 : vector<2x64xf32>
    %cst_122 = arith.constant 1.000000e+00 : f32
    %343 = vector.broadcast %cst_122 : f32 to vector<2x64xf32>
    %344 = arith.subf %343, %337 : vector<2x64xf32>
    %345 = arith.mulf %344, %342 : vector<2x64xf32>
    %346 = arith.mulf %337, %299 : vector<2x64xf32>
    %347 = arith.addf %345, %346 : vector<2x64xf32>
    %348 = vector.extract_strided_slice %347 {offsets = [0, 0], sizes = [2, 32], strides = [1, 1]} : vector<2x64xf32> to vector<2x32xf32>
    %349 = arith.index_cast %c5_i32 : i32 to index
    %c0_123 = arith.constant 0 : index
    %c0_124 = arith.constant 0 : index
    %350 = vector.load %arg23[%349, %c0_123, %c0_124] : memref<8x2x32xf32, #tpu.memory_space<vmem>>, vector<1x2x32xf32>
    %351 = vector.shape_cast %350 : vector<1x2x32xf32> to vector<2x32xf32>
    %352 = vector.shape_cast %348 : vector<2x32xf32> to vector<1x2x32xf32>
    tpu.vector_store %arg23[%349, %c0_123, %c0_124], %352 {strides = array<i32>} : memref<8x2x32xf32, #tpu.memory_space<vmem>>, vector<1x2x32xf32>,
    %353 = vector.extract_strided_slice %347 {offsets = [0, 32], sizes = [2, 32], strides = [1, 1]} : vector<2x64xf32> to vector<2x32xf32>
    %c7_i32_125 = arith.constant 7 : i32
    %354 = arith.subi %c7_i32_125, %c5_i32 : i32
    %355 = arith.index_cast %354 : i32 to index
    %c0_126 = arith.constant 0 : index
    %c0_127 = arith.constant 0 : index
    %356 = vector.load %arg24[%355, %c0_126, %c0_127] : memref<8x2x32xf32, #tpu.memory_space<vmem>>, vector<1x2x32xf32>
    %357 = vector.shape_cast %356 : vector<1x2x32xf32> to vector<2x32xf32>
    %358 = vector.shape_cast %353 : vector<2x32xf32> to vector<1x2x32xf32>
    tpu.vector_store %arg24[%355, %c0_126, %c0_127], %358 {strides = array<i32>} : memref<8x2x32xf32, #tpu.memory_space<vmem>>, vector<1x2x32xf32>,
    %c6_i32 = arith.constant 6 : i32
    %359 = arith.index_cast %c6_i32 : i32 to index
    %c0_128 = arith.constant 0 : index
    %c0_129 = arith.constant 0 : index
    %360 = vector.load %arg22[%359, %c0_128, %c0_129] : memref<8x2x192xf32, #tpu.memory_space<vmem>>, vector<1x2x192xf32>
    %361 = vector.shape_cast %360 : vector<1x2x192xf32> to vector<2x192xf32>
    %c7_i32_130 = arith.constant 7 : i32
    %362 = arith.subi %c7_i32_130, %c6_i32 : i32
    %363 = arith.index_cast %362 : i32 to index
    %c0_131 = arith.constant 0 : index
    %c0_132 = arith.constant 0 : index
    %364 = vector.load %arg22[%363, %c0_131, %c0_132] : memref<8x2x192xf32, #tpu.memory_space<vmem>>, vector<1x2x192xf32>
    %365 = vector.shape_cast %364 : vector<1x2x192xf32> to vector<2x192xf32>
    %366 = arith.select %69, %361, %365 : vector<2x192xi1>, vector<2x192xf32>
    %cst_133 = arith.constant dense<0.000000e+00> : vector<2x192xf32>
    %367 = tpu.matmul %347, %49, %cst_133 {dimension_numbers = #tpu.dot_dimension_numbers<[1], [0], [0], [1], [0, 0, 1, 1], [], []>} : vector<2x64xf32>, vector<64x192xf32>, vector<2x192xf32> -> vector<2x192xf32>
    %368 = vector.broadcast %50 : vector<1x192xf32> to vector<2x192xf32>
    %369 = arith.addf %367, %368 : vector<2x192xf32>
    %370 = vector.extract_strided_slice %366 {offsets = [0, 0], sizes = [2, 64], strides = [1, 1]} : vector<2x192xf32> to vector<2x64xf32>
    %371 = vector.extract_strided_slice %369 {offsets = [0, 0], sizes = [2, 64], strides = [1, 1]} : vector<2x192xf32> to vector<2x64xf32>
    %372 = arith.addf %370, %371 : vector<2x64xf32>
    %373 = arith.negf %372 : vector<2x64xf32>
    %374 = math.exp %373 : vector<2x64xf32>
    %cst_134 = arith.constant 1.000000e+00 : f32
    %375 = vector.broadcast %cst_134 : f32 to vector<2x64xf32>
    %376 = arith.addf %375, %374 : vector<2x64xf32>
    %377 = arith.divf %375, %376 : vector<2x64xf32>
    %378 = vector.extract_strided_slice %366 {offsets = [0, 64], sizes = [2, 64], strides = [1, 1]} : vector<2x192xf32> to vector<2x64xf32>
    %379 = vector.extract_strided_slice %369 {offsets = [0, 64], sizes = [2, 64], strides = [1, 1]} : vector<2x192xf32> to vector<2x64xf32>
    %380 = arith.addf %378, %379 : vector<2x64xf32>
    %381 = arith.negf %380 : vector<2x64xf32>
    %382 = math.exp %381 : vector<2x64xf32>
    %cst_135 = arith.constant 1.000000e+00 : f32
    %383 = vector.broadcast %cst_135 : f32 to vector<2x64xf32>
    %384 = arith.addf %383, %382 : vector<2x64xf32>
    %385 = arith.divf %383, %384 : vector<2x64xf32>
    %386 = vector.extract_strided_slice %366 {offsets = [0, 128], sizes = [2, 64], strides = [1, 1]} : vector<2x192xf32> to vector<2x64xf32>
    %387 = vector.extract_strided_slice %369 {offsets = [0, 128], sizes = [2, 64], strides = [1, 1]} : vector<2x192xf32> to vector<2x64xf32>
    %388 = arith.mulf %377, %387 : vector<2x64xf32>
    %389 = arith.addf %386, %388 : vector<2x64xf32>
    %390 = math.tanh %389 : vector<2x64xf32>
    %cst_136 = arith.constant 1.000000e+00 : f32
    %391 = vector.broadcast %cst_136 : f32 to vector<2x64xf32>
    %392 = arith.subf %391, %385 : vector<2x64xf32>
    %393 = arith.mulf %392, %390 : vector<2x64xf32>
    %394 = arith.mulf %385, %347 : vector<2x64xf32>
    %395 = arith.addf %393, %394 : vector<2x64xf32>
    %396 = vector.extract_strided_slice %395 {offsets = [0, 0], sizes = [2, 32], strides = [1, 1]} : vector<2x64xf32> to vector<2x32xf32>
    %397 = arith.index_cast %c6_i32 : i32 to index
    %c0_137 = arith.constant 0 : index
    %c0_138 = arith.constant 0 : index
    %398 = vector.load %arg23[%397, %c0_137, %c0_138] : memref<8x2x32xf32, #tpu.memory_space<vmem>>, vector<1x2x32xf32>
    %399 = vector.shape_cast %398 : vector<1x2x32xf32> to vector<2x32xf32>
    %400 = vector.shape_cast %396 : vector<2x32xf32> to vector<1x2x32xf32>
    tpu.vector_store %arg23[%397, %c0_137, %c0_138], %400 {strides = array<i32>} : memref<8x2x32xf32, #tpu.memory_space<vmem>>, vector<1x2x32xf32>,
    %401 = vector.extract_strided_slice %395 {offsets = [0, 32], sizes = [2, 32], strides = [1, 1]} : vector<2x64xf32> to vector<2x32xf32>
    %c7_i32_139 = arith.constant 7 : i32
    %402 = arith.subi %c7_i32_139, %c6_i32 : i32
    %403 = arith.index_cast %402 : i32 to index
    %c0_140 = arith.constant 0 : index
    %c0_141 = arith.constant 0 : index
    %404 = vector.load %arg24[%403, %c0_140, %c0_141] : memref<8x2x32xf32, #tpu.memory_space<vmem>>, vector<1x2x32xf32>
    %405 = vector.shape_cast %404 : vector<1x2x32xf32> to vector<2x32xf32>
    %406 = vector.shape_cast %401 : vector<2x32xf32> to vector<1x2x32xf32>
    tpu.vector_store %arg24[%403, %c0_140, %c0_141], %406 {strides = array<i32>} : memref<8x2x32xf32, #tpu.memory_space<vmem>>, vector<1x2x32xf32>,
    %c7_i32_142 = arith.constant 7 : i32
    %407 = arith.index_cast %c7_i32_142 : i32 to index
    %c0_143 = arith.constant 0 : index
    %c0_144 = arith.constant 0 : index
    %408 = vector.load %arg22[%407, %c0_143, %c0_144] : memref<8x2x192xf32, #tpu.memory_space<vmem>>, vector<1x2x192xf32>
    %409 = vector.shape_cast %408 : vector<1x2x192xf32> to vector<2x192xf32>
    %c7_i32_145 = arith.constant 7 : i32
    %410 = arith.subi %c7_i32_145, %c7_i32_142 : i32
    %411 = arith.index_cast %410 : i32 to index
    %c0_146 = arith.constant 0 : index
    %c0_147 = arith.constant 0 : index
    %412 = vector.load %arg22[%411, %c0_146, %c0_147] : memref<8x2x192xf32, #tpu.memory_space<vmem>>, vector<1x2x192xf32>
    %413 = vector.shape_cast %412 : vector<1x2x192xf32> to vector<2x192xf32>
    %414 = arith.select %69, %409, %413 : vector<2x192xi1>, vector<2x192xf32>
    %cst_148 = arith.constant dense<0.000000e+00> : vector<2x192xf32>
    %415 = tpu.matmul %395, %49, %cst_148 {dimension_numbers = #tpu.dot_dimension_numbers<[1], [0], [0], [1], [0, 0, 1, 1], [], []>} : vector<2x64xf32>, vector<64x192xf32>, vector<2x192xf32> -> vector<2x192xf32>
    %416 = vector.broadcast %50 : vector<1x192xf32> to vector<2x192xf32>
    %417 = arith.addf %415, %416 : vector<2x192xf32>
    %418 = vector.extract_strided_slice %414 {offsets = [0, 0], sizes = [2, 64], strides = [1, 1]} : vector<2x192xf32> to vector<2x64xf32>
    %419 = vector.extract_strided_slice %417 {offsets = [0, 0], sizes = [2, 64], strides = [1, 1]} : vector<2x192xf32> to vector<2x64xf32>
    %420 = arith.addf %418, %419 : vector<2x64xf32>
    %421 = arith.negf %420 : vector<2x64xf32>
    %422 = math.exp %421 : vector<2x64xf32>
    %cst_149 = arith.constant 1.000000e+00 : f32
    %423 = vector.broadcast %cst_149 : f32 to vector<2x64xf32>
    %424 = arith.addf %423, %422 : vector<2x64xf32>
    %425 = arith.divf %423, %424 : vector<2x64xf32>
    %426 = vector.extract_strided_slice %414 {offsets = [0, 64], sizes = [2, 64], strides = [1, 1]} : vector<2x192xf32> to vector<2x64xf32>
    %427 = vector.extract_strided_slice %417 {offsets = [0, 64], sizes = [2, 64], strides = [1, 1]} : vector<2x192xf32> to vector<2x64xf32>
    %428 = arith.addf %426, %427 : vector<2x64xf32>
    %429 = arith.negf %428 : vector<2x64xf32>
    %430 = math.exp %429 : vector<2x64xf32>
    %cst_150 = arith.constant 1.000000e+00 : f32
    %431 = vector.broadcast %cst_150 : f32 to vector<2x64xf32>
    %432 = arith.addf %431, %430 : vector<2x64xf32>
    %433 = arith.divf %431, %432 : vector<2x64xf32>
    %434 = vector.extract_strided_slice %414 {offsets = [0, 128], sizes = [2, 64], strides = [1, 1]} : vector<2x192xf32> to vector<2x64xf32>
    %435 = vector.extract_strided_slice %417 {offsets = [0, 128], sizes = [2, 64], strides = [1, 1]} : vector<2x192xf32> to vector<2x64xf32>
    %436 = arith.mulf %425, %435 : vector<2x64xf32>
    %437 = arith.addf %434, %436 : vector<2x64xf32>
    %438 = math.tanh %437 : vector<2x64xf32>
    %cst_151 = arith.constant 1.000000e+00 : f32
    %439 = vector.broadcast %cst_151 : f32 to vector<2x64xf32>
    %440 = arith.subf %439, %433 : vector<2x64xf32>
    %441 = arith.mulf %440, %438 : vector<2x64xf32>
    %442 = arith.mulf %433, %395 : vector<2x64xf32>
    %443 = arith.addf %441, %442 : vector<2x64xf32>
    %444 = vector.extract_strided_slice %443 {offsets = [0, 0], sizes = [2, 32], strides = [1, 1]} : vector<2x64xf32> to vector<2x32xf32>
    %445 = arith.index_cast %c7_i32_142 : i32 to index
    %c0_152 = arith.constant 0 : index
    %c0_153 = arith.constant 0 : index
    %446 = vector.load %arg23[%445, %c0_152, %c0_153] : memref<8x2x32xf32, #tpu.memory_space<vmem>>, vector<1x2x32xf32>
    %447 = vector.shape_cast %446 : vector<1x2x32xf32> to vector<2x32xf32>
    %448 = vector.shape_cast %444 : vector<2x32xf32> to vector<1x2x32xf32>
    tpu.vector_store %arg23[%445, %c0_152, %c0_153], %448 {strides = array<i32>} : memref<8x2x32xf32, #tpu.memory_space<vmem>>, vector<1x2x32xf32>,
    %449 = vector.extract_strided_slice %443 {offsets = [0, 32], sizes = [2, 32], strides = [1, 1]} : vector<2x64xf32> to vector<2x32xf32>
    %c7_i32_154 = arith.constant 7 : i32
    %450 = arith.subi %c7_i32_154, %c7_i32_142 : i32
    %451 = arith.index_cast %450 : i32 to index
    %c0_155 = arith.constant 0 : index
    %c0_156 = arith.constant 0 : index
    %452 = vector.load %arg24[%451, %c0_155, %c0_156] : memref<8x2x32xf32, #tpu.memory_space<vmem>>, vector<1x2x32xf32>
    %453 = vector.shape_cast %452 : vector<1x2x32xf32> to vector<2x32xf32>
    %454 = vector.shape_cast %449 : vector<2x32xf32> to vector<1x2x32xf32>
    tpu.vector_store %arg24[%451, %c0_155, %c0_156], %454 {strides = array<i32>} : memref<8x2x32xf32, #tpu.memory_space<vmem>>, vector<1x2x32xf32>,
    %c8_i32 = arith.constant 8 : i32
    %c0_157 = arith.constant 0 : index
    %c0_158 = arith.constant 0 : index
    %c0_159 = arith.constant 0 : index
    %455 = vector.load %arg23[%c0_157, %c0_158, %c0_159] : memref<8x2x32xf32, #tpu.memory_space<vmem>>, vector<8x2x32xf32>
    %c0_160 = arith.constant 0 : index
    %c0_161 = arith.constant 0 : index
    %c0_162 = arith.constant 0 : index
    %456 = vector.load %arg24[%c0_160, %c0_161, %c0_162] : memref<8x2x32xf32, #tpu.memory_space<vmem>>, vector<8x2x32xf32>
    %457 = tpu.concatenate %455, %456 in 2 : vector<8x2x32xf32>, vector<8x2x32xf32> -> vector<8x2x64xf32>
    %c0_163 = arith.constant 0 : index
    %c0_164 = arith.constant 0 : index
    %c0_165 = arith.constant 0 : index
    %458 = vector.load %arg19[%c0_163, %c0_164, %c0_165] : memref<8x2x64xf32, #tpu.memory_space<vmem>>, vector<8x2x64xf32>
    tpu.vector_store %arg19[%c0_163, %c0_164, %c0_165], %457 {strides = array<i32>} : memref<8x2x64xf32, #tpu.memory_space<vmem>>, vector<8x2x64xf32>,
    %cst_166 = arith.constant 0.000000e+00 : f32
    %459 = vector.broadcast %cst_166 : f32 to vector<3x2x64xf32>
    %460 = tpu.concatenate %459, %457, %459 in 0 : vector<3x2x64xf32>, vector<8x2x64xf32>, vector<3x2x64xf32> -> vector<14x2x64xf32>
    %461 = vector.extract_strided_slice %460 {offsets = [0, 0, 0], sizes = [8, 2, 64], strides = [1, 1, 1]} : vector<14x2x64xf32> to vector<8x2x64xf32>
    %462 = vector.extract_strided_slice %460 {offsets = [1, 0, 0], sizes = [8, 2, 64], strides = [1, 1, 1]} : vector<14x2x64xf32> to vector<8x2x64xf32>
    %463 = vector.extract_strided_slice %460 {offsets = [2, 0, 0], sizes = [8, 2, 64], strides = [1, 1, 1]} : vector<14x2x64xf32> to vector<8x2x64xf32>
    %464 = vector.extract_strided_slice %460 {offsets = [3, 0, 0], sizes = [8, 2, 64], strides = [1, 1, 1]} : vector<14x2x64xf32> to vector<8x2x64xf32>
    %465 = vector.extract_strided_slice %460 {offsets = [4, 0, 0], sizes = [8, 2, 64], strides = [1, 1, 1]} : vector<14x2x64xf32> to vector<8x2x64xf32>
    %466 = vector.extract_strided_slice %460 {offsets = [5, 0, 0], sizes = [8, 2, 64], strides = [1, 1, 1]} : vector<14x2x64xf32> to vector<8x2x64xf32>
    %467 = vector.extract_strided_slice %460 {offsets = [6, 0, 0], sizes = [8, 2, 64], strides = [1, 1, 1]} : vector<14x2x64xf32> to vector<8x2x64xf32>
    %468 = tpu.concatenate %461, %462, %463, %464, %465, %466, %467 in 2 : vector<8x2x64xf32>, vector<8x2x64xf32>, vector<8x2x64xf32>, vector<8x2x64xf32>, vector<8x2x64xf32>, vector<8x2x64xf32>, vector<8x2x64xf32> -> vector<8x2x448xf32>
    %c0_167 = arith.constant 0 : index
    %c0_168 = arith.constant 0 : index
    %469 = vector.load %arg11[%c0_167, %c0_168] : memref<448x128xf32, #tpu.memory_space<vmem>>, vector<448x128xf32>
    "tpu.trace_start"() <{level = 10 : i32, message = "tbk,ko->tbo"}> : () -> ()
    %cst_169 = arith.constant dense<0.000000e+00> : vector<8x2x128xf32>
    %470 = tpu.matmul %468, %469, %cst_169 {dimension_numbers = #tpu.dot_dimension_numbers<[2], [0], [0, 1], [1], [0, 0, 0, 1, 1, 1], [], []>} : vector<8x2x448xf32>, vector<448x128xf32>, vector<8x2x128xf32> -> vector<8x2x128xf32>
    "tpu.trace_stop"() : () -> ()
    %c0_170 = arith.constant 0 : index
    %c0_171 = arith.constant 0 : index
    %471 = vector.load %arg12[%c0_170, %c0_171] : memref<1x128xf32, #tpu.memory_space<vmem>>, vector<1x128xf32>
    %472 = vector.shape_cast %471 : vector<1x128xf32> to vector<1x1x128xf32>
    %473 = vector.broadcast %472 : vector<1x1x128xf32> to vector<8x2x128xf32>
    %474 = arith.addf %470, %473 : vector<8x2x128xf32>
    %cst_172 = arith.constant 0.000000e+00 : f32
    %475 = vector.broadcast %cst_172 : f32 to vector<8x2x128xf32>
    %476 = arith.maximumf %474, %475 : vector<8x2x128xf32>
    %cst_173 = arith.constant 0.000000e+00 : f32
    %477 = vector.broadcast %cst_173 : f32 to vector<1x2x128xf32>
    %478 = tpu.concatenate %477, %476, %477 in 0 : vector<1x2x128xf32>, vector<8x2x128xf32>, vector<1x2x128xf32> -> vector<10x2x128xf32>
    %479 = vector.extract_strided_slice %478 {offsets = [0, 0, 0], sizes = [8, 2, 128], strides = [1, 1, 1]} : vector<10x2x128xf32> to vector<8x2x128xf32>
    %480 = vector.extract_strided_slice %478 {offsets = [1, 0, 0], sizes = [8, 2, 128], strides = [1, 1, 1]} : vector<10x2x128xf32> to vector<8x2x128xf32>
    %481 = vector.extract_strided_slice %478 {offsets = [2, 0, 0], sizes = [8, 2, 128], strides = [1, 1, 1]} : vector<10x2x128xf32> to vector<8x2x128xf32>
    %482 = tpu.concatenate %479, %480, %481 in 2 : vector<8x2x128xf32>, vector<8x2x128xf32>, vector<8x2x128xf32> -> vector<8x2x384xf32>
    %c0_174 = arith.constant 0 : index
    %c0_175 = arith.constant 0 : index
    %483 = vector.load %arg13[%c0_174, %c0_175] : memref<384x128xf32, #tpu.memory_space<vmem>>, vector<384x128xf32>
    "tpu.trace_start"() <{level = 10 : i32, message = "tbk,kc->tbc"}> : () -> ()
    %cst_176 = arith.constant dense<0.000000e+00> : vector<8x2x128xf32>
    %484 = tpu.matmul %482, %483, %cst_176 {dimension_numbers = #tpu.dot_dimension_numbers<[2], [0], [0, 1], [1], [0, 0, 0, 1, 1, 1], [], []>} : vector<8x2x384xf32>, vector<384x128xf32>, vector<8x2x128xf32> -> vector<8x2x128xf32>
    "tpu.trace_stop"() : () -> ()
    %c0_177 = arith.constant 0 : index
    %c0_178 = arith.constant 0 : index
    %485 = vector.load %arg14[%c0_177, %c0_178] : memref<1x128xf32, #tpu.memory_space<vmem>>, vector<1x128xf32>
    %486 = vector.shape_cast %485 : vector<1x128xf32> to vector<1x1x128xf32>
    %487 = vector.broadcast %486 : vector<1x1x128xf32> to vector<8x2x128xf32>
    %488 = arith.addf %484, %487 : vector<8x2x128xf32>
    %cst_179 = arith.constant 0.000000e+00 : f32
    %489 = vector.broadcast %cst_179 : f32 to vector<8x2x128xf32>
    %490 = arith.maximumf %488, %489 : vector<8x2x128xf32>
    %491 = tpu.concatenate %457, %457 in 2 : vector<8x2x64xf32>, vector<8x2x64xf32> -> vector<8x2x128xf32>
    %492 = arith.addf %490, %491 : vector<8x2x128xf32>
    %493 = vector.extract_strided_slice %492 {offsets = [0, 0, 0], sizes = [1, 2, 128], strides = [1, 1, 1]} : vector<8x2x128xf32> to vector<1x2x128xf32>
    %494 = vector.shape_cast %493 : vector<1x2x128xf32> to vector<2x128xf32>
    %495 = vector.extract_strided_slice %492 {offsets = [1, 0, 0], sizes = [1, 2, 128], strides = [1, 1, 1]} : vector<8x2x128xf32> to vector<1x2x128xf32>
    %496 = vector.shape_cast %495 : vector<1x2x128xf32> to vector<2x128xf32>
    %497 = arith.addf %494, %496 : vector<2x128xf32>
    %498 = vector.extract_strided_slice %492 {offsets = [2, 0, 0], sizes = [1, 2, 128], strides = [1, 1, 1]} : vector<8x2x128xf32> to vector<1x2x128xf32>
    %499 = vector.shape_cast %498 : vector<1x2x128xf32> to vector<2x128xf32>
    %500 = arith.addf %497, %499 : vector<2x128xf32>
    %501 = vector.extract_strided_slice %492 {offsets = [3, 0, 0], sizes = [1, 2, 128], strides = [1, 1, 1]} : vector<8x2x128xf32> to vector<1x2x128xf32>
    %502 = vector.shape_cast %501 : vector<1x2x128xf32> to vector<2x128xf32>
    %503 = arith.addf %500, %502 : vector<2x128xf32>
    %504 = vector.extract_strided_slice %492 {offsets = [4, 0, 0], sizes = [1, 2, 128], strides = [1, 1, 1]} : vector<8x2x128xf32> to vector<1x2x128xf32>
    %505 = vector.shape_cast %504 : vector<1x2x128xf32> to vector<2x128xf32>
    %506 = arith.addf %503, %505 : vector<2x128xf32>
    %507 = vector.extract_strided_slice %492 {offsets = [5, 0, 0], sizes = [1, 2, 128], strides = [1, 1, 1]} : vector<8x2x128xf32> to vector<1x2x128xf32>
    %508 = vector.shape_cast %507 : vector<1x2x128xf32> to vector<2x128xf32>
    %509 = arith.addf %506, %508 : vector<2x128xf32>
    %510 = vector.extract_strided_slice %492 {offsets = [6, 0, 0], sizes = [1, 2, 128], strides = [1, 1, 1]} : vector<8x2x128xf32> to vector<1x2x128xf32>
    %511 = vector.shape_cast %510 : vector<1x2x128xf32> to vector<2x128xf32>
    %512 = arith.addf %509, %511 : vector<2x128xf32>
    %513 = vector.extract_strided_slice %492 {offsets = [7, 0, 0], sizes = [1, 2, 128], strides = [1, 1, 1]} : vector<8x2x128xf32> to vector<1x2x128xf32>
    %514 = vector.shape_cast %513 : vector<1x2x128xf32> to vector<2x128xf32>
    %515 = arith.addf %512, %514 : vector<2x128xf32>
    %cst_180 = arith.constant 1.250000e-01 : f32
    %516 = vector.broadcast %cst_180 : f32 to vector<2x128xf32>
    %517 = arith.mulf %515, %516 : vector<2x128xf32>
    %c0_181 = arith.constant 0 : index
    %c0_182 = arith.constant 0 : index
    %518 = vector.load %arg15[%c0_181, %c0_182] : memref<128x64xf32, #tpu.memory_space<vmem>>, vector<128x64xf32>
    %cst_183 = arith.constant dense<0.000000e+00> : vector<2x64xf32>
    %519 = tpu.matmul %517, %518, %cst_183 {dimension_numbers = #tpu.dot_dimension_numbers<[1], [0], [0], [1], [0, 0, 1, 1], [], []>} : vector<2x128xf32>, vector<128x64xf32>, vector<2x64xf32> -> vector<2x64xf32>
    %c0_184 = arith.constant 0 : index
    %c0_185 = arith.constant 0 : index
    %520 = vector.load %arg16[%c0_184, %c0_185] : memref<1x64xf32, #tpu.memory_space<vmem>>, vector<1x64xf32>
    %521 = vector.broadcast %520 : vector<1x64xf32> to vector<2x64xf32>
    %522 = arith.addf %519, %521 : vector<2x64xf32>
    %cst_186 = arith.constant 0.000000e+00 : f32
    %523 = vector.broadcast %cst_186 : f32 to vector<2x64xf32>
    %524 = arith.maximumf %522, %523 : vector<2x64xf32>
    %c0_187 = arith.constant 0 : index
    %c0_188 = arith.constant 0 : index
    %525 = vector.load %arg17[%c0_187, %c0_188] : memref<64x1xf32, #tpu.memory_space<vmem>>, vector<64x1xf32>
    %cst_189 = arith.constant dense<0.000000e+00> : vector<2x1xf32>
    %526 = tpu.matmul %524, %525, %cst_189 {dimension_numbers = #tpu.dot_dimension_numbers<[1], [0], [0], [1], [0, 0, 1, 1], [], []>} : vector<2x64xf32>, vector<64x1xf32>, vector<2x1xf32> -> vector<2x1xf32>
    %c0_190 = arith.constant 0 : index
    %c0_191 = arith.constant 0 : index
    %527 = vector.load %arg18[%c0_190, %c0_191] : memref<1x1xf32, #tpu.memory_space<vmem>>, vector<1x1xf32>
    %528 = vector.broadcast %527 : vector<1x1xf32> to vector<2x1xf32>
    %529 = arith.addf %526, %528 : vector<2x1xf32>
    %c0_192 = arith.constant 0 : index
    %c0_193 = arith.constant 0 : index
    %530 = vector.load %arg21[%c0_192, %c0_193] : memref<2x1xf32, #tpu.memory_space<vmem>>, vector<2x1xf32>
    tpu.vector_store %arg21[%c0_192, %c0_193], %529 {strides = array<i32>} : memref<2x1xf32, #tpu.memory_space<vmem>>, vector<2x1xf32>,
    return
  }
}

</mosaic_0001>

<llo_original>
// kernel: bsa_forward.1
$region0: #{bsa_forward.1}
  #allocation0 [shape = 'u32[]', space=smem, size = 0x4, offset = 0x4, fixed_abs, tag = 'smem constant byte address 0x4 - core index']
  #allocation1 [shape = 'u32[144,128]{1,0:T(1,128)}', space=vmem, size = 0x12000, scoped, tag = 'internal scratch']
  #allocation2 [shape = 'f32[8,2,192]{2,1,0:T(2,128)}', space=vmem, size = 0x4000, scoped, tag = 'scratch operand']
  #allocation3 [shape = 'f32[8,2,32]{2,1,0:T(2,128)}', space=vmem, size = 0x2000, scoped, tag = 'scratch operand']
  #allocation4 [shape = 'f32[8,2,32]{2,1,0:T(2,128)}', space=vmem, size = 0x2000, scoped, tag = 'scratch operand']
  #allocation5 [shape = 'f32[1,1]{1,0:T(1,128)S(1)}', space=vmem, size = 0x200, scoped, tag = 'scoped memory for bsa_forward.1']
  #allocation6 [shape = 'f32[1,1]{1,0:T(1,128)S(1)}', space=vmem, size = 0x200, scoped, tag = 'scoped memory for bsa_forward.1']
  %s0 = inlined_call_operand.vmem [shape: f32[8,2,32], index: 0, kind: input, shape index: {}]
  %s1 = inlined_call_operand.vmem [shape: f32[32,64], index: 1, kind: input, shape index: {}]
  %s2 = inlined_call_operand.vmem [shape: f32[1,64], index: 2, kind: input, shape index: {}]
  %s3 = inlined_call_operand.vmem [shape: f32[64,1], index: 3, kind: input, shape index: {}]
  %s4 = inlined_call_operand.<no memory space> [shape: f32[1,1], index: 4, kind: input, shape index: {}]
  %s5 = inlined_call_operand.vmem [shape: f32[32,32], index: 5, kind: input, shape index: {}]
  %s6 = inlined_call_operand.vmem [shape: f32[1,32], index: 6, kind: input, shape index: {}]
  %s7 = inlined_call_operand.vmem [shape: f32[32,192], index: 7, kind: input, shape index: {}]
  %s8 = inlined_call_operand.vmem [shape: f32[1,192], index: 8, kind: input, shape index: {}]
  %s9 = inlined_call_operand.vmem [shape: f32[64,192], index: 9, kind: input, shape index: {}]
  %s10 = inlined_call_operand.vmem [shape: f32[1,192], index: 10, kind: input, shape index: {}]
  %s11 = inlined_call_operand.hbm [shape: f32[448,128], index: 11, kind: input, shape index: {}]
  %s12 = inlined_call_operand.vmem [shape: f32[1,128], index: 12, kind: input, shape index: {}]
  %s13 = inlined_call_operand.hbm [shape: f32[384,128], index: 13, kind: input, shape index: {}]
  %s14 = inlined_call_operand.vmem [shape: f32[1,128], index: 14, kind: input, shape index: {}]
  %s15 = inlined_call_operand.vmem [shape: f32[128,64], index: 15, kind: input, shape index: {}]
  %s16 = inlined_call_operand.vmem [shape: f32[1,64], index: 16, kind: input, shape index: {}]
  %s17 = inlined_call_operand.vmem [shape: f32[64,1], index: 17, kind: input, shape index: {}]
  %s18 = inlined_call_operand.<no memory space> [shape: f32[1,1], index: 18, kind: input, shape index: {}]
  %s19 = inlined_call_operand.vmem [shape: f32[8,2,64], index: 19, kind: output, shape index: {0}]
  %s20 = inlined_call_operand.vmem [shape: f32[8,2,1], index: 20, kind: output, shape index: {1}]
  %s21 = inlined_call_operand.vmem [shape: f32[2,1], index: 21, kind: output, shape index: {2}]
  %22 = xla_tuple %s19, %s20, %s21
  %s23 = sld [smem:[#allocation0]]
  $region110: #{bsa_forward.1} parent=0
    _
  %s25 = ssub.s32 1, %s23
  %s26 = scalar_select 0, %s25, %s23
  %v27 = vstv %s4
  %28 = vst [vmem:[#allocation5] sm:$0x1] %v27
  %v29 = vstv %s18
  %30 = vst [vmem:[#allocation6] sm:$0x1] %v29
  $region1: #{bsa_forward.1} parent=0
    #allocation7 [shape = 'u8[229376]{0}', space=vmem, size = 0x38000, scoped, tag = 'input window, operand 11, single buffered']
    #allocation8 [shape = 's32[1]{0}', space=sflag, size = 0x4, scoped, tag = 'scoped memory for bsa_forward.1']
    #allocation9 [shape = 'u8[196608]{0}', space=vmem, size = 0x30000, scoped, tag = 'input window, operand 13, single buffered']
    #allocation10 [shape = 's32[1]{0}', space=sflag, size = 0x4, scoped, tag = 'scoped memory for bsa_forward.1']
    %31 = vsyncpa [#allocation8], 0
    %32 = vsyncpa [#allocation10], 0
    // Predicated region
    $region2: #{bsa_forward.1} parent=1 // pred_check
      _
    $region3: #{bsa_forward.1} parent=1 // pred_check_branch
      %34 = sbr.rel (0) target = $region5
    $region4: #{bsa_forward.1} parent=1 // pred_region
      _
    $region5: #{bsa_forward.1} parent=1 // pred_fallthru
      _
    // Predicated region
    $region6: #{bsa_forward.1} parent=1 // pred_check
      _
    $region7: #{bsa_forward.1} parent=1 // pred_check_branch
      %36 = sbr.rel (0) target = $region9
    $region8: #{bsa_forward.1} parent=1 // pred_region
      _
    $region9: #{bsa_forward.1} parent=1 // pred_fallthru
      _
    // Predicated region
    $region10: #{bsa_forward.1} parent=1 // pred_check
      _
    $region11: #{bsa_forward.1} parent=1 // pred_check_branch
      %38 = sbr.rel (0) target = $region13
    $region12: #{bsa_forward.1} parent=1 // pred_region
      _
    $region13: #{bsa_forward.1} parent=1 // pred_fallthru
      _
    // Predicated region
    $region14: #{bsa_forward.1} parent=1 // pred_check
      _
    $region15: #{bsa_forward.1} parent=1 // pred_check_branch
      %40 = sbr.rel (0) target = $region17
    $region16: #{bsa_forward.1} parent=1 // pred_region
      _
    $region17: #{bsa_forward.1} parent=1 // pred_fallthru
      _
    // Predicated region
    $region18: #{bsa_forward.1} parent=1 // pred_check
      _
    $region19: #{bsa_forward.1} parent=1 // pred_check_branch
      %42 = sbr.rel (0) target = $region21
    $region20: #{bsa_forward.1} parent=1 // pred_region
      _
    $region21: #{bsa_forward.1} parent=1 // pred_fallthru
      _
    // Predicated region
    $region22: #{bsa_forward.1} parent=1 // pred_check
      _
    $region23: #{bsa_forward.1} parent=1 // pred_check_branch
      %44 = sbr.rel (0) target = $region25
    $region24: #{bsa_forward.1} parent=1 // pred_region
      _
    $region25: #{bsa_forward.1} parent=1 // pred_fallthru
      _
    // Predicated region
    $region26: #{bsa_forward.1} parent=1 // pred_check
      _
    $region27: #{bsa_forward.1} parent=1 // pred_check_branch
      %46 = sbr.rel (0) target = $region29
    $region28: #{bsa_forward.1} parent=1 // pred_region
      _
    $region29: #{bsa_forward.1} parent=1 // pred_fallthru
      _
    // Predicated region
    $region30: #{bsa_forward.1} parent=1 // pred_check
      _
    $region31: #{bsa_forward.1} parent=1 // pred_check_branch
      %48 = sbr.rel (0) target = $region33
    $region32: #{bsa_forward.1} parent=1 // pred_region
      _
    $region33: #{bsa_forward.1} parent=1 // pred_fallthru
      _
    // Predicated region
    $region34: #{bsa_forward.1} parent=1 // pred_check
      _
    $region35: #{bsa_forward.1} parent=1 // pred_check_branch
      %50 = sbr.rel (0) target = $region37
    $region36: #{bsa_forward.1} parent=1 // pred_region
      _
    $region37: #{bsa_forward.1} parent=1 // pred_fallthru
      _
    // Predicated region
    $region38: #{bsa_forward.1} parent=1 // pred_check
      _
    $region39: #{bsa_forward.1} parent=1 // pred_check_branch
      %52 = sbr.rel (0) target = $region41
    $region40: #{bsa_forward.1} parent=1 // pred_region
      _
    $region41: #{bsa_forward.1} parent=1 // pred_fallthru
      _
    // Predicated region
    $region42: #{bsa_forward.1} parent=1 // pred_check
      _
    $region43: #{bsa_forward.1} parent=1 // pred_check_branch
      %54 = sbr.rel (0) target = $region45
    $region44: #{bsa_forward.1} parent=1 // pred_region
      _
    $region45: #{bsa_forward.1} parent=1 // pred_fallthru
      _
    // Predicated region
    $region46: #{bsa_forward.1} parent=1 // pred_check
      _
    $region47: #{bsa_forward.1} parent=1 // pred_check_branch
      %56 = sbr.rel (0) target = $region49
    $region48: #{bsa_forward.1} parent=1 // pred_region
      %s58 = ssub.s32 7168, 7168
      %59 = vsyncadd [#allocation8], %s58
      %s60 = sshll.u32 [#allocation7], 4
      %s61 = int_to_ptr.vmem [resolvable:$true] %s60
      %66 = dma.hbm_to_vmem [thread:$0]  %s11, 7168, %s61, [#allocation8], 128, 128, 8
    $region49: #{bsa_forward.1} parent=1 // pred_fallthru
      _
    // Predicated region
    $region50: #{bsa_forward.1} parent=1 // pred_check
      _
    $region51: #{bsa_forward.1} parent=1 // pred_check_branch
      %68 = sbr.rel (0) target = $region53
    $region52: #{bsa_forward.1} parent=1 // pred_region
      _
    $region53: #{bsa_forward.1} parent=1 // pred_fallthru
      _
    // Predicated region
    $region54: #{bsa_forward.1} parent=1 // pred_check
      _
    $region55: #{bsa_forward.1} parent=1 // pred_check_branch
      %70 = sbr.rel (0) target = $region57
    $region56: #{bsa_forward.1} parent=1 // pred_region
      %s72 = ssub.s32 6144, 6144
      %73 = vsyncadd [#allocation10], %s72
      %s74 = sshll.u32 [#allocation9], 4
      %s75 = int_to_ptr.vmem [resolvable:$true] %s74
      %80 = dma.hbm_to_vmem [thread:$0]  %s13, 6144, %s75, [#allocation10], 128, 128, 8
    $region57: #{bsa_forward.1} parent=1 // pred_fallthru
      _
    // Predicated region
    $region58: #{bsa_forward.1} parent=1 // pred_check
      _
    $region59: #{bsa_forward.1} parent=1 // pred_check_branch
      %82 = sbr.rel (0) target = $region61
    $region60: #{bsa_forward.1} parent=1 // pred_region
      _
    $region61: #{bsa_forward.1} parent=1 // pred_fallthru
      _
    // Predicated region
    $region62: #{bsa_forward.1} parent=1 // pred_check
      _
    $region63: #{bsa_forward.1} parent=1 // pred_check_branch
      %84 = sbr.rel (0) target = $region65
    $region64: #{bsa_forward.1} parent=1 // pred_region
      _
    $region65: #{bsa_forward.1} parent=1 // pred_fallthru
      _
    // Predicated region
    $region66: #{bsa_forward.1} parent=1 // pred_check
      _
    $region67: #{bsa_forward.1} parent=1 // pred_check_branch
      %86 = sbr.rel (0) target = $region69
    $region68: #{bsa_forward.1} parent=1 // pred_region
      _
    $region69: #{bsa_forward.1} parent=1 // pred_fallthru
      _
    // Predicated region
    $region70: #{bsa_forward.1} parent=1 // pred_check
      _
    $region71: #{bsa_forward.1} parent=1 // pred_check_branch
      %88 = sbr.rel (0) target = $region73
    $region72: #{bsa_forward.1} parent=1 // pred_region
      _
    $region73: #{bsa_forward.1} parent=1 // pred_fallthru
      _
    // Predicated region
    $region74: #{bsa_forward.1} parent=1 // pred_check
      _
    $region75: #{bsa_forward.1} parent=1 // pred_check_branch
      %90 = sbr.rel (0) target = $region77
    $region76: #{bsa_forward.1} parent=1 // pred_region
      _
    $region77: #{bsa_forward.1} parent=1 // pred_fallthru
      _
    // Predicated region
    $region78: #{bsa_forward.1} parent=1 // pred_check
      _
    $region79: #{bsa_forward.1} parent=1 // pred_check_branch
      %92 = sbr.rel (0) target = $region81
    $region80: #{bsa_forward.1} parent=1 // pred_region
      %93 = dma.done [#allocation8], 7168
    $region81: #{bsa_forward.1} parent=1 // pred_fallthru
      _
    // Predicated region
    $region82: #{bsa_forward.1} parent=1 // pred_check
      _
    $region83: #{bsa_forward.1} parent=1 // pred_check_branch
      %95 = sbr.rel (0) target = $region85
    $region84: #{bsa_forward.1} parent=1 // pred_region
      %96 = dma.done [#allocation10], 6144
    $region85: #{bsa_forward.1} parent=1 // pred_fallthru
      _
    %v97 = vld [vmem:[%s0] sm:$0x3]
    %v98 = vld [vmem:[%s0 + $0x2] sm:$0x3]
    %v99 = vld [vmem:[%s0 + $0x4] sm:$0x3]
    %v100 = vld [vmem:[%s0 + $0x6] sm:$0x3]
    %v101 = vld [vmem:[%s0 + $0x8] sm:$0x3]
    %v102 = vld [vmem:[%s0 + $0xa] sm:$0x3]
    %v103 = vld [vmem:[%s0 + $0xc] sm:$0x3]
    %v104 = vld [vmem:[%s0 + $0xe] sm:$0x3]
    %v105 = vsub.f32 %v98, %v97
    %v106 = vsub.f32 %v99, %v98
    %v107 = vsub.f32 %v100, %v99
    %v108 = vsub.f32 %v101, %v100
    %v109 = vsub.f32 %v102, %v101
    %v110 = vsub.f32 %v103, %v102
    %v111 = vsub.f32 %v104, %v103
    %v112 = vld [vmem:[%s1] sm:$0xff]
    %v113 = vld [vmem:[%s1 + $0x8] sm:$0xff]
    %v114 = vld [vmem:[%s1 + $0x10] sm:$0xff]
    %v115 = vld [vmem:[%s1 + $0x18] sm:$0xff]
    %v116 = vld [vmem:[%s2] sm:$0x1]
    %v118 = vlaneseq
    %v119 = vshrl.u32 %v118, 7
    %v120 = vsub.s32 0, %v119
    %v121 = vrot.slane %v116, %v120
    %v130 = vcombine.low 0.0, %v105
    %v131 = vcombine.low %v106, %v107
    %v133 = vunpack.c.l.s4 1983009808
    %v134 = vunpack.c.0.s8 %v133
    %v135 = vlaneseq
    %v136 = vshrl.u32 %v135, 7
    %v137 = vsub.s32 %v134, %v136
    %v138 = vrot.slane %v130, %v137
    %v140 = vunpack.c.l.s4 1983009808
    %v141 = vunpack.c.0.s8 %v140
    %v142 = vlaneseq
    %v143 = vshrl.u32 %v142, 7
    %v144 = vsub.s32 %v141, %v143
    %v145 = vrot.slane %v131, %v144
    %v146 = vcombine.low %v138, %v145
    %v147 = vcombine.low %v108, %v109
    %v148 = vcombine.low %v110, %v111
    %v150 = vunpack.c.l.s4 1983009808
    %v151 = vunpack.c.0.s8 %v150
    %v152 = vlaneseq
    %v153 = vshrl.u32 %v152, 7
    %v154 = vsub.s32 %v151, %v153
    %v155 = vrot.slane %v147, %v154
    %v157 = vunpack.c.l.s4 1983009808
    %v158 = vunpack.c.0.s8 %v157
    %v159 = vlaneseq
    %v160 = vshrl.u32 %v159, 7
    %v161 = vsub.s32 %v158, %v160
    %v162 = vrot.slane %v148, %v161
    %v163 = vcombine.low %v155, %v162
    %v164 = vcombine.low %v121, %v121
    %v166 = vunpack.c.l.s4 1983009808
    %v167 = vunpack.c.0.s8 %v166
    %v168 = vlaneseq
    %v169 = vshrl.u32 %v168, 7
    %v170 = vsub.s32 %v167, %v169
    %v171 = vrot.slane %v164, %v170
    %v172 = vcombine.low %v171, %v171
    %vm174 = vcmask 261120
    %v175 = vsel %vm174, %v146, 0
    %v177 = vsel %vm174, %v163, 0
    %179 = vmatprep.subr.mxu0 0.0
    %180 = vmatpush1.msra.mxu0 0.0
    %181 = vmatprep.subr.mxu0 0.0
    %182 = vmatpush1.msra.mxu0 0.0
    %183 = vmatprep.subr.mxu0 0.0
    %184 = vmatpush1.msra.mxu0 0.0
    %185 = vmatprep.subr.mxu0 0.0
    %186 = vmatpush1.msra.mxu0 0.0
    %187 = vmatprep.subr.mxu0 0.0
    %188 = vmatpush1.msra.mxu0 0.0
    %189 = vmatprep.subr.mxu0 0.0
    %190 = vmatpush1.msra.mxu0 0.0
    %191 = vmatprep.subr.mxu0 0.0
    %192 = vmatpush1.msra.mxu0 0.0
    %193 = vmatprep.subr.mxu0 0.0
    %194 = vmatpush1.msra.mxu0 0.0
    %195 = vmatprep.subr.mxu0 0.0
    %196 = vmatpush1.msra.mxu0 0.0
    %197 = vmatprep.subr.mxu0 0.0
    %198 = vmatpush1.msra.mxu0 0.0
    %199 = vmatprep.subr.mxu0 0.0
    %200 = vmatpush1.msra.mxu0 0.0
    %201 = vmatprep.subr.mxu0 0.0
    %202 = vmatpush1.msra.mxu0 0.0
    %203 = vmatprep.subr.mxu0 0.0
    %204 = vmatpush1.msra.mxu0 %v115
    %205 = vmatprep.subr.mxu0 0.0
    %206 = vmatpush1.msra.mxu0 %v114
    %207 = vmatprep.subr.mxu0 0.0
    %208 = vmatpush1.msra.mxu0 %v113
    %209 = vmatprep.subr.mxu0 0.0
    %210 = vmatpush1.msra.mxu0 %v112
    %211 = vmatprep.subr.mxu0 0.0
    %212 = vmatpush2.msra.mxu0 0.0
    %213 = vmatprep.subr.mxu0 0.0
    %214 = vmatpush2.msra.mxu0 0.0
    %215 = vmatprep.subr.mxu0 0.0
    %216 = vmatpush2.msra.mxu0 0.0
    %217 = vmatprep.subr.mxu0 0.0
    %218 = vmatpush2.msra.mxu0 0.0
    %219 = vmatprep.subr.mxu0 0.0
    %220 = vmatpush2.msra.mxu0 0.0
    %221 = vmatprep.subr.mxu0 0.0
    %222 = vmatpush2.msra.mxu0 0.0
    %223 = vmatprep.subr.mxu0 0.0
    %224 = vmatpush2.msra.mxu0 0.0
    %225 = vmatprep.subr.mxu0 0.0
    %226 = vmatpush2.msra.mxu0 0.0
    %227 = vmatprep.subr.mxu0 0.0
    %228 = vmatpush2.msra.mxu0 0.0
    %229 = vmatprep.subr.mxu0 0.0
    %230 = vmatpush2.msra.mxu0 0.0
    %231 = vmatprep.subr.mxu0 0.0
    %232 = vmatpush2.msra.mxu0 0.0
    %233 = vmatprep.subr.mxu0 0.0
    %234 = vmatpush2.msra.mxu0 0.0
    %235 = vmatprep.subr.mxu0 0.0
    %236 = vmatpush2.msra.mxu0 0.0
    %237 = vmatprep.subr.mxu0 0.0
    %238 = vmatpush2.msra.mxu0 0.0
    %239 = vmatprep.subr.mxu0 0.0
    %240 = vmatpush2.msra.mxu0 0.0
    %241 = vmatprep.subr.mxu0 0.0
    %242 = vmatpush2.msra.mxu0 0.0
    %243 = vmatprep.mubr.f32.mxu0 0.0
    %244 = vmatmul.mubr.f32.gmra.mxu0 %v175
    %v245 = vpop.f32.mrf.mxu0
    %v246 = vadd.f32 %v172, %v245
    %v247 = vpop.f32.mrf.mxu0
    %248 = vmatprep.mubr.f32.mxu0 0.0
    %249 = vmatmul.mubr.f32.gmra.mxu0 %v177
    %v250 = vpop.f32.mrf.mxu0
    %v251 = vadd.f32 %v172, %v250
    %v252 = vpop.f32.mrf.mxu0
    %253 = vdwg.mxu0
    %v256 = vcombine.high %v246, %v246
    %v258 = vunpack.c.l.s4 1983009808
    %v259 = vunpack.c.0.s8 %v258
    %v260 = vlaneseq
    %v261 = vshrl.u32 %v260, 7
    %v262 = vsub.s32 %v259, %v261
    %v263 = vrot.slane %v246, %v262
    %v265 = vunpack.c.l.s4 1983009808
    %v266 = vunpack.c.0.s8 %v265
    %v267 = vlaneseq
    %v268 = vshrl.u32 %v267, 7
    %v269 = vsub.s32 %v266, %v268
    %v270 = vrot.slane %v256, %v269
    %v271 = vcombine.high %v263, %v263
    %v272 = vcombine.high %v270, %v270
    %v273 = vcombine.high %v251, %v251
    %v275 = vunpack.c.l.s4 1983009808
    %v276 = vunpack.c.0.s8 %v275
    %v277 = vlaneseq
    %v278 = vshrl.u32 %v277, 7
    %v279 = vsub.s32 %v276, %v278
    %v280 = vrot.slane %v251, %v279
    %v282 = vunpack.c.l.s4 1983009808
    %v283 = vunpack.c.0.s8 %v282
    %v284 = vlaneseq
    %v285 = vshrl.u32 %v284, 7
    %v286 = vsub.s32 %v283, %v285
    %v287 = vrot.slane %v273, %v286
    %v288 = vcombine.high %v280, %v280
    %v289 = vcombine.high %v287, %v287
    %v298 = vmax.f32 %v263, 0.0
    %v299 = vmax.f32 %v271, 0.0
    %v300 = vmax.f32 %v270, 0.0
    %v301 = vmax.f32 %v272, 0.0
    %v302 = vmax.f32 %v280, 0.0
    %v303 = vmax.f32 %v288, 0.0
    %v304 = vmax.f32 %v287, 0.0
    %v305 = vmax.f32 %v289, 0.0
    %v306 = vld [vmem:[%s3] sm:$0xff]
    %v307 = vld [vmem:[%s3 + $0x8] sm:$0xff]
    %v308 = vld [vmem:[%s3 + $0x10] sm:$0xff]
    %v309 = vld [vmem:[%s3 + $0x18] sm:$0xff]
    %v310 = vld [vmem:[%s3 + $0x20] sm:$0xff]
    %v311 = vld [vmem:[%s3 + $0x28] sm:$0xff]
    %v312 = vld [vmem:[%s3 + $0x30] sm:$0xff]
    %v313 = vld [vmem:[%s3 + $0x38] sm:$0xff]
    %v314 = vld [vmem:[#allocation5] sm:$0x1]
    %v316 = vlaneseq
    %v317 = vshrl.u32 %v316, 7
    %v318 = vsub.s32 0, %v317
    %v319 = vrot.slane %v314, %v318
    %v328 = vcombine.low %v298, %v299
    %v329 = vcombine.low %v300, %v301
    %v331 = vunpack.c.l.s4 1983009808
    %v332 = vunpack.c.0.s8 %v331
    %v333 = vlaneseq
    %v334 = vshrl.u32 %v333, 7
    %v335 = vsub.s32 %v332, %v334
    %v336 = vrot.slane %v328, %v335
    %v338 = vunpack.c.l.s4 1983009808
    %v339 = vunpack.c.0.s8 %v338
    %v340 = vlaneseq
    %v341 = vshrl.u32 %v340, 7
    %v342 = vsub.s32 %v339, %v341
    %v343 = vrot.slane %v329, %v342
    %v344 = vcombine.low %v336, %v343
    %v345 = vcombine.low %v302, %v303
    %v346 = vcombine.low %v304, %v305
    %v348 = vunpack.c.l.s4 1983009808
    %v349 = vunpack.c.0.s8 %v348
    %v350 = vlaneseq
    %v351 = vshrl.u32 %v350, 7
    %v352 = vsub.s32 %v349, %v351
    %v353 = vrot.slane %v345, %v352
    %v355 = vunpack.c.l.s4 1983009808
    %v356 = vunpack.c.0.s8 %v355
    %v357 = vlaneseq
    %v358 = vshrl.u32 %v357, 7
    %v359 = vsub.s32 %v356, %v358
    %v360 = vrot.slane %v346, %v359
    %v361 = vcombine.low %v353, %v360
    %v362 = vcombine.low %v319, %v319
    %v364 = vunpack.c.l.s4 1983009808
    %v365 = vunpack.c.0.s8 %v364
    %v366 = vlaneseq
    %v367 = vshrl.u32 %v366, 7
    %v368 = vsub.s32 %v365, %v367
    %v369 = vrot.slane %v362, %v368
    %v370 = vcombine.low %v369, %v369
    %vm372 = vcmask 523264
    %v373 = vsel %vm372, %v344, 0
    %v375 = vsel %vm372, %v361, 0
    %377 = vmatprep.subr.mxu0 0.0
    %378 = vmatpush1.msra.mxu0 0.0
    %379 = vmatprep.subr.mxu0 0.0
    %380 = vmatpush1.msra.mxu0 0.0
    %381 = vmatprep.subr.mxu0 0.0
    %382 = vmatpush1.msra.mxu0 0.0
    %383 = vmatprep.subr.mxu0 0.0
    %384 = vmatpush1.msra.mxu0 0.0
    %385 = vmatprep.subr.mxu0 0.0
    %386 = vmatpush1.msra.mxu0 0.0
    %387 = vmatprep.subr.mxu0 0.0
    %388 = vmatpush1.msra.mxu0 0.0
    %389 = vmatprep.subr.mxu0 0.0
    %390 = vmatpush1.msra.mxu0 0.0
    %391 = vmatprep.subr.mxu0 0.0
    %392 = vmatpush1.msra.mxu0 0.0
    %393 = vmatprep.subr.mxu0 0.0
    %394 = vmatpush1.msra.mxu0 %v313
    %395 = vmatprep.subr.mxu0 0.0
    %396 = vmatpush1.msra.mxu0 %v312
    %397 = vmatprep.subr.mxu0 0.0
    %398 = vmatpush1.msra.mxu0 %v311
    %399 = vmatprep.subr.mxu0 0.0
    %400 = vmatpush1.msra.mxu0 %v310
    %401 = vmatprep.subr.mxu0 0.0
    %402 = vmatpush1.msra.mxu0 %v309
    %403 = vmatprep.subr.mxu0 0.0
    %404 = vmatpush1.msra.mxu0 %v308
    %405 = vmatprep.subr.mxu0 0.0
    %406 = vmatpush1.msra.mxu0 %v307
    %407 = vmatprep.subr.mxu0 0.0
    %408 = vmatpush1.msra.mxu0 %v306
    %409 = vmatprep.subr.mxu0 0.0
    %410 = vmatpush2.msra.mxu0 0.0
    %411 = vmatprep.subr.mxu0 0.0
    %412 = vmatpush2.msra.mxu0 0.0
    %413 = vmatprep.subr.mxu0 0.0
    %414 = vmatpush2.msra.mxu0 0.0
    %415 = vmatprep.subr.mxu0 0.0
    %416 = vmatpush2.msra.mxu0 0.0
    %417 = vmatprep.subr.mxu0 0.0
    %418 = vmatpush2.msra.mxu0 0.0
    %419 = vmatprep.subr.mxu0 0.0
    %420 = vmatpush2.msra.mxu0 0.0
    %421 = vmatprep.subr.mxu0 0.0
    %422 = vmatpush2.msra.mxu0 0.0
    %423 = vmatprep.subr.mxu0 0.0
    %424 = vmatpush2.msra.mxu0 0.0
    %425 = vmatprep.subr.mxu0 0.0
    %426 = vmatpush2.msra.mxu0 0.0
    %427 = vmatprep.subr.mxu0 0.0
    %428 = vmatpush2.msra.mxu0 0.0
    %429 = vmatprep.subr.mxu0 0.0
    %430 = vmatpush2.msra.mxu0 0.0
    %431 = vmatprep.subr.mxu0 0.0
    %432 = vmatpush2.msra.mxu0 0.0
    %433 = vmatprep.subr.mxu0 0.0
    %434 = vmatpush2.msra.mxu0 0.0
    %435 = vmatprep.subr.mxu0 0.0
    %436 = vmatpush2.msra.mxu0 0.0
    %437 = vmatprep.subr.mxu0 0.0
    %438 = vmatpush2.msra.mxu0 0.0
    %439 = vmatprep.subr.mxu0 0.0
    %440 = vmatpush2.msra.mxu0 0.0
    %441 = vmatprep.mubr.f32.mxu0 0.0
    %442 = vmatmul.mubr.f32.gmra.mxu0 %v373
    %v443 = vpop.f32.mrf.mxu0
    %v444 = vadd.f32 %v370, %v443
    %v445 = vpop.f32.mrf.mxu0
    %446 = vmatprep.mubr.f32.mxu0 0.0
    %447 = vmatmul.mubr.f32.gmra.mxu0 %v375
    %v448 = vpop.f32.mrf.mxu0
    %v449 = vadd.f32 %v370, %v448
    %v450 = vpop.f32.mrf.mxu0
    %451 = vdwg.mxu0
    %v454 = vcombine.high %v444, %v444
    %v456 = vunpack.c.l.s4 1983009808
    %v457 = vunpack.c.0.s8 %v456
    %v458 = vlaneseq
    %v459 = vshrl.u32 %v458, 7
    %v460 = vsub.s32 %v457, %v459
    %v461 = vrot.slane %v444, %v460
    %v463 = vunpack.c.l.s4 1983009808
    %v464 = vunpack.c.0.s8 %v463
    %v465 = vlaneseq
    %v466 = vshrl.u32 %v465, 7
    %v467 = vsub.s32 %v464, %v466
    %v468 = vrot.slane %v454, %v467
    %v469 = vcombine.high %v461, %v461
    %v470 = vcombine.high %v468, %v468
    %v471 = vcombine.high %v449, %v449
    %v473 = vunpack.c.l.s4 1983009808
    %v474 = vunpack.c.0.s8 %v473
    %v475 = vlaneseq
    %v476 = vshrl.u32 %v475, 7
    %v477 = vsub.s32 %v474, %v476
    %v478 = vrot.slane %v449, %v477
    %v480 = vunpack.c.l.s4 1983009808
    %v481 = vunpack.c.0.s8 %v480
    %v482 = vlaneseq
    %v483 = vshrl.u32 %v482, 7
    %v484 = vsub.s32 %v481, %v483
    %v485 = vrot.slane %v471, %v484
    %v486 = vcombine.high %v478, %v478
    %v487 = vcombine.high %v485, %v485
    %vm496 = vcmp.gt.f32.partialorder %v461, 0.0
    %vm497 = vcmp.gt.f32.partialorder %v469, 0.0
    %vm498 = vcmp.gt.f32.partialorder %v468, 0.0
    %vm499 = vcmp.gt.f32.partialorder %v470, 0.0
    %vm500 = vcmp.gt.f32.partialorder %v478, 0.0
    %vm501 = vcmp.gt.f32.partialorder %v486, 0.0
    %vm502 = vcmp.gt.f32.partialorder %v485, 0.0
    %vm503 = vcmp.gt.f32.partialorder %v487, 0.0
    %v504 = vmul.f32 %v461, 0.01
    %v505 = vmul.f32 %v469, 0.01
    %v506 = vmul.f32 %v468, 0.01
    %v507 = vmul.f32 %v470, 0.01
    %v508 = vmul.f32 %v478, 0.01
    %v509 = vmul.f32 %v486, 0.01
    %v510 = vmul.f32 %v485, 0.01
    %v511 = vmul.f32 %v487, 0.01
    %v512 = vsel %vm496, %v461, %v504
    %v513 = vsel %vm497, %v469, %v505
    %v514 = vsel %vm498, %v468, %v506
    %v515 = vsel %vm499, %v470, %v507
    %v516 = vsel %vm500, %v478, %v508
    %v517 = vsel %vm501, %v486, %v509
    %v518 = vsel %vm502, %v485, %v510
    %v519 = vsel %vm503, %v487, %v511
    %vm520 = vcmask 1024
    %521 = vst.msk [vmem:[%s20] sm:$0x3] %vm520, %v512
    %522 = vst.msk [vmem:[%s20 + $0x2] sm:$0x3] %vm520, %v513
    %523 = vst.msk [vmem:[%s20 + $0x4] sm:$0x3] %vm520, %v514
    %524 = vst.msk [vmem:[%s20 + $0x6] sm:$0x3] %vm520, %v515
    %525 = vst.msk [vmem:[%s20 + $0x8] sm:$0x3] %vm520, %v516
    %526 = vst.msk [vmem:[%s20 + $0xa] sm:$0x3] %vm520, %v517
    %527 = vst.msk [vmem:[%s20 + $0xc] sm:$0x3] %vm520, %v518
    %528 = vst.msk [vmem:[%s20 + $0xe] sm:$0x3] %vm520, %v519
    %vm529 = vcmp.gt.f32.partialorder %v97, 0.0
    %vm530 = vcmp.gt.f32.partialorder %v98, 0.0
    %vm531 = vcmp.gt.f32.partialorder %v99, 0.0
    %vm532 = vcmp.gt.f32.partialorder %v100, 0.0
    %vm533 = vcmp.gt.f32.partialorder %v101, 0.0
    %vm534 = vcmp.gt.f32.partialorder %v102, 0.0
    %vm535 = vcmp.gt.f32.partialorder %v103, 0.0
    %vm536 = vcmp.gt.f32.partialorder %v104, 0.0
    %v537 = vmul.f32 %v97, 0.01
    %v538 = vmul.f32 %v98, 0.01
    %v539 = vmul.f32 %v99, 0.01
    %v540 = vmul.f32 %v100, 0.01
    %v541 = vmul.f32 %v101, 0.01
    %v542 = vmul.f32 %v102, 0.01
    %v543 = vmul.f32 %v103, 0.01
    %v544 = vmul.f32 %v104, 0.01
    %v545 = vsel %vm529, %v97, %v537
    %v546 = vsel %vm530, %v98, %v538
    %v547 = vsel %vm531, %v99, %v539
    %v548 = vsel %vm532, %v100, %v540
    %v549 = vsel %vm533, %v101, %v541
    %v550 = vsel %vm534, %v102, %v542
    %v551 = vsel %vm535, %v103, %v543
    %v552 = vsel %vm536, %v104, %v544
    %v553 = vld [vmem:[%s5] sm:$0xff]
    %v554 = vld [vmem:[%s5 + $0x8] sm:$0xff]
    %v555 = vld [vmem:[%s5 + $0x10] sm:$0xff]
    %v556 = vld [vmem:[%s5 + $0x18] sm:$0xff]
    %v557 = vld [vmem:[%s6] sm:$0x1]
    %v559 = vlaneseq
    %v560 = vshrl.u32 %v559, 7
    %v561 = vsub.s32 0, %v560
    %v562 = vrot.slane %v557, %v561
    %v571 = vcombine.low %v545, %v546
    %v572 = vcombine.low %v547, %v548
    %v574 = vunpack.c.l.s4 1983009808
    %v575 = vunpack.c.0.s8 %v574
    %v576 = vlaneseq
    %v577 = vshrl.u32 %v576, 7
    %v578 = vsub.s32 %v575, %v577
    %v579 = vrot.slane %v571, %v578
    %v581 = vunpack.c.l.s4 1983009808
    %v582 = vunpack.c.0.s8 %v581
    %v583 = vlaneseq
    %v584 = vshrl.u32 %v583, 7
    %v585 = vsub.s32 %v582, %v584
    %v586 = vrot.slane %v572, %v585
    %v587 = vcombine.low %v579, %v586
    %v588 = vcombine.low %v549, %v550
    %v589 = vcombine.low %v551, %v552
    %v591 = vunpack.c.l.s4 1983009808
    %v592 = vunpack.c.0.s8 %v591
    %v593 = vlaneseq
    %v594 = vshrl.u32 %v593, 7
    %v595 = vsub.s32 %v592, %v594
    %v596 = vrot.slane %v588, %v595
    %v598 = vunpack.c.l.s4 1983009808
    %v599 = vunpack.c.0.s8 %v598
    %v600 = vlaneseq
    %v601 = vshrl.u32 %v600, 7
    %v602 = vsub.s32 %v599, %v601
    %v603 = vrot.slane %v589, %v602
    %v604 = vcombine.low %v596, %v603
    %v605 = vcombine.low %v562, %v562
    %v607 = vunpack.c.l.s4 1983009808
    %v608 = vunpack.c.0.s8 %v607
    %v609 = vlaneseq
    %v610 = vshrl.u32 %v609, 7
    %v611 = vsub.s32 %v608, %v610
    %v612 = vrot.slane %v605, %v611
    %v613 = vcombine.low %v612, %v612
    %v615 = vsel %vm174, %v587, 0
    %v617 = vsel %vm174, %v604, 0
    %619 = vmatprep.subr.mxu0 0.0
    %620 = vmatpush1.msra.mxu0 0.0
    %621 = vmatprep.subr.mxu0 0.0
    %622 = vmatpush1.msra.mxu0 0.0
    %623 = vmatprep.subr.mxu0 0.0
    %624 = vmatpush1.msra.mxu0 0.0
    %625 = vmatprep.subr.mxu0 0.0
    %626 = vmatpush1.msra.mxu0 0.0
    %627 = vmatprep.subr.mxu0 0.0
    %628 = vmatpush1.msra.mxu0 0.0
    %629 = vmatprep.subr.mxu0 0.0
    %630 = vmatpush1.msra.mxu0 0.0
    %631 = vmatprep.subr.mxu0 0.0
    %632 = vmatpush1.msra.mxu0 0.0
    %633 = vmatprep.subr.mxu0 0.0
    %634 = vmatpush1.msra.mxu0 0.0
    %635 = vmatprep.subr.mxu0 0.0
    %636 = vmatpush1.msra.mxu0 0.0
    %637 = vmatprep.subr.mxu0 0.0
    %638 = vmatpush1.msra.mxu0 0.0
    %639 = vmatprep.subr.mxu0 0.0
    %640 = vmatpush1.msra.mxu0 0.0
    %641 = vmatprep.subr.mxu0 0.0
    %642 = vmatpush1.msra.mxu0 0.0
    %643 = vmatprep.subr.mxu0 0.0
    %644 = vmatpush1.msra.mxu0 %v556
    %645 = vmatprep.subr.mxu0 0.0
    %646 = vmatpush1.msra.mxu0 %v555
    %647 = vmatprep.subr.mxu0 0.0
    %648 = vmatpush1.msra.mxu0 %v554
    %649 = vmatprep.subr.mxu0 0.0
    %650 = vmatpush1.msra.mxu0 %v553
    %651 = vmatprep.subr.mxu0 0.0
    %652 = vmatpush2.msra.mxu0 0.0
    %653 = vmatprep.subr.mxu0 0.0
    %654 = vmatpush2.msra.mxu0 0.0
    %655 = vmatprep.subr.mxu0 0.0
    %656 = vmatpush2.msra.mxu0 0.0
    %657 = vmatprep.subr.mxu0 0.0
    %658 = vmatpush2.msra.mxu0 0.0
    %659 = vmatprep.subr.mxu0 0.0
    %660 = vmatpush2.msra.mxu0 0.0
    %661 = vmatprep.subr.mxu0 0.0
    %662 = vmatpush2.msra.mxu0 0.0
    %663 = vmatprep.subr.mxu0 0.0
    %664 = vmatpush2.msra.mxu0 0.0
    %665 = vmatprep.subr.mxu0 0.0
    %666 = vmatpush2.msra.mxu0 0.0
    %667 = vmatprep.subr.mxu0 0.0
    %668 = vmatpush2.msra.mxu0 0.0
    %669 = vmatprep.subr.mxu0 0.0
    %670 = vmatpush2.msra.mxu0 0.0
    %671 = vmatprep.subr.mxu0 0.0
    %672 = vmatpush2.msra.mxu0 0.0
    %673 = vmatprep.subr.mxu0 0.0
    %674 = vmatpush2.msra.mxu0 0.0
    %675 = vmatprep.subr.mxu0 0.0
    %676 = vmatpush2.msra.mxu0 0.0
    %677 = vmatprep.subr.mxu0 0.0
    %678 = vmatpush2.msra.mxu0 0.0
    %679 = vmatprep.subr.mxu0 0.0
    %680 = vmatpush2.msra.mxu0 0.0
    %681 = vmatprep.subr.mxu0 0.0
    %682 = vmatpush2.msra.mxu0 0.0
    %683 = vmatprep.mubr.f32.mxu0 0.0
    %684 = vmatmul.mubr.f32.gmra.mxu0 %v615
    %v685 = vpop.f32.mrf.mxu0
    %v686 = vadd.f32 %v613, %v685
    %v687 = vpop.f32.mrf.mxu0
    %688 = vmatprep.mubr.f32.mxu0 0.0
    %689 = vmatmul.mubr.f32.gmra.mxu0 %v617
    %v690 = vpop.f32.mrf.mxu0
    %v691 = vadd.f32 %v613, %v690
    %v692 = vpop.f32.mrf.mxu0
    %693 = vdwg.mxu0
    %v696 = vcombine.high %v686, %v686
    %v698 = vunpack.c.l.s4 1983009808
    %v699 = vunpack.c.0.s8 %v698
    %v700 = vlaneseq
    %v701 = vshrl.u32 %v700, 7
    %v702 = vsub.s32 %v699, %v701
    %v703 = vrot.slane %v686, %v702
    %v705 = vunpack.c.l.s4 1983009808
    %v706 = vunpack.c.0.s8 %v705
    %v707 = vlaneseq
    %v708 = vshrl.u32 %v707, 7
    %v709 = vsub.s32 %v706, %v708
    %v710 = vrot.slane %v696, %v709
    %v711 = vcombine.high %v703, %v703
    %v712 = vcombine.high %v710, %v710
    %v713 = vcombine.high %v691, %v691
    %v715 = vunpack.c.l.s4 1983009808
    %v716 = vunpack.c.0.s8 %v715
    %v717 = vlaneseq
    %v718 = vshrl.u32 %v717, 7
    %v719 = vsub.s32 %v716, %v718
    %v720 = vrot.slane %v691, %v719
    %v722 = vunpack.c.l.s4 1983009808
    %v723 = vunpack.c.0.s8 %v722
    %v724 = vlaneseq
    %v725 = vshrl.u32 %v724, 7
    %v726 = vsub.s32 %v723, %v725
    %v727 = vrot.slane %v713, %v726
    %v728 = vcombine.high %v720, %v720
    %v729 = vcombine.high %v727, %v727
    %vm738 = vcmp.gt.f32.partialorder %v703, 0.0
    %vm739 = vcmp.gt.f32.partialorder %v711, 0.0
    %vm740 = vcmp.gt.f32.partialorder %v710, 0.0
    %vm741 = vcmp.gt.f32.partialorder %v712, 0.0
    %vm742 = vcmp.gt.f32.partialorder %v720, 0.0
    %vm743 = vcmp.gt.f32.partialorder %v728, 0.0
    %vm744 = vcmp.gt.f32.partialorder %v727, 0.0
    %vm745 = vcmp.gt.f32.partialorder %v729, 0.0
    %v746 = vmul.f32 %v703, 0.01
    %v747 = vmul.f32 %v711, 0.01
    %v748 = vmul.f32 %v710, 0.01
    %v749 = vmul.f32 %v712, 0.01
    %v750 = vmul.f32 %v720, 0.01
    %v751 = vmul.f32 %v728, 0.01
    %v752 = vmul.f32 %v727, 0.01
    %v753 = vmul.f32 %v729, 0.01
    %v754 = vsel %vm738, %v703, %v746
    %v755 = vsel %vm739, %v711, %v747
    %v756 = vsel %vm740, %v710, %v748
    %v757 = vsel %vm741, %v712, %v749
    %v758 = vsel %vm742, %v720, %v750
    %v759 = vsel %vm743, %v728, %v751
    %v760 = vsel %vm744, %v727, %v752
    %v761 = vsel %vm745, %v729, %v753
    %v762 = vld [vmem:[%s7] sm:$0xff]
    %v763 = vld [vmem:[%s7 + $0x8] sm:$0xff]
    %v764 = vld [vmem:[%s7 + $0x10] sm:$0xff]
    %v765 = vld [vmem:[%s7 + $0x18] sm:$0xff]
    %v766 = vld [vmem:[%s7 + $0x20] sm:$0xff]
    %v767 = vld [vmem:[%s7 + $0x28] sm:$0xff]
    %v768 = vld [vmem:[%s7 + $0x30] sm:$0xff]
    %v769 = vld [vmem:[%s7 + $0x38] sm:$0xff]
    %v770 = vld [vmem:[%s8] sm:$0x3]
    %v772 = vlaneseq
    %v773 = vshrl.u32 %v772, 7
    %v774 = vsub.s32 0, %v773
    %v775 = vrot.slane %v770, %v774
    %v776 = vlaneseq
    %v777 = vshrl.u32 %v776, 7
    %v778 = vsub.s32 1, %v777
    %v779 = vrot.slane %v770, %v778
    %v780 = vcombine.low %v775, %v779
    %v782 = vunpack.c.l.s4 1983009808
    %v783 = vunpack.c.0.s8 %v782
    %v784 = vlaneseq
    %v785 = vshrl.u32 %v784, 7
    %v786 = vsub.s32 %v783, %v785
    %v787 = vrot.slane %v780, %v786
    %v796 = vcombine.low %v754, %v755
    %v797 = vcombine.low %v756, %v757
    %v799 = vunpack.c.l.s4 1983009808
    %v800 = vunpack.c.0.s8 %v799
    %v801 = vlaneseq
    %v802 = vshrl.u32 %v801, 7
    %v803 = vsub.s32 %v800, %v802
    %v804 = vrot.slane %v796, %v803
    %v806 = vunpack.c.l.s4 1983009808
    %v807 = vunpack.c.0.s8 %v806
    %v808 = vlaneseq
    %v809 = vshrl.u32 %v808, 7
    %v810 = vsub.s32 %v807, %v809
    %v811 = vrot.slane %v797, %v810
    %v812 = vcombine.low %v804, %v811
    %v813 = vcombine.low %v758, %v759
    %v814 = vcombine.low %v760, %v761
    %v816 = vunpack.c.l.s4 1983009808
    %v817 = vunpack.c.0.s8 %v816
    %v818 = vlaneseq
    %v819 = vshrl.u32 %v818, 7
    %v820 = vsub.s32 %v817, %v819
    %v821 = vrot.slane %v813, %v820
    %v823 = vunpack.c.l.s4 1983009808
    %v824 = vunpack.c.0.s8 %v823
    %v825 = vlaneseq
    %v826 = vshrl.u32 %v825, 7
    %v827 = vsub.s32 %v824, %v826
    %v828 = vrot.slane %v814, %v827
    %v829 = vcombine.low %v821, %v828
    %v830 = vcombine.low %v787, %v787
    %v832 = vunpack.c.l.s4 1983009808
    %v833 = vunpack.c.0.s8 %v832
    %v834 = vlaneseq
    %v835 = vshrl.u32 %v834, 7
    %v836 = vsub.s32 %v833, %v835
    %v837 = vrot.slane %v830, %v836
    %v838 = vcombine.low %v837, %v837
    %v839 = vcombine.high %v837, %v837
    %v842 = vsel %vm174, %v812, 0
    %v844 = vsel %vm174, %v829, 0
    %846 = vmatprep.subr.mxu0 0.0
    %847 = vmatpush1.msra.mxu0 0.0
    %848 = vmatprep.subr.mxu0 0.0
    %849 = vmatpush1.msra.mxu0 0.0
    %850 = vmatprep.subr.mxu0 0.0
    %851 = vmatpush1.msra.mxu0 0.0
    %852 = vmatprep.subr.mxu0 0.0
    %853 = vmatpush1.msra.mxu0 0.0
    %854 = vmatprep.subr.mxu0 0.0
    %855 = vmatpush1.msra.mxu0 0.0
    %856 = vmatprep.subr.mxu0 0.0
    %857 = vmatpush1.msra.mxu0 0.0
    %858 = vmatprep.subr.mxu0 0.0
    %859 = vmatpush1.msra.mxu0 0.0
    %860 = vmatprep.subr.mxu0 0.0
    %861 = vmatpush1.msra.mxu0 0.0
    %862 = vmatprep.subr.mxu0 0.0
    %863 = vmatpush1.msra.mxu0 0.0
    %864 = vmatprep.subr.mxu0 0.0
    %865 = vmatpush1.msra.mxu0 0.0
    %866 = vmatprep.subr.mxu0 0.0
    %867 = vmatpush1.msra.mxu0 0.0
    %868 = vmatprep.subr.mxu0 0.0
    %869 = vmatpush1.msra.mxu0 0.0
    %870 = vmatprep.subr.mxu0 %v769
    %871 = vmatpush1.msra.mxu0 %v768
    %872 = vmatprep.subr.mxu0 %v767
    %873 = vmatpush1.msra.mxu0 %v766
    %874 = vmatprep.subr.mxu0 %v765
    %875 = vmatpush1.msra.mxu0 %v764
    %876 = vmatprep.subr.mxu0 %v763
    %877 = vmatpush1.msra.mxu0 %v762
    %878 = vmatprep.subr.mxu0 0.0
    %879 = vmatpush2.msra.mxu0 0.0
    %880 = vmatprep.subr.mxu0 0.0
    %881 = vmatpush2.msra.mxu0 0.0
    %882 = vmatprep.subr.mxu0 0.0
    %883 = vmatpush2.msra.mxu0 0.0
    %884 = vmatprep.subr.mxu0 0.0
    %885 = vmatpush2.msra.mxu0 0.0
    %886 = vmatprep.subr.mxu0 0.0
    %887 = vmatpush2.msra.mxu0 0.0
    %888 = vmatprep.subr.mxu0 0.0
    %889 = vmatpush2.msra.mxu0 0.0
    %890 = vmatprep.subr.mxu0 0.0
    %891 = vmatpush2.msra.mxu0 0.0
    %892 = vmatprep.subr.mxu0 0.0
    %893 = vmatpush2.msra.mxu0 0.0
    %894 = vmatprep.subr.mxu0 0.0
    %895 = vmatpush2.msra.mxu0 0.0
    %896 = vmatprep.subr.mxu0 0.0
    %897 = vmatpush2.msra.mxu0 0.0
    %898 = vmatprep.subr.mxu0 0.0
    %899 = vmatpush2.msra.mxu0 0.0
    %900 = vmatprep.subr.mxu0 0.0
    %901 = vmatpush2.msra.mxu0 0.0
    %902 = vmatprep.subr.mxu0 0.0
    %903 = vmatpush2.msra.mxu0 0.0
    %904 = vmatprep.subr.mxu0 0.0
    %905 = vmatpush2.msra.mxu0 0.0
    %906 = vmatprep.subr.mxu0 0.0
    %907 = vmatpush2.msra.mxu0 0.0
    %908 = vmatprep.subr.mxu0 0.0
    %909 = vmatpush2.msra.mxu0 0.0
    %910 = vmatprep.mubr.f32.mxu0 0.0
    %911 = vmatmul.mubr.f32.gmra.mxu0 %v842
    %v912 = vpop.f32.mrf.mxu0
    %v913 = vadd.f32 %v838, %v912
    %v914 = vpop.f32.mrf.mxu0
    %v915 = vadd.f32 %v839, %v914
    %916 = vmatprep.mubr.f32.mxu0 0.0
    %917 = vmatmul.mubr.f32.gmra.mxu0 %v844
    %v918 = vpop.f32.mrf.mxu0
    %v919 = vadd.f32 %v838, %v918
    %v920 = vpop.f32.mrf.mxu0
    %v921 = vadd.f32 %v839, %v920
    %922 = vdwg.mxu0
    %v927 = vcombine.low %v913, %v915
    %v928 = vcombine.high %v913, %v915
    %v930 = vunpack.c.l.s4 1983009808
    %v931 = vunpack.c.0.s8 %v930
    %v932 = vlaneseq
    %v933 = vshrl.u32 %v932, 7
    %v934 = vsub.s32 %v931, %v933
    %v935 = vrot.slane %v927, %v934
    %v937 = vunpack.c.l.s4 1983009808
    %v938 = vunpack.c.0.s8 %v937
    %v939 = vlaneseq
    %v940 = vshrl.u32 %v939, 7
    %v941 = vsub.s32 %v938, %v940
    %v942 = vrot.slane %v928, %v941
    %v943 = vcombine.high %v935, %v935
    %v944 = vcombine.high %v942, %v942
    %v945 = vcombine.low %v919, %v921
    %v946 = vcombine.high %v919, %v921
    %v948 = vunpack.c.l.s4 1983009808
    %v949 = vunpack.c.0.s8 %v948
    %v950 = vlaneseq
    %v951 = vshrl.u32 %v950, 7
    %v952 = vsub.s32 %v949, %v951
    %v953 = vrot.slane %v945, %v952
    %v955 = vunpack.c.l.s4 1983009808
    %v956 = vunpack.c.0.s8 %v955
    %v957 = vlaneseq
    %v958 = vshrl.u32 %v957, 7
    %v959 = vsub.s32 %v956, %v958
    %v960 = vrot.slane %v946, %v959
    %v961 = vcombine.high %v953, %v953
    %v962 = vcombine.high %v960, %v960
    %vm971 = vcmask 1041408
    %vm972 = vcmask 519170
    %vm973 = vmor %vm972, %vm971
    %974 = vst.msk [vmem:[#allocation2] sm:$0xf] %vm973, %v935
    %975 = vst.msk [vmem:[#allocation2 + $0x4] sm:$0xf] %vm973, %v943
    %976 = vst.msk [vmem:[#allocation2 + $0x8] sm:$0xf] %vm973, %v942
    %977 = vst.msk [vmem:[#allocation2 + $0xc] sm:$0xf] %vm973, %v944
    %978 = vst.msk [vmem:[#allocation2 + $0x10] sm:$0xf] %vm973, %v953
    %979 = vst.msk [vmem:[#allocation2 + $0x14] sm:$0xf] %vm973, %v961
    %980 = vst.msk [vmem:[#allocation2 + $0x18] sm:$0xf] %vm973, %v960
    %981 = vst.msk [vmem:[#allocation2 + $0x1c] sm:$0xf] %vm973, %v962
    %v982 = vld [vmem:[%s9] sm:$0xff]
    %v983 = vld [vmem:[%s9 + $0x8] sm:$0xff]
    %v984 = vld [vmem:[%s9 + $0x10] sm:$0xff]
    %v985 = vld [vmem:[%s9 + $0x18] sm:$0xff]
    %v986 = vld [vmem:[%s9 + $0x20] sm:$0xff]
    %v987 = vld [vmem:[%s9 + $0x28] sm:$0xff]
    %v988 = vld [vmem:[%s9 + $0x30] sm:$0xff]
    %v989 = vld [vmem:[%s9 + $0x38] sm:$0xff]
    %v990 = vld [vmem:[%s9 + $0x40] sm:$0xff]
    %v991 = vld [vmem:[%s9 + $0x48] sm:$0xff]
    %v992 = vld [vmem:[%s9 + $0x50] sm:$0xff]
    %v993 = vld [vmem:[%s9 + $0x58] sm:$0xff]
    %v994 = vld [vmem:[%s9 + $0x60] sm:$0xff]
    %v995 = vld [vmem:[%s9 + $0x68] sm:$0xff]
    %v996 = vld [vmem:[%s9 + $0x70] sm:$0xff]
    %v997 = vld [vmem:[%s9 + $0x78] sm:$0xff]
    %v998 = vld [vmem:[%s10] sm:$0x3]
    %v999 = vlaneseq
    %v1000 = vand.u32 %v999, 127
    %v1001 = vadd.s32 %v1000, 128
    %vm1002 = vcmp.lt.s32.totalorder %v1000, 0
    %v1003 = vsub.s32 0, %v1000
    %v1004 = vsel %vm1002, %v1003, %v1000
    %v1005 = vshrl.u32 %v1004, 6
    %v1006 = vand.u32 %v1004, 63
    %v1007 = vsub.s32 0, %v1006
    %v1008 = vsel %vm1002, %v1007, %v1006
    %vm1009 = vcmp.lt.s32.totalorder %v1001, 0
    %v1010 = vsub.s32 0, %v1001
    %v1011 = vsel %vm1009, %v1010, %v1001
    %v1012 = vshrl.u32 %v1011, 6
    %v1013 = vand.u32 %v1011, 63
    %v1014 = vsub.s32 0, %v1013
    %v1015 = vsel %vm1009, %v1014, %v1013
    %vm1016 = vcmp.ne.s32.totalorder %v1008, 0
    %vm1017 = vcmp.ne.s32.totalorder %v1015, 0
    %vm1018 = vcmp.lt.s32.totalorder %v1008, 0
    %vm1019 = vcmp.lt.s32.totalorder %v1015, 0
    %vm1020 = vmand %vm1018, %vm1016
    %vm1021 = vmand %vm1019, %vm1017
    %v1022 = vadd.s32 %v1008, 64
    %v1023 = vadd.s32 %v1015, 64
    %v1024 = vsel %vm1020, %v1022, %v1008
    %v1025 = vsel %vm1021, %v1023, %v1015
    %vm1026 = vcmp.lt.s32.totalorder %v1024, 32
    %vm1027 = vcmp.lt.s32.totalorder %v1025, 32
    %v1028 = vld [vmem:[#allocation2] sm:$0xf]
    %s1029 = scalar_lea.vmem [#allocation2], 28
    %v1030 = vld [vmem:[%s1029] sm:$0xf]
    %v1033 = vunpack.c.l.s4 1983009808
    %v1034 = vunpack.c.0.s8 %v1033
    %v1035 = vlaneseq
    %v1036 = vshrl.u32 %v1035, 7
    %v1037 = vsub.s32 %v1034, %v1036
    %v1038 = vrot.slane %v1028, %v1037
    %v1039 = vcombine.high %v1038, %v1038
    %v1044 = vunpack.c.l.s4 1983009808
    %v1045 = vunpack.c.0.s8 %v1044
    %v1046 = vlaneseq
    %v1047 = vshrl.u32 %v1046, 7
    %v1048 = vsub.s32 %v1045, %v1047
    %v1049 = vrot.slane %v1030, %v1048
    %v1050 = vcombine.high %v1049, %v1049
    %v1053 = vsel %vm1026, %v1038, %v1049
    %v1054 = vsel %vm1027, %v1039, %v1050
    %v1056 = vlaneseq
    %v1057 = vshrl.u32 %v1056, 7
    %v1058 = vsub.s32 0, %v1057
    %v1059 = vrot.slane %v998, %v1058
    %v1060 = vlaneseq
    %v1061 = vshrl.u32 %v1060, 7
    %v1062 = vsub.s32 1, %v1061
    %v1063 = vrot.slane %v998, %v1062
    %v1066 = vsel %vm372, 0.0, 0
    %1068 = vmatprep.subr.mxu0 0.0
    %1069 = vmatpush1.msra.mxu0 0.0
    %1070 = vmatprep.subr.mxu0 0.0
    %1071 = vmatpush1.msra.mxu0 0.0
    %1072 = vmatprep.subr.mxu0 0.0
    %1073 = vmatpush1.msra.mxu0 0.0
    %1074 = vmatprep.subr.mxu0 0.0
    %1075 = vmatpush1.msra.mxu0 0.0
    %1076 = vmatprep.subr.mxu0 0.0
    %1077 = vmatpush1.msra.mxu0 0.0
    %1078 = vmatprep.subr.mxu0 0.0
    %1079 = vmatpush1.msra.mxu0 0.0
    %1080 = vmatprep.subr.mxu0 0.0
    %1081 = vmatpush1.msra.mxu0 0.0
    %1082 = vmatprep.subr.mxu0 0.0
    %1083 = vmatpush1.msra.mxu0 0.0
    %1084 = vmatprep.subr.mxu0 %v997
    %1085 = vmatpush1.msra.mxu0 %v996
    %1086 = vmatprep.subr.mxu0 %v995
    %1087 = vmatpush1.msra.mxu0 %v994
    %1088 = vmatprep.subr.mxu0 %v993
    %1089 = vmatpush1.msra.mxu0 %v992
    %1090 = vmatprep.subr.mxu0 %v991
    %1091 = vmatpush1.msra.mxu0 %v990
    %1092 = vmatprep.subr.mxu0 %v989
    %1093 = vmatpush1.msra.mxu0 %v988
    %1094 = vmatprep.subr.mxu0 %v987
    %1095 = vmatpush1.msra.mxu0 %v986
    %1096 = vmatprep.subr.mxu0 %v985
    %1097 = vmatpush1.msra.mxu0 %v984
    %1098 = vmatprep.subr.mxu0 %v983
    %1099 = vmatpush1.msra.mxu0 %v982
    %1100 = vmatprep.subr.mxu0 0.0
    %1101 = vmatpush2.msra.mxu0 0.0
    %1102 = vmatprep.subr.mxu0 0.0
    %1103 = vmatpush2.msra.mxu0 0.0
    %1104 = vmatprep.subr.mxu0 0.0
    %1105 = vmatpush2.msra.mxu0 0.0
    %1106 = vmatprep.subr.mxu0 0.0
    %1107 = vmatpush2.msra.mxu0 0.0
    %1108 = vmatprep.subr.mxu0 0.0
    %1109 = vmatpush2.msra.mxu0 0.0
    %1110 = vmatprep.subr.mxu0 0.0
    %1111 = vmatpush2.msra.mxu0 0.0
    %1112 = vmatprep.subr.mxu0 0.0
    %1113 = vmatpush2.msra.mxu0 0.0
    %1114 = vmatprep.subr.mxu0 0.0
    %1115 = vmatpush2.msra.mxu0 0.0
    %1116 = vmatprep.subr.mxu0 0.0
    %1117 = vmatpush2.msra.mxu0 0.0
    %1118 = vmatprep.subr.mxu0 0.0
    %1119 = vmatpush2.msra.mxu0 0.0
    %1120 = vmatprep.subr.mxu0 0.0
    %1121 = vmatpush2.msra.mxu0 0.0
    %1122 = vmatprep.subr.mxu0 0.0
    %1123 = vmatpush2.msra.mxu0 0.0
    %1124 = vmatprep.subr.mxu0 0.0
    %1125 = vmatpush2.msra.mxu0 0.0
    %1126 = vmatprep.subr.mxu0 0.0
    %1127 = vmatpush2.msra.mxu0 0.0
    %1128 = vmatprep.subr.mxu0 0.0
    %1129 = vmatpush2.msra.mxu0 0.0
    %1130 = vmatprep.subr.mxu0 0.0
    %1131 = vmatpush2.msra.mxu0 0.0
    %1132 = vmatprep.mubr.f32.mxu0 0.0
    %1133 = vmatmul.mubr.f32.gmra.mxu0 %v1066
    %v1134 = vpop.f32.mrf.mxu0
    %v1135 = vadd.f32 %v1059, %v1134
    %v1136 = vpop.f32.mrf.mxu0
    %v1137 = vadd.f32 %v1063, %v1136
    %1138 = vdwg.mxu0
    %v1139 = vadd.f32 %v1053, %v1135
    %v1140 = vxor.u32 %v1139, 2147483648
    %v1141 = vmul.f32 %v1140, 1.442695
    %v1142 = vpow.pop %v1141
    %v1143 = vadd.f32 %v1142, 1.0
    %v1144 = vrcp.pop %v1143
    %v1145 = vmul.f32 1.0, %v1144
    %v1146 = vmul.f32 %v1145, %v1137
    %v1147 = vadd.f32 %v1054, %v1146
    %v1148 = vtanh.pop %v1147
    %v1149 = vsub.f32 1.0, %v1145
    %1151 = vrot.lane.b32.xlu0 %v1148, 64
    %v1152 = vpop.permute.xlu0 %1151
    %v1154 = vmul.f32 %v1149, %v1152
    %v1155 = vmul.f32 %v1145, 0.0
    %v1156 = vadd.f32 %v1154, %v1155
    %1158 = vrot.lane.b32.xlu0 %v1156, 64
    %v1159 = vpop.permute.xlu0 %1158
    %vm1161 = vcmask 254976
    %1162 = vst.msk [vmem:[#allocation3] sm:$0x3] %vm1161, %v1159
    %1163 = vrot.lane.b32.xlu0 %v1156, 32
    %v1164 = vpop.permute.xlu0 %1163
    %s1166 = scalar_lea.vmem [#allocation4], 14
    %1167 = vst.msk [vmem:[%s1166] sm:$0x3] %vm1161, %v1164
    %s1168 = scalar_lea.vmem [#allocation2], 4
    %v1169 = vld [vmem:[%s1168] sm:$0xf]
    %s1170 = scalar_lea.vmem [#allocation2], 24
    %v1171 = vld [vmem:[%s1170] sm:$0xf]
    %v1174 = vunpack.c.l.s4 1983009808
    %v1175 = vunpack.c.0.s8 %v1174
    %v1176 = vlaneseq
    %v1177 = vshrl.u32 %v1176, 7
    %v1178 = vsub.s32 %v1175, %v1177
    %v1179 = vrot.slane %v1169, %v1178
    %v1180 = vcombine.high %v1179, %v1179
    %v1185 = vunpack.c.l.s4 1983009808
    %v1186 = vunpack.c.0.s8 %v1185
    %v1187 = vlaneseq
    %v1188 = vshrl.u32 %v1187, 7
    %v1189 = vsub.s32 %v1186, %v1188
    %v1190 = vrot.slane %v1171, %v1189
    %v1191 = vcombine.high %v1190, %v1190
    %v1194 = vsel %vm1026, %v1179, %v1190
    %v1195 = vsel %vm1027, %v1180, %v1191
    %v1196 = vsel %vm372, %v1159, 0
    %1198 = vmatprep.subr.mxu0 0.0
    %1199 = vmatpush1.msra.mxu0 0.0
    %1200 = vmatprep.subr.mxu0 0.0
    %1201 = vmatpush1.msra.mxu0 0.0
    %1202 = vmatprep.subr.mxu0 0.0
    %1203 = vmatpush1.msra.mxu0 0.0
    %1204 = vmatprep.subr.mxu0 0.0
    %1205 = vmatpush1.msra.mxu0 0.0
    %1206 = vmatprep.subr.mxu0 0.0
    %1207 = vmatpush1.msra.mxu0 0.0
    %1208 = vmatprep.subr.mxu0 0.0
    %1209 = vmatpush1.msra.mxu0 0.0
    %1210 = vmatprep.subr.mxu0 0.0
    %1211 = vmatpush1.msra.mxu0 0.0
    %1212 = vmatprep.subr.mxu0 0.0
    %1213 = vmatpush1.msra.mxu0 0.0
    %1214 = vmatprep.subr.mxu0 %v997
    %1215 = vmatpush1.msra.mxu0 %v996
    %1216 = vmatprep.subr.mxu0 %v995
    %1217 = vmatpush1.msra.mxu0 %v994
    %1218 = vmatprep.subr.mxu0 %v993
    %1219 = vmatpush1.msra.mxu0 %v992
    %1220 = vmatprep.subr.mxu0 %v991
    %1221 = vmatpush1.msra.mxu0 %v990
    %1222 = vmatprep.subr.mxu0 %v989
    %1223 = vmatpush1.msra.mxu0 %v988
    %1224 = vmatprep.subr.mxu0 %v987
    %1225 = vmatpush1.msra.mxu0 %v986
    %1226 = vmatprep.subr.mxu0 %v985
    %1227 = vmatpush1.msra.mxu0 %v984
    %1228 = vmatprep.subr.mxu0 %v983
    %1229 = vmatpush1.msra.mxu0 %v982
    %1230 = vmatprep.subr.mxu0 0.0
    %1231 = vmatpush2.msra.mxu0 0.0
    %1232 = vmatprep.subr.mxu0 0.0
    %1233 = vmatpush2.msra.mxu0 0.0
    %1234 = vmatprep.subr.mxu0 0.0
    %1235 = vmatpush2.msra.mxu0 0.0
    %1236 = vmatprep.subr.mxu0 0.0
    %1237 = vmatpush2.msra.mxu0 0.0
    %1238 = vmatprep.subr.mxu0 0.0
    %1239 = vmatpush2.msra.mxu0 0.0
    %1240 = vmatprep.subr.mxu0 0.0
    %1241 = vmatpush2.msra.mxu0 0.0
    %1242 = vmatprep.subr.mxu0 0.0
    %1243 = vmatpush2.msra.mxu0 0.0
    %1244 = vmatprep.subr.mxu0 0.0
    %1245 = vmatpush2.msra.mxu0 0.0
    %1246 = vmatprep.subr.mxu0 0.0
    %1247 = vmatpush2.msra.mxu0 0.0
    %1248 = vmatprep.subr.mxu0 0.0
    %1249 = vmatpush2.msra.mxu0 0.0
    %1250 = vmatprep.subr.mxu0 0.0
    %1251 = vmatpush2.msra.mxu0 0.0
    %1252 = vmatprep.subr.mxu0 0.0
    %1253 = vmatpush2.msra.mxu0 0.0
    %1254 = vmatprep.subr.mxu0 0.0
    %1255 = vmatpush2.msra.mxu0 0.0
    %1256 = vmatprep.subr.mxu0 0.0
    %1257 = vmatpush2.msra.mxu0 0.0
    %1258 = vmatprep.subr.mxu0 0.0
    %1259 = vmatpush2.msra.mxu0 0.0
    %1260 = vmatprep.subr.mxu0 0.0
    %1261 = vmatpush2.msra.mxu0 0.0
    %1262 = vmatprep.mubr.f32.mxu0 0.0
    %1263 = vmatmul.mubr.f32.gmra.mxu0 %v1196
    %v1264 = vpop.f32.mrf.mxu0
    %v1265 = vadd.f32 %v1059, %v1264
    %v1266 = vpop.f32.mrf.mxu0
    %v1267 = vadd.f32 %v1063, %v1266
    %1268 = vdwg.mxu0
    %v1269 = vadd.f32 %v1194, %v1265
    %v1270 = vxor.u32 %v1269, 2147483648
    %v1271 = vmul.f32 %v1270, 1.442695
    %v1272 = vpow.pop %v1271
    %v1273 = vadd.f32 %v1272, 1.0
    %v1274 = vrcp.pop %v1273
    %v1275 = vmul.f32 1.0, %v1274
    %v1276 = vmul.f32 %v1275, %v1267
    %v1277 = vadd.f32 %v1195, %v1276
    %v1278 = vtanh.pop %v1277
    %v1279 = vsub.f32 1.0, %v1275
    %1281 = vrot.lane.b32.xlu0 %v1278, 64
    %v1282 = vpop.permute.xlu0 %1281
    %v1284 = vmul.f32 %v1279, %v1282
    %v1285 = vmul.f32 %v1275, %v1156
    %v1286 = vadd.f32 %v1284, %v1285
    %1288 = vrot.lane.b32.xlu0 %v1286, 64
    %v1289 = vpop.permute.xlu0 %1288
    %s1291 = scalar_lea.vmem [#allocation3], 2
    %1292 = vst.msk [vmem:[%s1291] sm:$0x3] %vm1161, %v1289
    %1293 = vrot.lane.b32.xlu0 %v1286, 32
    %v1294 = vpop.permute.xlu0 %1293
    %s1296 = scalar_lea.vmem [#allocation4], 12
    %1297 = vst.msk [vmem:[%s1296] sm:$0x3] %vm1161, %v1294
    %s1298 = scalar_lea.vmem [#allocation2], 8
    %v1299 = vld [vmem:[%s1298] sm:$0xf]
    %s1300 = scalar_lea.vmem [#allocation2], 20
    %v1301 = vld [vmem:[%s1300] sm:$0xf]
    %v1304 = vunpack.c.l.s4 1983009808
    %v1305 = vunpack.c.0.s8 %v1304
    %v1306 = vlaneseq
    %v1307 = vshrl.u32 %v1306, 7
    %v1308 = vsub.s32 %v1305, %v1307
    %v1309 = vrot.slane %v1299, %v1308
    %v1310 = vcombine.high %v1309, %v1309
    %v1315 = vunpack.c.l.s4 1983009808
    %v1316 = vunpack.c.0.s8 %v1315
    %v1317 = vlaneseq
    %v1318 = vshrl.u32 %v1317, 7
    %v1319 = vsub.s32 %v1316, %v1318
    %v1320 = vrot.slane %v1301, %v1319
    %v1321 = vcombine.high %v1320, %v1320
    %v1324 = vsel %vm1026, %v1309, %v1320
    %v1325 = vsel %vm1027, %v1310, %v1321
    %v1326 = vsel %vm372, %v1289, 0
    %1328 = vmatprep.subr.mxu0 0.0
    %1329 = vmatpush1.msra.mxu0 0.0
    %1330 = vmatprep.subr.mxu0 0.0
    %1331 = vmatpush1.msra.mxu0 0.0
    %1332 = vmatprep.subr.mxu0 0.0
    %1333 = vmatpush1.msra.mxu0 0.0
    %1334 = vmatprep.subr.mxu0 0.0
    %1335 = vmatpush1.msra.mxu0 0.0
    %1336 = vmatprep.subr.mxu0 0.0
    %1337 = vmatpush1.msra.mxu0 0.0
    %1338 = vmatprep.subr.mxu0 0.0
    %1339 = vmatpush1.msra.mxu0 0.0
    %1340 = vmatprep.subr.mxu0 0.0
    %1341 = vmatpush1.msra.mxu0 0.0
    %1342 = vmatprep.subr.mxu0 0.0
    %1343 = vmatpush1.msra.mxu0 0.0
    %1344 = vmatprep.subr.mxu0 %v997
    %1345 = vmatpush1.msra.mxu0 %v996
    %1346 = vmatprep.subr.mxu0 %v995
    %1347 = vmatpush1.msra.mxu0 %v994
    %1348 = vmatprep.subr.mxu0 %v993
    %1349 = vmatpush1.msra.mxu0 %v992
    %1350 = vmatprep.subr.mxu0 %v991
    %1351 = vmatpush1.msra.mxu0 %v990
    %1352 = vmatprep.subr.mxu0 %v989
    %1353 = vmatpush1.msra.mxu0 %v988
    %1354 = vmatprep.subr.mxu0 %v987
    %1355 = vmatpush1.msra.mxu0 %v986
    %1356 = vmatprep.subr.mxu0 %v985
    %1357 = vmatpush1.msra.mxu0 %v984
    %1358 = vmatprep.subr.mxu0 %v983
    %1359 = vmatpush1.msra.mxu0 %v982
    %1360 = vmatprep.subr.mxu0 0.0
    %1361 = vmatpush2.msra.mxu0 0.0
    %1362 = vmatprep.subr.mxu0 0.0
    %1363 = vmatpush2.msra.mxu0 0.0
    %1364 = vmatprep.subr.mxu0 0.0
    %1365 = vmatpush2.msra.mxu0 0.0
    %1366 = vmatprep.subr.mxu0 0.0
    %1367 = vmatpush2.msra.mxu0 0.0
    %1368 = vmatprep.subr.mxu0 0.0
    %1369 = vmatpush2.msra.mxu0 0.0
    %1370 = vmatprep.subr.mxu0 0.0
    %1371 = vmatpush2.msra.mxu0 0.0
    %1372 = vmatprep.subr.mxu0 0.0
    %1373 = vmatpush2.msra.mxu0 0.0
    %1374 = vmatprep.subr.mxu0 0.0
    %1375 = vmatpush2.msra.mxu0 0.0
    %1376 = vmatprep.subr.mxu0 0.0
    %1377 = vmatpush2.msra.mxu0 0.0
    %1378 = vmatprep.subr.mxu0 0.0
    %1379 = vmatpush2.msra.mxu0 0.0
    %1380 = vmatprep.subr.mxu0 0.0
    %1381 = vmatpush2.msra.mxu0 0.0
    %1382 = vmatprep.subr.mxu0 0.0
    %1383 = vmatpush2.msra.mxu0 0.0
    %1384 = vmatprep.subr.mxu0 0.0
    %1385 = vmatpush2.msra.mxu0 0.0
    %1386 = vmatprep.subr.mxu0 0.0
    %1387 = vmatpush2.msra.mxu0 0.0
    %1388 = vmatprep.subr.mxu0 0.0
    %1389 = vmatpush2.msra.mxu0 0.0
    %1390 = vmatprep.subr.mxu0 0.0
    %1391 = vmatpush2.msra.mxu0 0.0
    %1392 = vmatprep.mubr.f32.mxu0 0.0
    %1393 = vmatmul.mubr.f32.gmra.mxu0 %v1326
    %v1394 = vpop.f32.mrf.mxu0
    %v1395 = vadd.f32 %v1059, %v1394
    %v1396 = vpop.f32.mrf.mxu0
    %v1397 = vadd.f32 %v1063, %v1396
    %1398 = vdwg.mxu0
    %v1399 = vadd.f32 %v1324, %v1395
    %v1400 = vxor.u32 %v1399, 2147483648
    %v1401 = vmul.f32 %v1400, 1.442695
    %v1402 = vpow.pop %v1401
    %v1403 = vadd.f32 %v1402, 1.0
    %v1404 = vrcp.pop %v1403
    %v1405 = vmul.f32 1.0, %v1404
    %v1406 = vmul.f32 %v1405, %v1397
    %v1407 = vadd.f32 %v1325, %v1406
    %v1408 = vtanh.pop %v1407
    %v1409 = vsub.f32 1.0, %v1405
    %1411 = vrot.lane.b32.xlu0 %v1408, 64
    %v1412 = vpop.permute.xlu0 %1411
    %v1414 = vmul.f32 %v1409, %v1412
    %v1415 = vmul.f32 %v1405, %v1286
    %v1416 = vadd.f32 %v1414, %v1415
    %1418 = vrot.lane.b32.xlu0 %v1416, 64
    %v1419 = vpop.permute.xlu0 %1418
    %s1421 = scalar_lea.vmem [#allocation3], 4
    %1422 = vst.msk [vmem:[%s1421] sm:$0x3] %vm1161, %v1419
    %1423 = vrot.lane.b32.xlu0 %v1416, 32
    %v1424 = vpop.permute.xlu0 %1423
    %s1426 = scalar_lea.vmem [#allocation4], 10
    %1427 = vst.msk [vmem:[%s1426] sm:$0x3] %vm1161, %v1424
    %s1428 = scalar_lea.vmem [#allocation2], 12
    %v1429 = vld [vmem:[%s1428] sm:$0xf]
    %s1430 = scalar_lea.vmem [#allocation2], 16
    %v1431 = vld [vmem:[%s1430] sm:$0xf]
    %v1434 = vunpack.c.l.s4 1983009808
    %v1435 = vunpack.c.0.s8 %v1434
    %v1436 = vlaneseq
    %v1437 = vshrl.u32 %v1436, 7
    %v1438 = vsub.s32 %v1435, %v1437
    %v1439 = vrot.slane %v1429, %v1438
    %v1440 = vcombine.high %v1439, %v1439
    %v1445 = vunpack.c.l.s4 1983009808
    %v1446 = vunpack.c.0.s8 %v1445
    %v1447 = vlaneseq
    %v1448 = vshrl.u32 %v1447, 7
    %v1449 = vsub.s32 %v1446, %v1448
    %v1450 = vrot.slane %v1431, %v1449
    %v1451 = vcombine.high %v1450, %v1450
    %v1454 = vsel %vm1026, %v1439, %v1450
    %v1455 = vsel %vm1027, %v1440, %v1451
    %v1456 = vsel %vm372, %v1419, 0
    %1458 = vmatprep.subr.mxu0 0.0
    %1459 = vmatpush1.msra.mxu0 0.0
    %1460 = vmatprep.subr.mxu0 0.0
    %1461 = vmatpush1.msra.mxu0 0.0
    %1462 = vmatprep.subr.mxu0 0.0
    %1463 = vmatpush1.msra.mxu0 0.0
    %1464 = vmatprep.subr.mxu0 0.0
    %1465 = vmatpush1.msra.mxu0 0.0
    %1466 = vmatprep.subr.mxu0 0.0
    %1467 = vmatpush1.msra.mxu0 0.0
    %1468 = vmatprep.subr.mxu0 0.0
    %1469 = vmatpush1.msra.mxu0 0.0
    %1470 = vmatprep.subr.mxu0 0.0
    %1471 = vmatpush1.msra.mxu0 0.0
    %1472 = vmatprep.subr.mxu0 0.0
    %1473 = vmatpush1.msra.mxu0 0.0
    %1474 = vmatprep.subr.mxu0 %v997
    %1475 = vmatpush1.msra.mxu0 %v996
    %1476 = vmatprep.subr.mxu0 %v995
    %1477 = vmatpush1.msra.mxu0 %v994
    %1478 = vmatprep.subr.mxu0 %v993
    %1479 = vmatpush1.msra.mxu0 %v992
    %1480 = vmatprep.subr.mxu0 %v991
    %1481 = vmatpush1.msra.mxu0 %v990
    %1482 = vmatprep.subr.mxu0 %v989
    %1483 = vmatpush1.msra.mxu0 %v988
    %1484 = vmatprep.subr.mxu0 %v987
    %1485 = vmatpush1.msra.mxu0 %v986
    %1486 = vmatprep.subr.mxu0 %v985
    %1487 = vmatpush1.msra.mxu0 %v984
    %1488 = vmatprep.subr.mxu0 %v983
    %1489 = vmatpush1.msra.mxu0 %v982
    %1490 = vmatprep.subr.mxu0 0.0
    %1491 = vmatpush2.msra.mxu0 0.0
    %1492 = vmatprep.subr.mxu0 0.0
    %1493 = vmatpush2.msra.mxu0 0.0
    %1494 = vmatprep.subr.mxu0 0.0
    %1495 = vmatpush2.msra.mxu0 0.0
    %1496 = vmatprep.subr.mxu0 0.0
    %1497 = vmatpush2.msra.mxu0 0.0
    %1498 = vmatprep.subr.mxu0 0.0
    %1499 = vmatpush2.msra.mxu0 0.0
    %1500 = vmatprep.subr.mxu0 0.0
    %1501 = vmatpush2.msra.mxu0 0.0
    %1502 = vmatprep.subr.mxu0 0.0
    %1503 = vmatpush2.msra.mxu0 0.0
    %1504 = vmatprep.subr.mxu0 0.0
    %1505 = vmatpush2.msra.mxu0 0.0
    %1506 = vmatprep.subr.mxu0 0.0
    %1507 = vmatpush2.msra.mxu0 0.0
    %1508 = vmatprep.subr.mxu0 0.0
    %1509 = vmatpush2.msra.mxu0 0.0
    %1510 = vmatprep.subr.mxu0 0.0
    %1511 = vmatpush2.msra.mxu0 0.0
    %1512 = vmatprep.subr.mxu0 0.0
    %1513 = vmatpush2.msra.mxu0 0.0
    %1514 = vmatprep.subr.mxu0 0.0
    %1515 = vmatpush2.msra.mxu0 0.0
    %1516 = vmatprep.subr.mxu0 0.0
    %1517 = vmatpush2.msra.mxu0 0.0
    %1518 = vmatprep.subr.mxu0 0.0
    %1519 = vmatpush2.msra.mxu0 0.0
    %1520 = vmatprep.subr.mxu0 0.0
    %1521 = vmatpush2.msra.mxu0 0.0
    %1522 = vmatprep.mubr.f32.mxu0 0.0
    %1523 = vmatmul.mubr.f32.gmra.mxu0 %v1456
    %v1524 = vpop.f32.mrf.mxu0
    %v1525 = vadd.f32 %v1059, %v1524
    %v1526 = vpop.f32.mrf.mxu0
    %v1527 = vadd.f32 %v1063, %v1526
    %1528 = vdwg.mxu0
    %v1529 = vadd.f32 %v1454, %v1525
    %v1530 = vxor.u32 %v1529, 2147483648
    %v1531 = vmul.f32 %v1530, 1.442695
    %v1532 = vpow.pop %v1531
    %v1533 = vadd.f32 %v1532, 1.0
    %v1534 = vrcp.pop %v1533
    %v1535 = vmul.f32 1.0, %v1534
    %v1536 = vmul.f32 %v1535, %v1527
    %v1537 = vadd.f32 %v1455, %v1536
    %v1538 = vtanh.pop %v1537
    %v1539 = vsub.f32 1.0, %v1535
    %1541 = vrot.lane.b32.xlu0 %v1538, 64
    %v1542 = vpop.permute.xlu0 %1541
    %v1544 = vmul.f32 %v1539, %v1542
    %v1545 = vmul.f32 %v1535, %v1416
    %v1546 = vadd.f32 %v1544, %v1545
    %1548 = vrot.lane.b32.xlu0 %v1546, 64
    %v1549 = vpop.permute.xlu0 %1548
    %s1551 = scalar_lea.vmem [#allocation3], 6
    %1552 = vst.msk [vmem:[%s1551] sm:$0x3] %vm1161, %v1549
    %1553 = vrot.lane.b32.xlu0 %v1546, 32
    %v1554 = vpop.permute.xlu0 %1553
    %s1556 = scalar_lea.vmem [#allocation4], 8
    %1557 = vst.msk [vmem:[%s1556] sm:$0x3] %vm1161, %v1554
    %v1558 = vld [vmem:[%s1430] sm:$0xf]
    %v1559 = vld [vmem:[%s1428] sm:$0xf]
    %v1562 = vunpack.c.l.s4 1983009808
    %v1563 = vunpack.c.0.s8 %v1562
    %v1564 = vlaneseq
    %v1565 = vshrl.u32 %v1564, 7
    %v1566 = vsub.s32 %v1563, %v1565
    %v1567 = vrot.slane %v1558, %v1566
    %v1568 = vcombine.high %v1567, %v1567
    %v1573 = vunpack.c.l.s4 1983009808
    %v1574 = vunpack.c.0.s8 %v1573
    %v1575 = vlaneseq
    %v1576 = vshrl.u32 %v1575, 7
    %v1577 = vsub.s32 %v1574, %v1576
    %v1578 = vrot.slane %v1559, %v1577
    %v1579 = vcombine.high %v1578, %v1578
    %v1582 = vsel %vm1026, %v1567, %v1578
    %v1583 = vsel %vm1027, %v1568, %v1579
    %v1584 = vsel %vm372, %v1549, 0
    %1586 = vmatprep.subr.mxu0 0.0
    %1587 = vmatpush1.msra.mxu0 0.0
    %1588 = vmatprep.subr.mxu0 0.0
    %1589 = vmatpush1.msra.mxu0 0.0
    %1590 = vmatprep.subr.mxu0 0.0
    %1591 = vmatpush1.msra.mxu0 0.0
    %1592 = vmatprep.subr.mxu0 0.0
    %1593 = vmatpush1.msra.mxu0 0.0
    %1594 = vmatprep.subr.mxu0 0.0
    %1595 = vmatpush1.msra.mxu0 0.0
    %1596 = vmatprep.subr.mxu0 0.0
    %1597 = vmatpush1.msra.mxu0 0.0
    %1598 = vmatprep.subr.mxu0 0.0
    %1599 = vmatpush1.msra.mxu0 0.0
    %1600 = vmatprep.subr.mxu0 0.0
    %1601 = vmatpush1.msra.mxu0 0.0
    %1602 = vmatprep.subr.mxu0 %v997
    %1603 = vmatpush1.msra.mxu0 %v996
    %1604 = vmatprep.subr.mxu0 %v995
    %1605 = vmatpush1.msra.mxu0 %v994
    %1606 = vmatprep.subr.mxu0 %v993
    %1607 = vmatpush1.msra.mxu0 %v992
    %1608 = vmatprep.subr.mxu0 %v991
    %1609 = vmatpush1.msra.mxu0 %v990
    %1610 = vmatprep.subr.mxu0 %v989
    %1611 = vmatpush1.msra.mxu0 %v988
    %1612 = vmatprep.subr.mxu0 %v987
    %1613 = vmatpush1.msra.mxu0 %v986
    %1614 = vmatprep.subr.mxu0 %v985
    %1615 = vmatpush1.msra.mxu0 %v984
    %1616 = vmatprep.subr.mxu0 %v983
    %1617 = vmatpush1.msra.mxu0 %v982
    %1618 = vmatprep.subr.mxu0 0.0
    %1619 = vmatpush2.msra.mxu0 0.0
    %1620 = vmatprep.subr.mxu0 0.0
    %1621 = vmatpush2.msra.mxu0 0.0
    %1622 = vmatprep.subr.mxu0 0.0
    %1623 = vmatpush2.msra.mxu0 0.0
    %1624 = vmatprep.subr.mxu0 0.0
    %1625 = vmatpush2.msra.mxu0 0.0
    %1626 = vmatprep.subr.mxu0 0.0
    %1627 = vmatpush2.msra.mxu0 0.0
    %1628 = vmatprep.subr.mxu0 0.0
    %1629 = vmatpush2.msra.mxu0 0.0
    %1630 = vmatprep.subr.mxu0 0.0
    %1631 = vmatpush2.msra.mxu0 0.0
    %1632 = vmatprep.subr.mxu0 0.0
    %1633 = vmatpush2.msra.mxu0 0.0
    %1634 = vmatprep.subr.mxu0 0.0
    %1635 = vmatpush2.msra.mxu0 0.0
    %1636 = vmatprep.subr.mxu0 0.0
    %1637 = vmatpush2.msra.mxu0 0.0
    %1638 = vmatprep.subr.mxu0 0.0
    %1639 = vmatpush2.msra.mxu0 0.0
    %1640 = vmatprep.subr.mxu0 0.0
    %1641 = vmatpush2.msra.mxu0 0.0
    %1642 = vmatprep.subr.mxu0 0.0
    %1643 = vmatpush2.msra.mxu0 0.0
    %1644 = vmatprep.subr.mxu0 0.0
    %1645 = vmatpush2.msra.mxu0 0.0
    %1646 = vmatprep.subr.mxu0 0.0
    %1647 = vmatpush2.msra.mxu0 0.0
    %1648 = vmatprep.subr.mxu0 0.0
    %1649 = vmatpush2.msra.mxu0 0.0
    %1650 = vmatprep.mubr.f32.mxu0 0.0
    %1651 = vmatmul.mubr.f32.gmra.mxu0 %v1584
    %v1652 = vpop.f32.mrf.mxu0
    %v1653 = vadd.f32 %v1059, %v1652
    %v1654 = vpop.f32.mrf.mxu0
    %v1655 = vadd.f32 %v1063, %v1654
    %1656 = vdwg.mxu0
    %v1657 = vadd.f32 %v1582, %v1653
    %v1658 = vxor.u32 %v1657, 2147483648
    %v1659 = vmul.f32 %v1658, 1.442695
    %v1660 = vpow.pop %v1659
    %v1661 = vadd.f32 %v1660, 1.0
    %v1662 = vrcp.pop %v1661
    %v1663 = vmul.f32 1.0, %v1662
    %v1664 = vmul.f32 %v1663, %v1655
    %v1665 = vadd.f32 %v1583, %v1664
    %v1666 = vtanh.pop %v1665
    %v1667 = vsub.f32 1.0, %v1663
    %1669 = vrot.lane.b32.xlu0 %v1666, 64
    %v1670 = vpop.permute.xlu0 %1669
    %v1672 = vmul.f32 %v1667, %v1670
    %v1673 = vmul.f32 %v1663, %v1546
    %v1674 = vadd.f32 %v1672, %v1673
    %1676 = vrot.lane.b32.xlu0 %v1674, 64
    %v1677 = vpop.permute.xlu0 %1676
    %s1679 = scalar_lea.vmem [#allocation3], 8
    %1680 = vst.msk [vmem:[%s1679] sm:$0x3] %vm1161, %v1677
    %1681 = vrot.lane.b32.xlu0 %v1674, 32
    %v1682 = vpop.permute.xlu0 %1681
    %s1684 = scalar_lea.vmem [#allocation4], 6
    %1685 = vst.msk [vmem:[%s1684] sm:$0x3] %vm1161, %v1682
    %v1686 = vld [vmem:[%s1300] sm:$0xf]
    %v1687 = vld [vmem:[%s1298] sm:$0xf]
    %v1690 = vunpack.c.l.s4 1983009808
    %v1691 = vunpack.c.0.s8 %v1690
    %v1692 = vlaneseq
    %v1693 = vshrl.u32 %v1692, 7
    %v1694 = vsub.s32 %v1691, %v1693
    %v1695 = vrot.slane %v1686, %v1694
    %v1696 = vcombine.high %v1695, %v1695
    %v1701 = vunpack.c.l.s4 1983009808
    %v1702 = vunpack.c.0.s8 %v1701
    %v1703 = vlaneseq
    %v1704 = vshrl.u32 %v1703, 7
    %v1705 = vsub.s32 %v1702, %v1704
    %v1706 = vrot.slane %v1687, %v1705
    %v1707 = vcombine.high %v1706, %v1706
    %v1710 = vsel %vm1026, %v1695, %v1706
    %v1711 = vsel %vm1027, %v1696, %v1707
    %v1712 = vsel %vm372, %v1677, 0
    %1714 = vmatprep.subr.mxu0 0.0
    %1715 = vmatpush1.msra.mxu0 0.0
    %1716 = vmatprep.subr.mxu0 0.0
    %1717 = vmatpush1.msra.mxu0 0.0
    %1718 = vmatprep.subr.mxu0 0.0
    %1719 = vmatpush1.msra.mxu0 0.0
    %1720 = vmatprep.subr.mxu0 0.0
    %1721 = vmatpush1.msra.mxu0 0.0
    %1722 = vmatprep.subr.mxu0 0.0
    %1723 = vmatpush1.msra.mxu0 0.0
    %1724 = vmatprep.subr.mxu0 0.0
    %1725 = vmatpush1.msra.mxu0 0.0
    %1726 = vmatprep.subr.mxu0 0.0
    %1727 = vmatpush1.msra.mxu0 0.0
    %1728 = vmatprep.subr.mxu0 0.0
    %1729 = vmatpush1.msra.mxu0 0.0
    %1730 = vmatprep.subr.mxu0 %v997
    %1731 = vmatpush1.msra.mxu0 %v996
    %1732 = vmatprep.subr.mxu0 %v995
    %1733 = vmatpush1.msra.mxu0 %v994
    %1734 = vmatprep.subr.mxu0 %v993
    %1735 = vmatpush1.msra.mxu0 %v992
    %1736 = vmatprep.subr.mxu0 %v991
    %1737 = vmatpush1.msra.mxu0 %v990
    %1738 = vmatprep.subr.mxu0 %v989
    %1739 = vmatpush1.msra.mxu0 %v988
    %1740 = vmatprep.subr.mxu0 %v987
    %1741 = vmatpush1.msra.mxu0 %v986
    %1742 = vmatprep.subr.mxu0 %v985
    %1743 = vmatpush1.msra.mxu0 %v984
    %1744 = vmatprep.subr.mxu0 %v983
    %1745 = vmatpush1.msra.mxu0 %v982
    %1746 = vmatprep.subr.mxu0 0.0
    %1747 = vmatpush2.msra.mxu0 0.0
    %1748 = vmatprep.subr.mxu0 0.0
    %1749 = vmatpush2.msra.mxu0 0.0
    %1750 = vmatprep.subr.mxu0 0.0
    %1751 = vmatpush2.msra.mxu0 0.0
    %1752 = vmatprep.subr.mxu0 0.0
    %1753 = vmatpush2.msra.mxu0 0.0
    %1754 = vmatprep.subr.mxu0 0.0
    %1755 = vmatpush2.msra.mxu0 0.0
    %1756 = vmatprep.subr.mxu0 0.0
    %1757 = vmatpush2.msra.mxu0 0.0
    %1758 = vmatprep.subr.mxu0 0.0
    %1759 = vmatpush2.msra.mxu0 0.0
    %1760 = vmatprep.subr.mxu0 0.0
    %1761 = vmatpush2.msra.mxu0 0.0
    %1762 = vmatprep.subr.mxu0 0.0
    %1763 = vmatpush2.msra.mxu0 0.0
    %1764 = vmatprep.subr.mxu0 0.0
    %1765 = vmatpush2.msra.mxu0 0.0
    %1766 = vmatprep.subr.mxu0 0.0
    %1767 = vmatpush2.msra.mxu0 0.0
    %1768 = vmatprep.subr.mxu0 0.0
    %1769 = vmatpush2.msra.mxu0 0.0
    %1770 = vmatprep.subr.mxu0 0.0
    %1771 = vmatpush2.msra.mxu0 0.0
    %1772 = vmatprep.subr.mxu0 0.0
    %1773 = vmatpush2.msra.mxu0 0.0
    %1774 = vmatprep.subr.mxu0 0.0
    %1775 = vmatpush2.msra.mxu0 0.0
    %1776 = vmatprep.subr.mxu0 0.0
    %1777 = vmatpush2.msra.mxu0 0.0
    %1778 = vmatprep.mubr.f32.mxu0 0.0
    %1779 = vmatmul.mubr.f32.gmra.mxu0 %v1712
    %v1780 = vpop.f32.mrf.mxu0
    %v1781 = vadd.f32 %v1059, %v1780
    %v1782 = vpop.f32.mrf.mxu0
    %v1783 = vadd.f32 %v1063, %v1782
    %1784 = vdwg.mxu0
    %v1785 = vadd.f32 %v1710, %v1781
    %v1786 = vxor.u32 %v1785, 2147483648
    %v1787 = vmul.f32 %v1786, 1.442695
    %v1788 = vpow.pop %v1787
    %v1789 = vadd.f32 %v1788, 1.0
    %v1790 = vrcp.pop %v1789
    %v1791 = vmul.f32 1.0, %v1790
    %v1792 = vmul.f32 %v1791, %v1783
    %v1793 = vadd.f32 %v1711, %v1792
    %v1794 = vtanh.pop %v1793
    %v1795 = vsub.f32 1.0, %v1791
    %1797 = vrot.lane.b32.xlu0 %v1794, 64
    %v1798 = vpop.permute.xlu0 %1797
    %v1800 = vmul.f32 %v1795, %v1798
    %v1801 = vmul.f32 %v1791, %v1674
    %v1802 = vadd.f32 %v1800, %v1801
    %1804 = vrot.lane.b32.xlu0 %v1802, 64
    %v1805 = vpop.permute.xlu0 %1804
    %s1807 = scalar_lea.vmem [#allocation3], 10
    %1808 = vst.msk [vmem:[%s1807] sm:$0x3] %vm1161, %v1805
    %1809 = vrot.lane.b32.xlu0 %v1802, 32
    %v1810 = vpop.permute.xlu0 %1809
    %s1812 = scalar_lea.vmem [#allocation4], 4
    %1813 = vst.msk [vmem:[%s1812] sm:$0x3] %vm1161, %v1810
    %v1814 = vld [vmem:[%s1170] sm:$0xf]
    %v1815 = vld [vmem:[%s1168] sm:$0xf]
    %v1818 = vunpack.c.l.s4 1983009808
    %v1819 = vunpack.c.0.s8 %v1818
    %v1820 = vlaneseq
    %v1821 = vshrl.u32 %v1820, 7
    %v1822 = vsub.s32 %v1819, %v1821
    %v1823 = vrot.slane %v1814, %v1822
    %v1824 = vcombine.high %v1823, %v1823
    %v1829 = vunpack.c.l.s4 1983009808
    %v1830 = vunpack.c.0.s8 %v1829
    %v1831 = vlaneseq
    %v1832 = vshrl.u32 %v1831, 7
    %v1833 = vsub.s32 %v1830, %v1832
    %v1834 = vrot.slane %v1815, %v1833
    %v1835 = vcombine.high %v1834, %v1834
    %v1838 = vsel %vm1026, %v1823, %v1834
    %v1839 = vsel %vm1027, %v1824, %v1835
    %v1840 = vsel %vm372, %v1805, 0
    %1842 = vmatprep.subr.mxu0 0.0
    %1843 = vmatpush1.msra.mxu0 0.0
    %1844 = vmatprep.subr.mxu0 0.0
    %1845 = vmatpush1.msra.mxu0 0.0
    %1846 = vmatprep.subr.mxu0 0.0
    %1847 = vmatpush1.msra.mxu0 0.0
    %1848 = vmatprep.subr.mxu0 0.0
    %1849 = vmatpush1.msra.mxu0 0.0
    %1850 = vmatprep.subr.mxu0 0.0
    %1851 = vmatpush1.msra.mxu0 0.0
    %1852 = vmatprep.subr.mxu0 0.0
    %1853 = vmatpush1.msra.mxu0 0.0
    %1854 = vmatprep.subr.mxu0 0.0
    %1855 = vmatpush1.msra.mxu0 0.0
    %1856 = vmatprep.subr.mxu0 0.0
    %1857 = vmatpush1.msra.mxu0 0.0
    %1858 = vmatprep.subr.mxu0 %v997
    %1859 = vmatpush1.msra.mxu0 %v996
    %1860 = vmatprep.subr.mxu0 %v995
    %1861 = vmatpush1.msra.mxu0 %v994
    %1862 = vmatprep.subr.mxu0 %v993
    %1863 = vmatpush1.msra.mxu0 %v992
    %1864 = vmatprep.subr.mxu0 %v991
    %1865 = vmatpush1.msra.mxu0 %v990
    %1866 = vmatprep.subr.mxu0 %v989
    %1867 = vmatpush1.msra.mxu0 %v988
    %1868 = vmatprep.subr.mxu0 %v987
    %1869 = vmatpush1.msra.mxu0 %v986
    %1870 = vmatprep.subr.mxu0 %v985
    %1871 = vmatpush1.msra.mxu0 %v984
    %1872 = vmatprep.subr.mxu0 %v983
    %1873 = vmatpush1.msra.mxu0 %v982
    %1874 = vmatprep.subr.mxu0 0.0
    %1875 = vmatpush2.msra.mxu0 0.0
    %1876 = vmatprep.subr.mxu0 0.0
    %1877 = vmatpush2.msra.mxu0 0.0
    %1878 = vmatprep.subr.mxu0 0.0
    %1879 = vmatpush2.msra.mxu0 0.0
    %1880 = vmatprep.subr.mxu0 0.0
    %1881 = vmatpush2.msra.mxu0 0.0
    %1882 = vmatprep.subr.mxu0 0.0
    %1883 = vmatpush2.msra.mxu0 0.0
    %1884 = vmatprep.subr.mxu0 0.0
    %1885 = vmatpush2.msra.mxu0 0.0
    %1886 = vmatprep.subr.mxu0 0.0
    %1887 = vmatpush2.msra.mxu0 0.0
    %1888 = vmatprep.subr.mxu0 0.0
    %1889 = vmatpush2.msra.mxu0 0.0
    %1890 = vmatprep.subr.mxu0 0.0
    %1891 = vmatpush2.msra.mxu0 0.0
    %1892 = vmatprep.subr.mxu0 0.0
    %1893 = vmatpush2.msra.mxu0 0.0
    %1894 = vmatprep.subr.mxu0 0.0
    %1895 = vmatpush2.msra.mxu0 0.0
    %1896 = vmatprep.subr.mxu0 0.0
    %1897 = vmatpush2.msra.mxu0 0.0
    %1898 = vmatprep.subr.mxu0 0.0
    %1899 = vmatpush2.msra.mxu0 0.0
    %1900 = vmatprep.subr.mxu0 0.0
    %1901 = vmatpush2.msra.mxu0 0.0
    %1902 = vmatprep.subr.mxu0 0.0
    %1903 = vmatpush2.msra.mxu0 0.0
    %1904 = vmatprep.subr.mxu0 0.0
    %1905 = vmatpush2.msra.mxu0 0.0
    %1906 = vmatprep.mubr.f32.mxu0 0.0
    %1907 = vmatmul.mubr.f32.gmra.mxu0 %v1840
    %v1908 = vpop.f32.mrf.mxu0
    %v1909 = vadd.f32 %v1059, %v1908
    %v1910 = vpop.f32.mrf.mxu0
    %v1911 = vadd.f32 %v1063, %v1910
    %1912 = vdwg.mxu0
    %v1913 = vadd.f32 %v1838, %v1909
    %v1914 = vxor.u32 %v1913, 2147483648
    %v1915 = vmul.f32 %v1914, 1.442695
    %v1916 = vpow.pop %v1915
    %v1917 = vadd.f32 %v1916, 1.0
    %v1918 = vrcp.pop %v1917
    %v1919 = vmul.f32 1.0, %v1918
    %v1920 = vmul.f32 %v1919, %v1911
    %v1921 = vadd.f32 %v1839, %v1920
    %v1922 = vtanh.pop %v1921
    %v1923 = vsub.f32 1.0, %v1919
    %1925 = vrot.lane.b32.xlu0 %v1922, 64
    %v1926 = vpop.permute.xlu0 %1925
    %v1928 = vmul.f32 %v1923, %v1926
    %v1929 = vmul.f32 %v1919, %v1802
    %v1930 = vadd.f32 %v1928, %v1929
    %1932 = vrot.lane.b32.xlu0 %v1930, 64
    %v1933 = vpop.permute.xlu0 %1932
    %s1935 = scalar_lea.vmem [#allocation3], 12
    %1936 = vst.msk [vmem:[%s1935] sm:$0x3] %vm1161, %v1933
    %1937 = vrot.lane.b32.xlu0 %v1930, 32
    %v1938 = vpop.permute.xlu0 %1937
    %s1940 = scalar_lea.vmem [#allocation4], 2
    %1941 = vst.msk [vmem:[%s1940] sm:$0x3] %vm1161, %v1938
    %v1942 = vld [vmem:[%s1029] sm:$0xf]
    %v1943 = vld [vmem:[#allocation2] sm:$0xf]
    %v1946 = vunpack.c.l.s4 1983009808
    %v1947 = vunpack.c.0.s8 %v1946
    %v1948 = vlaneseq
    %v1949 = vshrl.u32 %v1948, 7
    %v1950 = vsub.s32 %v1947, %v1949
    %v1951 = vrot.slane %v1942, %v1950
    %v1952 = vcombine.high %v1951, %v1951
    %v1957 = vunpack.c.l.s4 1983009808
    %v1958 = vunpack.c.0.s8 %v1957
    %v1959 = vlaneseq
    %v1960 = vshrl.u32 %v1959, 7
    %v1961 = vsub.s32 %v1958, %v1960
    %v1962 = vrot.slane %v1943, %v1961
    %v1963 = vcombine.high %v1962, %v1962
    %v1966 = vsel %vm1026, %v1951, %v1962
    %v1967 = vsel %vm1027, %v1952, %v1963
    %v1968 = vsel %vm372, %v1933, 0
    %1970 = vmatprep.subr.mxu0 0.0
    %1971 = vmatpush1.msra.mxu0 0.0
    %1972 = vmatprep.subr.mxu0 0.0
    %1973 = vmatpush1.msra.mxu0 0.0
    %1974 = vmatprep.subr.mxu0 0.0
    %1975 = vmatpush1.msra.mxu0 0.0
    %1976 = vmatprep.subr.mxu0 0.0
    %1977 = vmatpush1.msra.mxu0 0.0
    %1978 = vmatprep.subr.mxu0 0.0
    %1979 = vmatpush1.msra.mxu0 0.0
    %1980 = vmatprep.subr.mxu0 0.0
    %1981 = vmatpush1.msra.mxu0 0.0
    %1982 = vmatprep.subr.mxu0 0.0
    %1983 = vmatpush1.msra.mxu0 0.0
    %1984 = vmatprep.subr.mxu0 0.0
    %1985 = vmatpush1.msra.mxu0 0.0
    %1986 = vmatprep.subr.mxu0 %v997
    %1987 = vmatpush1.msra.mxu0 %v996
    %1988 = vmatprep.subr.mxu0 %v995
    %1989 = vmatpush1.msra.mxu0 %v994
    %1990 = vmatprep.subr.mxu0 %v993
    %1991 = vmatpush1.msra.mxu0 %v992
    %1992 = vmatprep.subr.mxu0 %v991
    %1993 = vmatpush1.msra.mxu0 %v990
    %1994 = vmatprep.subr.mxu0 %v989
    %1995 = vmatpush1.msra.mxu0 %v988
    %1996 = vmatprep.subr.mxu0 %v987
    %1997 = vmatpush1.msra.mxu0 %v986
    %1998 = vmatprep.subr.mxu0 %v985
    %1999 = vmatpush1.msra.mxu0 %v984
    %2000 = vmatprep.subr.mxu0 %v983
    %2001 = vmatpush1.msra.mxu0 %v982
    %2002 = vmatprep.subr.mxu0 0.0
    %2003 = vmatpush2.msra.mxu0 0.0
    %2004 = vmatprep.subr.mxu0 0.0
    %2005 = vmatpush2.msra.mxu0 0.0
    %2006 = vmatprep.subr.mxu0 0.0
    %2007 = vmatpush2.msra.mxu0 0.0
    %2008 = vmatprep.subr.mxu0 0.0
    %2009 = vmatpush2.msra.mxu0 0.0
    %2010 = vmatprep.subr.mxu0 0.0
    %2011 = vmatpush2.msra.mxu0 0.0
    %2012 = vmatprep.subr.mxu0 0.0
    %2013 = vmatpush2.msra.mxu0 0.0
    %2014 = vmatprep.subr.mxu0 0.0
    %2015 = vmatpush2.msra.mxu0 0.0
    %2016 = vmatprep.subr.mxu0 0.0
    %2017 = vmatpush2.msra.mxu0 0.0
    %2018 = vmatprep.subr.mxu0 0.0
    %2019 = vmatpush2.msra.mxu0 0.0
    %2020 = vmatprep.subr.mxu0 0.0
    %2021 = vmatpush2.msra.mxu0 0.0
    %2022 = vmatprep.subr.mxu0 0.0
    %2023 = vmatpush2.msra.mxu0 0.0
    %2024 = vmatprep.subr.mxu0 0.0
    %2025 = vmatpush2.msra.mxu0 0.0
    %2026 = vmatprep.subr.mxu0 0.0
    %2027 = vmatpush2.msra.mxu0 0.0
    %2028 = vmatprep.subr.mxu0 0.0
    %2029 = vmatpush2.msra.mxu0 0.0
    %2030 = vmatprep.subr.mxu0 0.0
    %2031 = vmatpush2.msra.mxu0 0.0
    %2032 = vmatprep.subr.mxu0 0.0
    %2033 = vmatpush2.msra.mxu0 0.0
    %2034 = vmatprep.mubr.f32.mxu0 0.0
    %2035 = vmatmul.mubr.f32.gmra.mxu0 %v1968
    %v2036 = vpop.f32.mrf.mxu0
    %v2037 = vadd.f32 %v1059, %v2036
    %v2038 = vpop.f32.mrf.mxu0
    %v2039 = vadd.f32 %v1063, %v2038
    %2040 = vdwg.mxu0
    %v2041 = vadd.f32 %v1966, %v2037
    %v2042 = vxor.u32 %v2041, 2147483648
    %v2043 = vmul.f32 %v2042, 1.442695
    %v2044 = vpow.pop %v2043
    %v2045 = vadd.f32 %v2044, 1.0
    %v2046 = vrcp.pop %v2045
    %v2047 = vmul.f32 1.0, %v2046
    %v2048 = vmul.f32 %v2047, %v2039
    %v2049 = vadd.f32 %v1967, %v2048
    %v2050 = vtanh.pop %v2049
    %v2051 = vsub.f32 1.0, %v2047
    %2053 = vrot.lane.b32.xlu0 %v2050, 64
    %v2054 = vpop.permute.xlu0 %2053
    %v2056 = vmul.f32 %v2051, %v2054
    %v2057 = vmul.f32 %v2047, %v1930
    %v2058 = vadd.f32 %v2056, %v2057
    %2060 = vrot.lane.b32.xlu0 %v2058, 64
    %v2061 = vpop.permute.xlu0 %2060
    %s2063 = scalar_lea.vmem [#allocation3], 14
    %2064 = vst.msk [vmem:[%s2063] sm:$0x3] %vm1161, %v2061
    %2065 = vrot.lane.b32.xlu0 %v2058, 32
    %v2066 = vpop.permute.xlu0 %2065
    %2068 = vst.msk [vmem:[#allocation4] sm:$0x3] %vm1161, %v2066
    %v2069 = vld [vmem:[#allocation3] sm:$0x3]
    %v2070 = vld [vmem:[#allocation3 + $0x2] sm:$0x3]
    %v2071 = vld [vmem:[#allocation3 + $0x4] sm:$0x3]
    %v2072 = vld [vmem:[#allocation3 + $0x6] sm:$0x3]
    %v2073 = vld [vmem:[#allocation3 + $0x8] sm:$0x3]
    %v2074 = vld [vmem:[#allocation3 + $0xa] sm:$0x3]
    %v2075 = vld [vmem:[#allocation3 + $0xc] sm:$0x3]
    %v2076 = vld [vmem:[#allocation3 + $0xe] sm:$0x3]
    %v2077 = vld [vmem:[#allocation4] sm:$0x3]
    %v2078 = vld [vmem:[#allocation4 + $0x2] sm:$0x3]
    %v2079 = vld [vmem:[#allocation4 + $0x4] sm:$0x3]
    %v2080 = vld [vmem:[#allocation4 + $0x6] sm:$0x3]
    %v2081 = vld [vmem:[#allocation4 + $0x8] sm:$0x3]
    %v2082 = vld [vmem:[#allocation4 + $0xa] sm:$0x3]
    %v2083 = vld [vmem:[#allocation4 + $0xc] sm:$0x3]
    %v2084 = vld [vmem:[#allocation4 + $0xe] sm:$0x3]
    %2093 = vrot.lane.b32.xlu0 %v2077, 32
    %v2094 = vpop.permute.xlu0 %2093
    %2095 = vrot.lane.b32.xlu0 %v2078, 32
    %v2096 = vpop.permute.xlu0 %2095
    %2097 = vrot.lane.b32.xlu0 %v2079, 32
    %v2098 = vpop.permute.xlu0 %2097
    %2099 = vrot.lane.b32.xlu0 %v2080, 32
    %v2100 = vpop.permute.xlu0 %2099
    %2101 = vrot.lane.b32.xlu0 %v2081, 32
    %v2102 = vpop.permute.xlu0 %2101
    %2103 = vrot.lane.b32.xlu0 %v2082, 32
    %v2104 = vpop.permute.xlu0 %2103
    %2105 = vrot.lane.b32.xlu0 %v2083, 32
    %v2106 = vpop.permute.xlu0 %2105
    %2107 = vrot.lane.b32.xlu0 %v2084, 32
    %v2108 = vpop.permute.xlu0 %2107
    %v2117 = vsel %vm174, %v2069, %v2094
    %v2118 = vsel %vm174, %v2070, %v2096
    %v2119 = vsel %vm174, %v2071, %v2098
    %v2120 = vsel %vm174, %v2072, %v2100
    %v2121 = vsel %vm174, %v2073, %v2102
    %v2122 = vsel %vm174, %v2074, %v2104
    %v2123 = vsel %vm174, %v2075, %v2106
    %v2124 = vsel %vm174, %v2076, %v2108
    %vm2125 = vcmask 517120
    %2126 = vst.msk [vmem:[%s19] sm:$0x3] %vm2125, %v2117
    %2127 = vst.msk [vmem:[%s19 + $0x2] sm:$0x3] %vm2125, %v2118
    %2128 = vst.msk [vmem:[%s19 + $0x4] sm:$0x3] %vm2125, %v2119
    %2129 = vst.msk [vmem:[%s19 + $0x6] sm:$0x3] %vm2125, %v2120
    %2130 = vst.msk [vmem:[%s19 + $0x8] sm:$0x3] %vm2125, %v2121
    %2131 = vst.msk [vmem:[%s19 + $0xa] sm:$0x3] %vm2125, %v2122
    %2132 = vst.msk [vmem:[%s19 + $0xc] sm:$0x3] %vm2125, %v2123
    %2133 = vst.msk [vmem:[%s19 + $0xe] sm:$0x3] %vm2125, %v2124
    %2140 = vrot.lane.b32.xlu0 0.0, 64
    %v2141 = vpop.permute.xlu0 %2140
    %2142 = vrot.lane.b32.xlu0 %v2117, 64
    %v2143 = vpop.permute.xlu0 %2142
    %2144 = vrot.lane.b32.xlu0 %v2118, 64
    %v2145 = vpop.permute.xlu0 %2144
    %2146 = vrot.lane.b32.xlu0 %v2119, 64
    %v2147 = vpop.permute.xlu0 %2146
    %2148 = vrot.lane.b32.xlu0 %v2120, 64
    %v2149 = vpop.permute.xlu0 %2148
    %2150 = vrot.lane.b32.xlu0 %v2121, 64
    %v2151 = vpop.permute.xlu0 %2150
    %2152 = vrot.lane.b32.xlu0 %v2122, 64
    %v2153 = vpop.permute.xlu0 %2152
    %2163 = vrot.lane.b32.xlu0 %v2123, 64
    %v2164 = vpop.permute.xlu0 %2163
    %2165 = vrot.lane.b32.xlu0 %v2124, 64
    %v2166 = vpop.permute.xlu0 %2165
    %v2169 = vsel %vm372, 0.0, %v2141
    %v2170 = vsel %vm372, 0.0, %v2143
    %v2171 = vsel %vm372, %v2117, %v2145
    %v2172 = vsel %vm372, %v2118, %v2147
    %v2173 = vsel %vm372, %v2119, %v2149
    %v2174 = vsel %vm372, %v2120, %v2151
    %v2175 = vsel %vm372, %v2121, %v2153
    %v2176 = vsel %vm372, %v2122, %v2164
    %v2177 = vsel %vm372, %v2123, %v2166
    %v2178 = vsel %vm372, %v2124, %v2141
    %v2179 = vld [vmem:[#allocation7] sm:$0xff]
    %v2180 = vld [vmem:[#allocation7 + $0x8] sm:$0xff]
    %v2181 = vld [vmem:[#allocation7 + $0x10] sm:$0xff]
    %v2182 = vld [vmem:[#allocation7 + $0x18] sm:$0xff]
    %v2183 = vld [vmem:[#allocation7 + $0x20] sm:$0xff]
    %v2184 = vld [vmem:[#allocation7 + $0x28] sm:$0xff]
    %v2185 = vld [vmem:[#allocation7 + $0x30] sm:$0xff]
    %v2186 = vld [vmem:[#allocation7 + $0x38] sm:$0xff]
    %v2187 = vld [vmem:[#allocation7 + $0x40] sm:$0xff]
    %v2188 = vld [vmem:[#allocation7 + $0x48] sm:$0xff]
    %v2189 = vld [vmem:[#allocation7 + $0x50] sm:$0xff]
    %v2190 = vld [vmem:[#allocation7 + $0x58] sm:$0xff]
    %v2191 = vld [vmem:[#allocation7 + $0x60] sm:$0xff]
    %v2192 = vld [vmem:[#allocation7 + $0x68] sm:$0xff]
    %v2193 = vld [vmem:[#allocation7 + $0x70] sm:$0xff]
    %v2194 = vld [vmem:[#allocation7 + $0x78] sm:$0xff]
    %v2195 = vld [vmem:[#allocation7 + $0x80] sm:$0xff]
    %v2196 = vld [vmem:[#allocation7 + $0x88] sm:$0xff]
    %v2197 = vld [vmem:[#allocation7 + $0x90] sm:$0xff]
    %v2198 = vld [vmem:[#allocation7 + $0x98] sm:$0xff]
    %v2199 = vld [vmem:[#allocation7 + $0xa0] sm:$0xff]
    %v2200 = vld [vmem:[#allocation7 + $0xa8] sm:$0xff]
    %v2201 = vld [vmem:[#allocation7 + $0xb0] sm:$0xff]
    %v2202 = vld [vmem:[#allocation7 + $0xb8] sm:$0xff]
    %v2203 = vld [vmem:[#allocation7 + $0xc0] sm:$0xff]
    %v2204 = vld [vmem:[#allocation7 + $0xc8] sm:$0xff]
    %v2205 = vld [vmem:[#allocation7 + $0xd0] sm:$0xff]
    %v2206 = vld [vmem:[#allocation7 + $0xd8] sm:$0xff]
    %v2207 = vld [vmem:[#allocation7 + $0xe0] sm:$0xff]
    %v2208 = vld [vmem:[#allocation7 + $0xe8] sm:$0xff]
    %v2209 = vld [vmem:[#allocation7 + $0xf0] sm:$0xff]
    %v2210 = vld [vmem:[#allocation7 + $0xf8] sm:$0xff]
    %v2211 = vld [vmem:[#allocation7 + $0x100] sm:$0xff]
    %v2212 = vld [vmem:[#allocation7 + $0x108] sm:$0xff]
    %v2213 = vld [vmem:[#allocation7 + $0x110] sm:$0xff]
    %v2214 = vld [vmem:[#allocation7 + $0x118] sm:$0xff]
    %v2215 = vld [vmem:[#allocation7 + $0x120] sm:$0xff]
    %v2216 = vld [vmem:[#allocation7 + $0x128] sm:$0xff]
    %v2217 = vld [vmem:[#allocation7 + $0x130] sm:$0xff]
    %v2218 = vld [vmem:[#allocation7 + $0x138] sm:$0xff]
    %v2219 = vld [vmem:[#allocation7 + $0x140] sm:$0xff]
    %v2220 = vld [vmem:[#allocation7 + $0x148] sm:$0xff]
    %v2221 = vld [vmem:[#allocation7 + $0x150] sm:$0xff]
    %v2222 = vld [vmem:[#allocation7 + $0x158] sm:$0xff]
    %v2223 = vld [vmem:[#allocation7 + $0x160] sm:$0xff]
    %v2224 = vld [vmem:[#allocation7 + $0x168] sm:$0xff]
    %v2225 = vld [vmem:[#allocation7 + $0x170] sm:$0xff]
    %v2226 = vld [vmem:[#allocation7 + $0x178] sm:$0xff]
    %v2227 = vld [vmem:[#allocation7 + $0x180] sm:$0xff]
    %v2228 = vld [vmem:[#allocation7 + $0x188] sm:$0xff]
    %v2229 = vld [vmem:[#allocation7 + $0x190] sm:$0xff]
    %v2230 = vld [vmem:[#allocation7 + $0x198] sm:$0xff]
    %v2231 = vld [vmem:[#allocation7 + $0x1a0] sm:$0xff]
    %v2232 = vld [vmem:[#allocation7 + $0x1a8] sm:$0xff]
    %v2233 = vld [vmem:[#allocation7 + $0x1b0] sm:$0xff]
    %v2234 = vld [vmem:[#allocation7 + $0x1b8] sm:$0xff]
    %v2235 = vld [vmem:[%s12] sm:$0x1]
    %v2237 = vlaneseq
    %v2238 = vshrl.u32 %v2237, 7
    %v2239 = vsub.s32 0, %v2238
    %v2240 = vrot.slane %v2235, %v2239
    %v2251 = vcombine.low %v2169, %v2170
    %v2252 = vcombine.low %v2172, %v2120
    %v2254 = vunpack.c.l.s4 1983009808
    %v2255 = vunpack.c.0.s8 %v2254
    %v2256 = vlaneseq
    %v2257 = vshrl.u32 %v2256, 7
    %v2258 = vsub.s32 %v2255, %v2257
    %v2259 = vrot.slane %v2251, %v2258
    %v2261 = vunpack.c.l.s4 1983009808
    %v2262 = vunpack.c.0.s8 %v2261
    %v2263 = vlaneseq
    %v2264 = vshrl.u32 %v2263, 7
    %v2265 = vsub.s32 %v2262, %v2264
    %v2266 = vrot.slane %v2252, %v2265
    %v2267 = vcombine.low %v2259, %v2266
    %v2268 = vcombine.low %v2169, %v2171
    %v2269 = vcombine.low %v2173, %v2121
    %v2271 = vunpack.c.l.s4 1983009808
    %v2272 = vunpack.c.0.s8 %v2271
    %v2273 = vlaneseq
    %v2274 = vshrl.u32 %v2273, 7
    %v2275 = vsub.s32 %v2272, %v2274
    %v2276 = vrot.slane %v2268, %v2275
    %v2278 = vunpack.c.l.s4 1983009808
    %v2279 = vunpack.c.0.s8 %v2278
    %v2280 = vlaneseq
    %v2281 = vshrl.u32 %v2280, 7
    %v2282 = vsub.s32 %v2279, %v2281
    %v2283 = vrot.slane %v2269, %v2282
    %v2284 = vcombine.low %v2276, %v2283
    %v2285 = vcombine.low %v2170, %v2172
    %v2286 = vcombine.low %v2174, %v2122
    %v2288 = vunpack.c.l.s4 1983009808
    %v2289 = vunpack.c.0.s8 %v2288
    %v2290 = vlaneseq
    %v2291 = vshrl.u32 %v2290, 7
    %v2292 = vsub.s32 %v2289, %v2291
    %v2293 = vrot.slane %v2285, %v2292
    %v2295 = vunpack.c.l.s4 1983009808
    %v2296 = vunpack.c.0.s8 %v2295
    %v2297 = vlaneseq
    %v2298 = vshrl.u32 %v2297, 7
    %v2299 = vsub.s32 %v2296, %v2298
    %v2300 = vrot.slane %v2286, %v2299
    %v2301 = vcombine.low %v2293, %v2300
    %v2302 = vcombine.low %v2171, %v2173
    %v2303 = vcombine.low %v2175, %v2123
    %v2305 = vunpack.c.l.s4 1983009808
    %v2306 = vunpack.c.0.s8 %v2305
    %v2307 = vlaneseq
    %v2308 = vshrl.u32 %v2307, 7
    %v2309 = vsub.s32 %v2306, %v2308
    %v2310 = vrot.slane %v2302, %v2309
    %v2312 = vunpack.c.l.s4 1983009808
    %v2313 = vunpack.c.0.s8 %v2312
    %v2314 = vlaneseq
    %v2315 = vshrl.u32 %v2314, 7
    %v2316 = vsub.s32 %v2313, %v2315
    %v2317 = vrot.slane %v2303, %v2316
    %v2318 = vcombine.low %v2310, %v2317
    %v2319 = vcombine.low %v2172, %v2174
    %v2320 = vcombine.low %v2176, %v2124
    %v2322 = vunpack.c.l.s4 1983009808
    %v2323 = vunpack.c.0.s8 %v2322
    %v2324 = vlaneseq
    %v2325 = vshrl.u32 %v2324, 7
    %v2326 = vsub.s32 %v2323, %v2325
    %v2327 = vrot.slane %v2319, %v2326
    %v2329 = vunpack.c.l.s4 1983009808
    %v2330 = vunpack.c.0.s8 %v2329
    %v2331 = vlaneseq
    %v2332 = vshrl.u32 %v2331, 7
    %v2333 = vsub.s32 %v2330, %v2332
    %v2334 = vrot.slane %v2320, %v2333
    %v2335 = vcombine.low %v2327, %v2334
    %v2336 = vcombine.low %v2173, %v2175
    %v2337 = vcombine.low %v2177, 0.0
    %v2339 = vunpack.c.l.s4 1983009808
    %v2340 = vunpack.c.0.s8 %v2339
    %v2341 = vlaneseq
    %v2342 = vshrl.u32 %v2341, 7
    %v2343 = vsub.s32 %v2340, %v2342
    %v2344 = vrot.slane %v2336, %v2343
    %v2346 = vunpack.c.l.s4 1983009808
    %v2347 = vunpack.c.0.s8 %v2346
    %v2348 = vlaneseq
    %v2349 = vshrl.u32 %v2348, 7
    %v2350 = vsub.s32 %v2347, %v2349
    %v2351 = vrot.slane %v2337, %v2350
    %v2352 = vcombine.low %v2344, %v2351
    %v2353 = vcombine.low %v2174, %v2176
    %v2354 = vcombine.low %v2178, 0.0
    %v2356 = vunpack.c.l.s4 1983009808
    %v2357 = vunpack.c.0.s8 %v2356
    %v2358 = vlaneseq
    %v2359 = vshrl.u32 %v2358, 7
    %v2360 = vsub.s32 %v2357, %v2359
    %v2361 = vrot.slane %v2353, %v2360
    %v2363 = vunpack.c.l.s4 1983009808
    %v2364 = vunpack.c.0.s8 %v2363
    %v2365 = vlaneseq
    %v2366 = vshrl.u32 %v2365, 7
    %v2367 = vsub.s32 %v2364, %v2366
    %v2368 = vrot.slane %v2354, %v2367
    %v2369 = vcombine.low %v2361, %v2368
    %v2370 = vcombine.low %v2175, %v2177
    %v2371 = vcombine.low %v2169, 0.0
    %v2373 = vunpack.c.l.s4 1983009808
    %v2374 = vunpack.c.0.s8 %v2373
    %v2375 = vlaneseq
    %v2376 = vshrl.u32 %v2375, 7
    %v2377 = vsub.s32 %v2374, %v2376
    %v2378 = vrot.slane %v2370, %v2377
    %v2380 = vunpack.c.l.s4 1983009808
    %v2381 = vunpack.c.0.s8 %v2380
    %v2382 = vlaneseq
    %v2383 = vshrl.u32 %v2382, 7
    %v2384 = vsub.s32 %v2381, %v2383
    %v2385 = vrot.slane %v2371, %v2384
    %v2386 = vcombine.low %v2378, %v2385
    %v2387 = vcombine.low %v2267, %v2284
    %v2388 = vcombine.high %v2267, %v2284
    %v2389 = vcombine.low %v2301, %v2318
    %v2390 = vcombine.high %v2301, %v2318
    %v2392 = vunpack.c.l.s4 1983009808
    %v2393 = vunpack.c.0.s8 %v2392
    %v2394 = vlaneseq
    %v2395 = vshrl.u32 %v2394, 7
    %v2396 = vsub.s32 %v2393, %v2395
    %v2397 = vrot.slane %v2387, %v2396
    %v2399 = vunpack.c.l.s4 1983009808
    %v2400 = vunpack.c.0.s8 %v2399
    %v2401 = vlaneseq
    %v2402 = vshrl.u32 %v2401, 7
    %v2403 = vsub.s32 %v2400, %v2402
    %v2404 = vrot.slane %v2388, %v2403
    %v2406 = vunpack.c.l.s4 1983009808
    %v2407 = vunpack.c.0.s8 %v2406
    %v2408 = vlaneseq
    %v2409 = vshrl.u32 %v2408, 7
    %v2410 = vsub.s32 %v2407, %v2409
    %v2411 = vrot.slane %v2389, %v2410
    %v2413 = vunpack.c.l.s4 1983009808
    %v2414 = vunpack.c.0.s8 %v2413
    %v2415 = vlaneseq
    %v2416 = vshrl.u32 %v2415, 7
    %v2417 = vsub.s32 %v2414, %v2416
    %v2418 = vrot.slane %v2390, %v2417
    %v2419 = vcombine.low %v2397, %v2411
    %v2420 = vcombine.high %v2397, %v2411
    %v2421 = vcombine.low %v2404, %v2418
    %v2422 = vcombine.high %v2404, %v2418
    %v2423 = vcombine.low %v2335, %v2352
    %v2424 = vcombine.high %v2335, %v2352
    %v2425 = vcombine.low %v2369, %v2386
    %v2426 = vcombine.high %v2369, %v2386
    %v2428 = vunpack.c.l.s4 1983009808
    %v2429 = vunpack.c.0.s8 %v2428
    %v2430 = vlaneseq
    %v2431 = vshrl.u32 %v2430, 7
    %v2432 = vsub.s32 %v2429, %v2431
    %v2433 = vrot.slane %v2423, %v2432
    %v2435 = vunpack.c.l.s4 1983009808
    %v2436 = vunpack.c.0.s8 %v2435
    %v2437 = vlaneseq
    %v2438 = vshrl.u32 %v2437, 7
    %v2439 = vsub.s32 %v2436, %v2438
    %v2440 = vrot.slane %v2424, %v2439
    %v2442 = vunpack.c.l.s4 1983009808
    %v2443 = vunpack.c.0.s8 %v2442
    %v2444 = vlaneseq
    %v2445 = vshrl.u32 %v2444, 7
    %v2446 = vsub.s32 %v2443, %v2445
    %v2447 = vrot.slane %v2425, %v2446
    %v2449 = vunpack.c.l.s4 1983009808
    %v2450 = vunpack.c.0.s8 %v2449
    %v2451 = vlaneseq
    %v2452 = vshrl.u32 %v2451, 7
    %v2453 = vsub.s32 %v2450, %v2452
    %v2454 = vrot.slane %v2426, %v2453
    %v2455 = vcombine.low %v2433, %v2447
    %v2456 = vcombine.high %v2433, %v2447
    %v2457 = vcombine.low %v2440, %v2454
    %v2458 = vcombine.high %v2440, %v2454
    %v2465 = vcombine.low %v2240, %v2240
    %v2467 = vunpack.c.l.s4 1983009808
    %v2468 = vunpack.c.0.s8 %v2467
    %v2469 = vlaneseq
    %v2470 = vshrl.u32 %v2469, 7
    %v2471 = vsub.s32 %v2468, %v2470
    %v2472 = vrot.slane %v2465, %v2471
    %v2473 = vcombine.low %v2472, %v2472
    %v2475 = vsel %vm372, %v2422, 0
    %v2477 = vsel %vm372, %v2458, 0
    %2479 = vmatprep.subr.mxu0 0.0
    %2480 = vmatpush1.msra.mxu0 %v2194
    %2481 = vmatprep.subr.mxu0 0.0
    %2482 = vmatpush1.msra.mxu0 %v2193
    %2483 = vmatprep.subr.mxu0 0.0
    %2484 = vmatpush1.msra.mxu0 %v2192
    %2485 = vmatprep.subr.mxu0 0.0
    %2486 = vmatpush1.msra.mxu0 %v2191
    %2487 = vmatprep.subr.mxu0 0.0
    %2488 = vmatpush1.msra.mxu0 %v2190
    %2489 = vmatprep.subr.mxu0 0.0
    %2490 = vmatpush1.msra.mxu0 %v2189
    %2491 = vmatprep.subr.mxu0 0.0
    %2492 = vmatpush1.msra.mxu0 %v2188
    %2493 = vmatprep.subr.mxu0 0.0
    %2494 = vmatpush1.msra.mxu0 %v2187
    %2495 = vmatprep.subr.mxu0 0.0
    %2496 = vmatpush1.msra.mxu0 %v2186
    %2497 = vmatprep.subr.mxu0 0.0
    %2498 = vmatpush1.msra.mxu0 %v2185
    %2499 = vmatprep.subr.mxu0 0.0
    %2500 = vmatpush1.msra.mxu0 %v2184
    %2501 = vmatprep.subr.mxu0 0.0
    %2502 = vmatpush1.msra.mxu0 %v2183
    %2503 = vmatprep.subr.mxu0 0.0
    %2504 = vmatpush1.msra.mxu0 %v2182
    %2505 = vmatprep.subr.mxu0 0.0
    %2506 = vmatpush1.msra.mxu0 %v2181
    %2507 = vmatprep.subr.mxu0 0.0
    %2508 = vmatpush1.msra.mxu0 %v2180
    %2509 = vmatprep.subr.mxu0 0.0
    %2510 = vmatpush1.msra.mxu0 %v2179
    %2511 = vmatprep.subr.mxu0 0.0
    %2512 = vmatpush2.msra.mxu0 %v2210
    %2513 = vmatprep.subr.mxu0 0.0
    %2514 = vmatpush2.msra.mxu0 %v2209
    %2515 = vmatprep.subr.mxu0 0.0
    %2516 = vmatpush2.msra.mxu0 %v2208
    %2517 = vmatprep.subr.mxu0 0.0
    %2518 = vmatpush2.msra.mxu0 %v2207
    %2519 = vmatprep.subr.mxu0 0.0
    %2520 = vmatpush2.msra.mxu0 %v2206
    %2521 = vmatprep.subr.mxu0 0.0
    %2522 = vmatpush2.msra.mxu0 %v2205
    %2523 = vmatprep.subr.mxu0 0.0
    %2524 = vmatpush2.msra.mxu0 %v2204
    %2525 = vmatprep.subr.mxu0 0.0
    %2526 = vmatpush2.msra.mxu0 %v2203
    %2527 = vmatprep.subr.mxu0 0.0
    %2528 = vmatpush2.msra.mxu0 %v2202
    %2529 = vmatprep.subr.mxu0 0.0
    %2530 = vmatpush2.msra.mxu0 %v2201
    %2531 = vmatprep.subr.mxu0 0.0
    %2532 = vmatpush2.msra.mxu0 %v2200
    %2533 = vmatprep.subr.mxu0 0.0
    %2534 = vmatpush2.msra.mxu0 %v2199
    %2535 = vmatprep.subr.mxu0 0.0
    %2536 = vmatpush2.msra.mxu0 %v2198
    %2537 = vmatprep.subr.mxu0 0.0
    %2538 = vmatpush2.msra.mxu0 %v2197
    %2539 = vmatprep.subr.mxu0 0.0
    %2540 = vmatpush2.msra.mxu0 %v2196
    %2541 = vmatprep.subr.mxu0 0.0
    %2542 = vmatpush2.msra.mxu0 %v2195
    %2543 = vmatprep.mubr.f32.mxu0 %v2420
    %2544 = vmatmul.mubr.f32.gmra.mxu0 %v2419
    %v2545 = vpop.f32.mrf.mxu0
    %v2546 = vadd.f32 %v2473, %v2545
    %v2547 = vpop.f32.mrf.mxu0
    %2548 = vmatprep.mubr.f32.mxu0 %v2456
    %2549 = vmatmul.mubr.f32.gmra.mxu0 %v2455
    %v2550 = vpop.f32.mrf.mxu0
    %v2551 = vadd.f32 %v2473, %v2550
    %v2552 = vpop.f32.mrf.mxu0
    %2553 = vdwg.mxu0
    %2554 = vmatprep.subr.mxu0 0.0
    %2555 = vmatpush1.msra.mxu0 %v2226
    %2556 = vmatprep.subr.mxu0 0.0
    %2557 = vmatpush1.msra.mxu0 %v2225
    %2558 = vmatprep.subr.mxu0 0.0
    %2559 = vmatpush1.msra.mxu0 %v2224
    %2560 = vmatprep.subr.mxu0 0.0
    %2561 = vmatpush1.msra.mxu0 %v2223
    %2562 = vmatprep.subr.mxu0 0.0
    %2563 = vmatpush1.msra.mxu0 %v2222
    %2564 = vmatprep.subr.mxu0 0.0
    %2565 = vmatpush1.msra.mxu0 %v2221
    %2566 = vmatprep.subr.mxu0 0.0
    %2567 = vmatpush1.msra.mxu0 %v2220
    %2568 = vmatprep.subr.mxu0 0.0
    %2569 = vmatpush1.msra.mxu0 %v2219
    %2570 = vmatprep.subr.mxu0 0.0
    %2571 = vmatpush1.msra.mxu0 %v2218
    %2572 = vmatprep.subr.mxu0 0.0
    %2573 = vmatpush1.msra.mxu0 %v2217
    %2574 = vmatprep.subr.mxu0 0.0
    %2575 = vmatpush1.msra.mxu0 %v2216
    %2576 = vmatprep.subr.mxu0 0.0
    %2577 = vmatpush1.msra.mxu0 %v2215
    %2578 = vmatprep.subr.mxu0 0.0
    %2579 = vmatpush1.msra.mxu0 %v2214
    %2580 = vmatprep.subr.mxu0 0.0
    %2581 = vmatpush1.msra.mxu0 %v2213
    %2582 = vmatprep.subr.mxu0 0.0
    %2583 = vmatpush1.msra.mxu0 %v2212
    %2584 = vmatprep.subr.mxu0 0.0
    %2585 = vmatpush1.msra.mxu0 %v2211
    %2586 = vmatprep.subr.mxu0 0.0
    %2587 = vmatpush2.msra.mxu0 0.0
    %2588 = vmatprep.subr.mxu0 0.0
    %2589 = vmatpush2.msra.mxu0 0.0
    %2590 = vmatprep.subr.mxu0 0.0
    %2591 = vmatpush2.msra.mxu0 0.0
    %2592 = vmatprep.subr.mxu0 0.0
    %2593 = vmatpush2.msra.mxu0 0.0
    %2594 = vmatprep.subr.mxu0 0.0
    %2595 = vmatpush2.msra.mxu0 0.0
    %2596 = vmatprep.subr.mxu0 0.0
    %2597 = vmatpush2.msra.mxu0 0.0
    %2598 = vmatprep.subr.mxu0 0.0
    %2599 = vmatpush2.msra.mxu0 0.0
    %2600 = vmatprep.subr.mxu0 0.0
    %2601 = vmatpush2.msra.mxu0 0.0
    %2602 = vmatprep.subr.mxu0 0.0
    %2603 = vmatpush2.msra.mxu0 %v2234
    %2604 = vmatprep.subr.mxu0 0.0
    %2605 = vmatpush2.msra.mxu0 %v2233
    %2606 = vmatprep.subr.mxu0 0.0
    %2607 = vmatpush2.msra.mxu0 %v2232
    %2608 = vmatprep.subr.mxu0 0.0
    %2609 = vmatpush2.msra.mxu0 %v2231
    %2610 = vmatprep.subr.mxu0 0.0
    %2611 = vmatpush2.msra.mxu0 %v2230
    %2612 = vmatprep.subr.mxu0 0.0
    %2613 = vmatpush2.msra.mxu0 %v2229
    %2614 = vmatprep.subr.mxu0 0.0
    %2615 = vmatpush2.msra.mxu0 %v2228
    %2616 = vmatprep.subr.mxu0 0.0
    %2617 = vmatpush2.msra.mxu0 %v2227
    %2618 = vmatprep.mubr.f32.mxu0 %v2475
    %2619 = vmatmul.mubr.f32.gmra.mxu0 %v2421
    %v2620 = vpop.f32.mrf.mxu0
    %v2621 = vadd.f32 %v2546, %v2620
    %v2622 = vpop.f32.mrf.mxu0
    %2623 = vmatprep.mubr.f32.mxu0 %v2477
    %2624 = vmatmul.mubr.f32.gmra.mxu0 %v2457
    %v2625 = vpop.f32.mrf.mxu0
    %v2626 = vadd.f32 %v2551, %v2625
    %v2627 = vpop.f32.mrf.mxu0
    %2628 = vdwg.mxu0
    %v2631 = vcombine.high %v2621, %v2621
    %v2633 = vunpack.c.l.s4 1983009808
    %v2634 = vunpack.c.0.s8 %v2633
    %v2635 = vlaneseq
    %v2636 = vshrl.u32 %v2635, 7
    %v2637 = vsub.s32 %v2634, %v2636
    %v2638 = vrot.slane %v2621, %v2637
    %v2640 = vunpack.c.l.s4 1983009808
    %v2641 = vunpack.c.0.s8 %v2640
    %v2642 = vlaneseq
    %v2643 = vshrl.u32 %v2642, 7
    %v2644 = vsub.s32 %v2641, %v2643
    %v2645 = vrot.slane %v2631, %v2644
    %v2646 = vcombine.high %v2638, %v2638
    %v2647 = vcombine.high %v2645, %v2645
    %v2648 = vcombine.high %v2626, %v2626
    %v2650 = vunpack.c.l.s4 1983009808
    %v2651 = vunpack.c.0.s8 %v2650
    %v2652 = vlaneseq
    %v2653 = vshrl.u32 %v2652, 7
    %v2654 = vsub.s32 %v2651, %v2653
    %v2655 = vrot.slane %v2626, %v2654
    %v2657 = vunpack.c.l.s4 1983009808
    %v2658 = vunpack.c.0.s8 %v2657
    %v2659 = vlaneseq
    %v2660 = vshrl.u32 %v2659, 7
    %v2661 = vsub.s32 %v2658, %v2660
    %v2662 = vrot.slane %v2648, %v2661
    %v2663 = vcombine.high %v2655, %v2655
    %v2664 = vcombine.high %v2662, %v2662
    %v2673 = vmax.f32 %v2638, 0.0
    %v2674 = vmax.f32 %v2646, 0.0
    %v2675 = vmax.f32 %v2645, 0.0
    %v2676 = vmax.f32 %v2647, 0.0
    %v2677 = vmax.f32 %v2655, 0.0
    %v2678 = vmax.f32 %v2663, 0.0
    %v2679 = vmax.f32 %v2662, 0.0
    %v2680 = vmax.f32 %v2664, 0.0
    %v2681 = vld [vmem:[#allocation9] sm:$0xff]
    %v2682 = vld [vmem:[#allocation9 + $0x8] sm:$0xff]
    %v2683 = vld [vmem:[#allocation9 + $0x10] sm:$0xff]
    %v2684 = vld [vmem:[#allocation9 + $0x18] sm:$0xff]
    %v2685 = vld [vmem:[#allocation9 + $0x20] sm:$0xff]
    %v2686 = vld [vmem:[#allocation9 + $0x28] sm:$0xff]
    %v2687 = vld [vmem:[#allocation9 + $0x30] sm:$0xff]
    %v2688 = vld [vmem:[#allocation9 + $0x38] sm:$0xff]
    %v2689 = vld [vmem:[#allocation9 + $0x40] sm:$0xff]
    %v2690 = vld [vmem:[#allocation9 + $0x48] sm:$0xff]
    %v2691 = vld [vmem:[#allocation9 + $0x50] sm:$0xff]
    %v2692 = vld [vmem:[#allocation9 + $0x58] sm:$0xff]
    %v2693 = vld [vmem:[#allocation9 + $0x60] sm:$0xff]
    %v2694 = vld [vmem:[#allocation9 + $0x68] sm:$0xff]
    %v2695 = vld [vmem:[#allocation9 + $0x70] sm:$0xff]
    %v2696 = vld [vmem:[#allocation9 + $0x78] sm:$0xff]
    %v2697 = vld [vmem:[#allocation9 + $0x80] sm:$0xff]
    %v2698 = vld [vmem:[#allocation9 + $0x88] sm:$0xff]
    %v2699 = vld [vmem:[#allocation9 + $0x90] sm:$0xff]
    %v2700 = vld [vmem:[#allocation9 + $0x98] sm:$0xff]
    %v2701 = vld [vmem:[#allocation9 + $0xa0] sm:$0xff]
    %v2702 = vld [vmem:[#allocation9 + $0xa8] sm:$0xff]
    %v2703 = vld [vmem:[#allocation9 + $0xb0] sm:$0xff]
    %v2704 = vld [vmem:[#allocation9 + $0xb8] sm:$0xff]
    %v2705 = vld [vmem:[#allocation9 + $0xc0] sm:$0xff]
    %v2706 = vld [vmem:[#allocation9 + $0xc8] sm:$0xff]
    %v2707 = vld [vmem:[#allocation9 + $0xd0] sm:$0xff]
    %v2708 = vld [vmem:[#allocation9 + $0xd8] sm:$0xff]
    %v2709 = vld [vmem:[#allocation9 + $0xe0] sm:$0xff]
    %v2710 = vld [vmem:[#allocation9 + $0xe8] sm:$0xff]
    %v2711 = vld [vmem:[#allocation9 + $0xf0] sm:$0xff]
    %v2712 = vld [vmem:[#allocation9 + $0xf8] sm:$0xff]
    %v2713 = vld [vmem:[#allocation9 + $0x100] sm:$0xff]
    %v2714 = vld [vmem:[#allocation9 + $0x108] sm:$0xff]
    %v2715 = vld [vmem:[#allocation9 + $0x110] sm:$0xff]
    %v2716 = vld [vmem:[#allocation9 + $0x118] sm:$0xff]
    %v2717 = vld [vmem:[#allocation9 + $0x120] sm:$0xff]
    %v2718 = vld [vmem:[#allocation9 + $0x128] sm:$0xff]
    %v2719 = vld [vmem:[#allocation9 + $0x130] sm:$0xff]
    %v2720 = vld [vmem:[#allocation9 + $0x138] sm:$0xff]
    %v2721 = vld [vmem:[#allocation9 + $0x140] sm:$0xff]
    %v2722 = vld [vmem:[#allocation9 + $0x148] sm:$0xff]
    %v2723 = vld [vmem:[#allocation9 + $0x150] sm:$0xff]
    %v2724 = vld [vmem:[#allocation9 + $0x158] sm:$0xff]
    %v2725 = vld [vmem:[#allocation9 + $0x160] sm:$0xff]
    %v2726 = vld [vmem:[#allocation9 + $0x168] sm:$0xff]
    %v2727 = vld [vmem:[#allocation9 + $0x170] sm:$0xff]
    %v2728 = vld [vmem:[#allocation9 + $0x178] sm:$0xff]
    %v2729 = vld [vmem:[%s14] sm:$0x1]
    %v2731 = vlaneseq
    %v2732 = vshrl.u32 %v2731, 7
    %v2733 = vsub.s32 0, %v2732
    %v2734 = vrot.slane %v2729, %v2733
    %v2743 = vcombine.low 0.0, %v2673
    %v2745 = vunpack.c.l.s4 1983009808
    %v2746 = vunpack.c.0.s8 %v2745
    %v2747 = vlaneseq
    %v2748 = vshrl.u32 %v2747, 7
    %v2749 = vsub.s32 %v2746, %v2748
    %v2750 = vrot.slane %v2743, %v2749
    %v2752 = vunpack.c.l.s4 1983009808
    %v2753 = vunpack.c.0.s8 %v2752
    %v2754 = vlaneseq
    %v2755 = vshrl.u32 %v2754, 7
    %v2756 = vsub.s32 %v2753, %v2755
    %v2757 = vrot.slane %v2674, %v2756
    %v2758 = vcombine.low %v2750, %v2757
    %v2759 = vcombine.low %v2673, %v2674
    %v2761 = vunpack.c.l.s4 1983009808
    %v2762 = vunpack.c.0.s8 %v2761
    %v2763 = vlaneseq
    %v2764 = vshrl.u32 %v2763, 7
    %v2765 = vsub.s32 %v2762, %v2764
    %v2766 = vrot.slane %v2759, %v2765
    %v2768 = vunpack.c.l.s4 1983009808
    %v2769 = vunpack.c.0.s8 %v2768
    %v2770 = vlaneseq
    %v2771 = vshrl.u32 %v2770, 7
    %v2772 = vsub.s32 %v2769, %v2771
    %v2773 = vrot.slane %v2675, %v2772
    %v2774 = vcombine.low %v2766, %v2773
    %v2775 = vcombine.low %v2674, %v2675
    %v2777 = vunpack.c.l.s4 1983009808
    %v2778 = vunpack.c.0.s8 %v2777
    %v2779 = vlaneseq
    %v2780 = vshrl.u32 %v2779, 7
    %v2781 = vsub.s32 %v2778, %v2780
    %v2782 = vrot.slane %v2775, %v2781
    %v2784 = vunpack.c.l.s4 1983009808
    %v2785 = vunpack.c.0.s8 %v2784
    %v2786 = vlaneseq
    %v2787 = vshrl.u32 %v2786, 7
    %v2788 = vsub.s32 %v2785, %v2787
    %v2789 = vrot.slane %v2676, %v2788
    %v2790 = vcombine.low %v2782, %v2789
    %v2791 = vcombine.low %v2675, %v2676
    %v2793 = vunpack.c.l.s4 1983009808
    %v2794 = vunpack.c.0.s8 %v2793
    %v2795 = vlaneseq
    %v2796 = vshrl.u32 %v2795, 7
    %v2797 = vsub.s32 %v2794, %v2796
    %v2798 = vrot.slane %v2791, %v2797
    %v2800 = vunpack.c.l.s4 1983009808
    %v2801 = vunpack.c.0.s8 %v2800
    %v2802 = vlaneseq
    %v2803 = vshrl.u32 %v2802, 7
    %v2804 = vsub.s32 %v2801, %v2803
    %v2805 = vrot.slane %v2677, %v2804
    %v2806 = vcombine.low %v2798, %v2805
    %v2807 = vcombine.low %v2676, %v2677
    %v2809 = vunpack.c.l.s4 1983009808
    %v2810 = vunpack.c.0.s8 %v2809
    %v2811 = vlaneseq
    %v2812 = vshrl.u32 %v2811, 7
    %v2813 = vsub.s32 %v2810, %v2812
    %v2814 = vrot.slane %v2807, %v2813
    %v2816 = vunpack.c.l.s4 1983009808
    %v2817 = vunpack.c.0.s8 %v2816
    %v2818 = vlaneseq
    %v2819 = vshrl.u32 %v2818, 7
    %v2820 = vsub.s32 %v2817, %v2819
    %v2821 = vrot.slane %v2678, %v2820
    %v2822 = vcombine.low %v2814, %v2821
    %v2823 = vcombine.low %v2677, %v2678
    %v2825 = vunpack.c.l.s4 1983009808
    %v2826 = vunpack.c.0.s8 %v2825
    %v2827 = vlaneseq
    %v2828 = vshrl.u32 %v2827, 7
    %v2829 = vsub.s32 %v2826, %v2828
    %v2830 = vrot.slane %v2823, %v2829
    %v2832 = vunpack.c.l.s4 1983009808
    %v2833 = vunpack.c.0.s8 %v2832
    %v2834 = vlaneseq
    %v2835 = vshrl.u32 %v2834, 7
    %v2836 = vsub.s32 %v2833, %v2835
    %v2837 = vrot.slane %v2679, %v2836
    %v2838 = vcombine.low %v2830, %v2837
    %v2839 = vcombine.low %v2678, %v2679
    %v2841 = vunpack.c.l.s4 1983009808
    %v2842 = vunpack.c.0.s8 %v2841
    %v2843 = vlaneseq
    %v2844 = vshrl.u32 %v2843, 7
    %v2845 = vsub.s32 %v2842, %v2844
    %v2846 = vrot.slane %v2839, %v2845
    %v2848 = vunpack.c.l.s4 1983009808
    %v2849 = vunpack.c.0.s8 %v2848
    %v2850 = vlaneseq
    %v2851 = vshrl.u32 %v2850, 7
    %v2852 = vsub.s32 %v2849, %v2851
    %v2853 = vrot.slane %v2680, %v2852
    %v2854 = vcombine.low %v2846, %v2853
    %v2855 = vcombine.low %v2679, %v2680
    %v2857 = vunpack.c.l.s4 1983009808
    %v2858 = vunpack.c.0.s8 %v2857
    %v2859 = vlaneseq
    %v2860 = vshrl.u32 %v2859, 7
    %v2861 = vsub.s32 %v2858, %v2860
    %v2862 = vrot.slane %v2855, %v2861
    %v2864 = vunpack.c.l.s4 1983009808
    %v2865 = vunpack.c.0.s8 %v2864
    %v2866 = vlaneseq
    %v2867 = vshrl.u32 %v2866, 7
    %v2868 = vsub.s32 %v2865, %v2867
    %v2869 = vrot.slane 0.0, %v2868
    %v2870 = vcombine.low %v2862, %v2869
    %v2871 = vcombine.low %v2758, %v2774
    %v2872 = vcombine.high %v2758, %v2774
    %v2873 = vcombine.low %v2790, %v2806
    %v2874 = vcombine.high %v2790, %v2806
    %v2876 = vunpack.c.l.s4 1983009808
    %v2877 = vunpack.c.0.s8 %v2876
    %v2878 = vlaneseq
    %v2879 = vshrl.u32 %v2878, 7
    %v2880 = vsub.s32 %v2877, %v2879
    %v2881 = vrot.slane %v2871, %v2880
    %v2883 = vunpack.c.l.s4 1983009808
    %v2884 = vunpack.c.0.s8 %v2883
    %v2885 = vlaneseq
    %v2886 = vshrl.u32 %v2885, 7
    %v2887 = vsub.s32 %v2884, %v2886
    %v2888 = vrot.slane %v2872, %v2887
    %v2890 = vunpack.c.l.s4 1983009808
    %v2891 = vunpack.c.0.s8 %v2890
    %v2892 = vlaneseq
    %v2893 = vshrl.u32 %v2892, 7
    %v2894 = vsub.s32 %v2891, %v2893
    %v2895 = vrot.slane %v2873, %v2894
    %v2897 = vunpack.c.l.s4 1983009808
    %v2898 = vunpack.c.0.s8 %v2897
    %v2899 = vlaneseq
    %v2900 = vshrl.u32 %v2899, 7
    %v2901 = vsub.s32 %v2898, %v2900
    %v2902 = vrot.slane %v2874, %v2901
    %v2903 = vcombine.low %v2881, %v2895
    %v2904 = vcombine.high %v2881, %v2895
    %v2905 = vcombine.low %v2888, %v2902
    %v2906 = vcombine.low %v2822, %v2838
    %v2907 = vcombine.high %v2822, %v2838
    %v2908 = vcombine.low %v2854, %v2870
    %v2909 = vcombine.high %v2854, %v2870
    %v2911 = vunpack.c.l.s4 1983009808
    %v2912 = vunpack.c.0.s8 %v2911
    %v2913 = vlaneseq
    %v2914 = vshrl.u32 %v2913, 7
    %v2915 = vsub.s32 %v2912, %v2914
    %v2916 = vrot.slane %v2906, %v2915
    %v2918 = vunpack.c.l.s4 1983009808
    %v2919 = vunpack.c.0.s8 %v2918
    %v2920 = vlaneseq
    %v2921 = vshrl.u32 %v2920, 7
    %v2922 = vsub.s32 %v2919, %v2921
    %v2923 = vrot.slane %v2907, %v2922
    %v2925 = vunpack.c.l.s4 1983009808
    %v2926 = vunpack.c.0.s8 %v2925
    %v2927 = vlaneseq
    %v2928 = vshrl.u32 %v2927, 7
    %v2929 = vsub.s32 %v2926, %v2928
    %v2930 = vrot.slane %v2908, %v2929
    %v2932 = vunpack.c.l.s4 1983009808
    %v2933 = vunpack.c.0.s8 %v2932
    %v2934 = vlaneseq
    %v2935 = vshrl.u32 %v2934, 7
    %v2936 = vsub.s32 %v2933, %v2935
    %v2937 = vrot.slane %v2909, %v2936
    %v2938 = vcombine.low %v2916, %v2930
    %v2939 = vcombine.high %v2916, %v2930
    %v2940 = vcombine.low %v2923, %v2937
    %v2947 = vcombine.low %v2734, %v2734
    %v2949 = vunpack.c.l.s4 1983009808
    %v2950 = vunpack.c.0.s8 %v2949
    %v2951 = vlaneseq
    %v2952 = vshrl.u32 %v2951, 7
    %v2953 = vsub.s32 %v2950, %v2952
    %v2954 = vrot.slane %v2947, %v2953
    %v2955 = vcombine.low %v2954, %v2954
    %2957 = vmatprep.subr.mxu0 0.0
    %2958 = vmatpush1.msra.mxu0 %v2696
    %2959 = vmatprep.subr.mxu0 0.0
    %2960 = vmatpush1.msra.mxu0 %v2695
    %2961 = vmatprep.subr.mxu0 0.0
    %2962 = vmatpush1.msra.mxu0 %v2694
    %2963 = vmatprep.subr.mxu0 0.0
    %2964 = vmatpush1.msra.mxu0 %v2693
    %2965 = vmatprep.subr.mxu0 0.0
    %2966 = vmatpush1.msra.mxu0 %v2692
    %2967 = vmatprep.subr.mxu0 0.0
    %2968 = vmatpush1.msra.mxu0 %v2691
    %2969 = vmatprep.subr.mxu0 0.0
    %2970 = vmatpush1.msra.mxu0 %v2690
    %2971 = vmatprep.subr.mxu0 0.0
    %2972 = vmatpush1.msra.mxu0 %v2689
    %2973 = vmatprep.subr.mxu0 0.0
    %2974 = vmatpush1.msra.mxu0 %v2688
    %2975 = vmatprep.subr.mxu0 0.0
    %2976 = vmatpush1.msra.mxu0 %v2687
    %2977 = vmatprep.subr.mxu0 0.0
    %2978 = vmatpush1.msra.mxu0 %v2686
    %2979 = vmatprep.subr.mxu0 0.0
    %2980 = vmatpush1.msra.mxu0 %v2685
    %2981 = vmatprep.subr.mxu0 0.0
    %2982 = vmatpush1.msra.mxu0 %v2684
    %2983 = vmatprep.subr.mxu0 0.0
    %2984 = vmatpush1.msra.mxu0 %v2683
    %2985 = vmatprep.subr.mxu0 0.0
    %2986 = vmatpush1.msra.mxu0 %v2682
    %2987 = vmatprep.subr.mxu0 0.0
    %2988 = vmatpush1.msra.mxu0 %v2681
    %2989 = vmatprep.subr.mxu0 0.0
    %2990 = vmatpush2.msra.mxu0 %v2712
    %2991 = vmatprep.subr.mxu0 0.0
    %2992 = vmatpush2.msra.mxu0 %v2711
    %2993 = vmatprep.subr.mxu0 0.0
    %2994 = vmatpush2.msra.mxu0 %v2710
    %2995 = vmatprep.subr.mxu0 0.0
    %2996 = vmatpush2.msra.mxu0 %v2709
    %2997 = vmatprep.subr.mxu0 0.0
    %2998 = vmatpush2.msra.mxu0 %v2708
    %2999 = vmatprep.subr.mxu0 0.0
    %3000 = vmatpush2.msra.mxu0 %v2707
    %3001 = vmatprep.subr.mxu0 0.0
    %3002 = vmatpush2.msra.mxu0 %v2706
    %3003 = vmatprep.subr.mxu0 0.0
    %3004 = vmatpush2.msra.mxu0 %v2705
    %3005 = vmatprep.subr.mxu0 0.0
    %3006 = vmatpush2.msra.mxu0 %v2704
    %3007 = vmatprep.subr.mxu0 0.0
    %3008 = vmatpush2.msra.mxu0 %v2703
    %3009 = vmatprep.subr.mxu0 0.0
    %3010 = vmatpush2.msra.mxu0 %v2702
    %3011 = vmatprep.subr.mxu0 0.0
    %3012 = vmatpush2.msra.mxu0 %v2701
    %3013 = vmatprep.subr.mxu0 0.0
    %3014 = vmatpush2.msra.mxu0 %v2700
    %3015 = vmatprep.subr.mxu0 0.0
    %3016 = vmatpush2.msra.mxu0 %v2699
    %3017 = vmatprep.subr.mxu0 0.0
    %3018 = vmatpush2.msra.mxu0 %v2698
    %3019 = vmatprep.subr.mxu0 0.0
    %3020 = vmatpush2.msra.mxu0 %v2697
    %3021 = vmatprep.mubr.f32.mxu0 %v2904
    %3022 = vmatmul.mubr.f32.gmra.mxu0 %v2903
    %v3023 = vpop.f32.mrf.mxu0
    %v3024 = vadd.f32 %v2955, %v3023
    %v3025 = vpop.f32.mrf.mxu0
    %3026 = vmatprep.mubr.f32.mxu0 %v2939
    %3027 = vmatmul.mubr.f32.gmra.mxu0 %v2938
    %v3028 = vpop.f32.mrf.mxu0
    %v3029 = vadd.f32 %v2955, %v3028
    %v3030 = vpop.f32.mrf.mxu0
    %3031 = vdwg.mxu0
    %3032 = vmatprep.subr.mxu0 0.0
    %3033 = vmatpush1.msra.mxu0 %v2728
    %3034 = vmatprep.subr.mxu0 0.0
    %3035 = vmatpush1.msra.mxu0 %v2727
    %3036 = vmatprep.subr.mxu0 0.0
    %3037 = vmatpush1.msra.mxu0 %v2726
    %3038 = vmatprep.subr.mxu0 0.0
    %3039 = vmatpush1.msra.mxu0 %v2725
    %3040 = vmatprep.subr.mxu0 0.0
    %3041 = vmatpush1.msra.mxu0 %v2724
    %3042 = vmatprep.subr.mxu0 0.0
    %3043 = vmatpush1.msra.mxu0 %v2723
    %3044 = vmatprep.subr.mxu0 0.0
    %3045 = vmatpush1.msra.mxu0 %v2722
    %3046 = vmatprep.subr.mxu0 0.0
    %3047 = vmatpush1.msra.mxu0 %v2721
    %3048 = vmatprep.subr.mxu0 0.0
    %3049 = vmatpush1.msra.mxu0 %v2720
    %3050 = vmatprep.subr.mxu0 0.0
    %3051 = vmatpush1.msra.mxu0 %v2719
    %3052 = vmatprep.subr.mxu0 0.0
    %3053 = vmatpush1.msra.mxu0 %v2718
    %3054 = vmatprep.subr.mxu0 0.0
    %3055 = vmatpush1.msra.mxu0 %v2717
    %3056 = vmatprep.subr.mxu0 0.0
    %3057 = vmatpush1.msra.mxu0 %v2716
    %3058 = vmatprep.subr.mxu0 0.0
    %3059 = vmatpush1.msra.mxu0 %v2715
    %3060 = vmatprep.subr.mxu0 0.0
    %3061 = vmatpush1.msra.mxu0 %v2714
    %3062 = vmatprep.subr.mxu0 0.0
    %3063 = vmatpush1.msra.mxu0 %v2713
    %3064 = vmatprep.subr.mxu0 0.0
    %3065 = vmatpush2.msra.mxu0 0.0
    %3066 = vmatprep.subr.mxu0 0.0
    %3067 = vmatpush2.msra.mxu0 0.0
    %3068 = vmatprep.subr.mxu0 0.0
    %3069 = vmatpush2.msra.mxu0 0.0
    %3070 = vmatprep.subr.mxu0 0.0
    %3071 = vmatpush2.msra.mxu0 0.0
    %3072 = vmatprep.subr.mxu0 0.0
    %3073 = vmatpush2.msra.mxu0 0.0
    %3074 = vmatprep.subr.mxu0 0.0
    %3075 = vmatpush2.msra.mxu0 0.0
    %3076 = vmatprep.subr.mxu0 0.0
    %3077 = vmatpush2.msra.mxu0 0.0
    %3078 = vmatprep.subr.mxu0 0.0
    %3079 = vmatpush2.msra.mxu0 0.0
    %3080 = vmatprep.subr.mxu0 0.0
    %3081 = vmatpush2.msra.mxu0 0.0
    %3082 = vmatprep.subr.mxu0 0.0
    %3083 = vmatpush2.msra.mxu0 0.0
    %3084 = vmatprep.subr.mxu0 0.0
    %3085 = vmatpush2.msra.mxu0 0.0
    %3086 = vmatprep.subr.mxu0 0.0
    %3087 = vmatpush2.msra.mxu0 0.0
    %3088 = vmatprep.subr.mxu0 0.0
    %3089 = vmatpush2.msra.mxu0 0.0
    %3090 = vmatprep.subr.mxu0 0.0
    %3091 = vmatpush2.msra.mxu0 0.0
    %3092 = vmatprep.subr.mxu0 0.0
    %3093 = vmatpush2.msra.mxu0 0.0
    %3094 = vmatprep.subr.mxu0 0.0
    %3095 = vmatpush2.msra.mxu0 0.0
    %3096 = vmatprep.mubr.f32.mxu0 0.0
    %3097 = vmatmul.mubr.f32.gmra.mxu0 %v2905
    %v3098 = vpop.f32.mrf.mxu0
    %v3099 = vadd.f32 %v3024, %v3098
    %v3100 = vpop.f32.mrf.mxu0
    %3101 = vmatprep.mubr.f32.mxu0 0.0
    %3102 = vmatmul.mubr.f32.gmra.mxu0 %v2940
    %v3103 = vpop.f32.mrf.mxu0
    %v3104 = vadd.f32 %v3029, %v3103
    %v3105 = vpop.f32.mrf.mxu0
    %3106 = vdwg.mxu0
    %v3109 = vcombine.high %v3099, %v3099
    %v3111 = vunpack.c.l.s4 1983009808
    %v3112 = vunpack.c.0.s8 %v3111
    %v3113 = vlaneseq
    %v3114 = vshrl.u32 %v3113, 7
    %v3115 = vsub.s32 %v3112, %v3114
    %v3116 = vrot.slane %v3099, %v3115
    %v3118 = vunpack.c.l.s4 1983009808
    %v3119 = vunpack.c.0.s8 %v3118
    %v3120 = vlaneseq
    %v3121 = vshrl.u32 %v3120, 7
    %v3122 = vsub.s32 %v3119, %v3121
    %v3123 = vrot.slane %v3109, %v3122
    %v3124 = vcombine.high %v3116, %v3116
    %v3125 = vcombine.high %v3123, %v3123
    %v3126 = vcombine.high %v3104, %v3104
    %v3128 = vunpack.c.l.s4 1983009808
    %v3129 = vunpack.c.0.s8 %v3128
    %v3130 = vlaneseq
    %v3131 = vshrl.u32 %v3130, 7
    %v3132 = vsub.s32 %v3129, %v3131
    %v3133 = vrot.slane %v3104, %v3132
    %v3135 = vunpack.c.l.s4 1983009808
    %v3136 = vunpack.c.0.s8 %v3135
    %v3137 = vlaneseq
    %v3138 = vshrl.u32 %v3137, 7
    %v3139 = vsub.s32 %v3136, %v3138
    %v3140 = vrot.slane %v3126, %v3139
    %v3141 = vcombine.high %v3133, %v3133
    %v3142 = vcombine.high %v3140, %v3140
    %v3151 = vmax.f32 %v3116, 0.0
    %v3152 = vmax.f32 %v3124, 0.0
    %v3153 = vmax.f32 %v3123, 0.0
    %v3154 = vmax.f32 %v3125, 0.0
    %v3155 = vmax.f32 %v3133, 0.0
    %v3156 = vmax.f32 %v3141, 0.0
    %v3157 = vmax.f32 %v3140, 0.0
    %v3158 = vmax.f32 %v3142, 0.0
    %v3159 = vsel %vm372, %v2117, %v2143
    %v3160 = vsel %vm372, %v2118, %v2145
    %v3161 = vsel %vm372, %v2119, %v2147
    %v3162 = vsel %vm372, %v2120, %v2149
    %v3163 = vsel %vm372, %v2121, %v2151
    %v3164 = vsel %vm372, %v2122, %v2153
    %v3165 = vsel %vm372, %v2123, %v2164
    %v3166 = vsel %vm372, %v2124, %v2166
    %v3167 = vadd.f32 %v3151, %v3159
    %v3168 = vadd.f32 %v3152, %v3160
    %v3169 = vadd.f32 %v3153, %v3161
    %v3170 = vadd.f32 %v3154, %v3162
    %v3171 = vadd.f32 %v3155, %v3163
    %v3172 = vadd.f32 %v3156, %v3164
    %v3173 = vadd.f32 %v3157, %v3165
    %v3174 = vadd.f32 %v3158, %v3166
    %v3175 = vadd.f32 %v3167, %v3168
    %v3176 = vadd.f32 %v3175, %v3169
    %v3177 = vadd.f32 %v3176, %v3170
    %v3178 = vadd.f32 %v3177, %v3171
    %v3179 = vadd.f32 %v3178, %v3172
    %v3180 = vadd.f32 %v3179, %v3173
    %v3181 = vadd.f32 %v3180, %v3174
    %v3182 = vmul.f32 %v3181, 0.125
    %v3183 = vld [vmem:[%s15] sm:$0xff]
    %v3184 = vld [vmem:[%s15 + $0x8] sm:$0xff]
    %v3185 = vld [vmem:[%s15 + $0x10] sm:$0xff]
    %v3186 = vld [vmem:[%s15 + $0x18] sm:$0xff]
    %v3187 = vld [vmem:[%s15 + $0x20] sm:$0xff]
    %v3188 = vld [vmem:[%s15 + $0x28] sm:$0xff]
    %v3189 = vld [vmem:[%s15 + $0x30] sm:$0xff]
    %v3190 = vld [vmem:[%s15 + $0x38] sm:$0xff]
    %v3191 = vld [vmem:[%s15 + $0x40] sm:$0xff]
    %v3192 = vld [vmem:[%s15 + $0x48] sm:$0xff]
    %v3193 = vld [vmem:[%s15 + $0x50] sm:$0xff]
    %v3194 = vld [vmem:[%s15 + $0x58] sm:$0xff]
    %v3195 = vld [vmem:[%s15 + $0x60] sm:$0xff]
    %v3196 = vld [vmem:[%s15 + $0x68] sm:$0xff]
    %v3197 = vld [vmem:[%s15 + $0x70] sm:$0xff]
    %v3198 = vld [vmem:[%s15 + $0x78] sm:$0xff]
    %v3199 = vld [vmem:[%s16] sm:$0x1]
    %v3201 = vlaneseq
    %v3202 = vshrl.u32 %v3201, 7
    %v3203 = vsub.s32 0, %v3202
    %v3204 = vrot.slane %v3199, %v3203
    %3206 = vmatprep.subr.mxu0 0.0
    %3207 = vmatpush1.msra.mxu0 %v3198
    %3208 = vmatprep.subr.mxu0 0.0
    %3209 = vmatpush1.msra.mxu0 %v3197
    %3210 = vmatprep.subr.mxu0 0.0
    %3211 = vmatpush1.msra.mxu0 %v3196
    %3212 = vmatprep.subr.mxu0 0.0
    %3213 = vmatpush1.msra.mxu0 %v3195
    %3214 = vmatprep.subr.mxu0 0.0
    %3215 = vmatpush1.msra.mxu0 %v3194
    %3216 = vmatprep.subr.mxu0 0.0
    %3217 = vmatpush1.msra.mxu0 %v3193
    %3218 = vmatprep.subr.mxu0 0.0
    %3219 = vmatpush1.msra.mxu0 %v3192
    %3220 = vmatprep.subr.mxu0 0.0
    %3221 = vmatpush1.msra.mxu0 %v3191
    %3222 = vmatprep.subr.mxu0 0.0
    %3223 = vmatpush1.msra.mxu0 %v3190
    %3224 = vmatprep.subr.mxu0 0.0
    %3225 = vmatpush1.msra.mxu0 %v3189
    %3226 = vmatprep.subr.mxu0 0.0
    %3227 = vmatpush1.msra.mxu0 %v3188
    %3228 = vmatprep.subr.mxu0 0.0
    %3229 = vmatpush1.msra.mxu0 %v3187
    %3230 = vmatprep.subr.mxu0 0.0
    %3231 = vmatpush1.msra.mxu0 %v3186
    %3232 = vmatprep.subr.mxu0 0.0
    %3233 = vmatpush1.msra.mxu0 %v3185
    %3234 = vmatprep.subr.mxu0 0.0
    %3235 = vmatpush1.msra.mxu0 %v3184
    %3236 = vmatprep.subr.mxu0 0.0
    %3237 = vmatpush1.msra.mxu0 %v3183
    %3238 = vmatprep.subr.mxu0 0.0
    %3239 = vmatpush2.msra.mxu0 0.0
    %3240 = vmatprep.subr.mxu0 0.0
    %3241 = vmatpush2.msra.mxu0 0.0
    %3242 = vmatprep.subr.mxu0 0.0
    %3243 = vmatpush2.msra.mxu0 0.0
    %3244 = vmatprep.subr.mxu0 0.0
    %3245 = vmatpush2.msra.mxu0 0.0
    %3246 = vmatprep.subr.mxu0 0.0
    %3247 = vmatpush2.msra.mxu0 0.0
    %3248 = vmatprep.subr.mxu0 0.0
    %3249 = vmatpush2.msra.mxu0 0.0
    %3250 = vmatprep.subr.mxu0 0.0
    %3251 = vmatpush2.msra.mxu0 0.0
    %3252 = vmatprep.subr.mxu0 0.0
    %3253 = vmatpush2.msra.mxu0 0.0
    %3254 = vmatprep.subr.mxu0 0.0
    %3255 = vmatpush2.msra.mxu0 0.0
    %3256 = vmatprep.subr.mxu0 0.0
    %3257 = vmatpush2.msra.mxu0 0.0
    %3258 = vmatprep.subr.mxu0 0.0
    %3259 = vmatpush2.msra.mxu0 0.0
    %3260 = vmatprep.subr.mxu0 0.0
    %3261 = vmatpush2.msra.mxu0 0.0
    %3262 = vmatprep.subr.mxu0 0.0
    %3263 = vmatpush2.msra.mxu0 0.0
    %3264 = vmatprep.subr.mxu0 0.0
    %3265 = vmatpush2.msra.mxu0 0.0
    %3266 = vmatprep.subr.mxu0 0.0
    %3267 = vmatpush2.msra.mxu0 0.0
    %3268 = vmatprep.subr.mxu0 0.0
    %3269 = vmatpush2.msra.mxu0 0.0
    %3270 = vmatprep.mubr.f32.mxu0 0.0
    %3271 = vmatmul.mubr.f32.gmra.mxu0 %v3182
    %v3272 = vpop.f32.mrf.mxu0
    %v3273 = vadd.f32 %v3204, %v3272
    %v3274 = vpop.f32.mrf.mxu0
    %3275 = vdwg.mxu0
    %v3276 = vmax.f32 %v3273, 0.0
    %v3277 = vld [vmem:[%s17] sm:$0xff]
    %v3278 = vld [vmem:[%s17 + $0x8] sm:$0xff]
    %v3279 = vld [vmem:[%s17 + $0x10] sm:$0xff]
    %v3280 = vld [vmem:[%s17 + $0x18] sm:$0xff]
    %v3281 = vld [vmem:[%s17 + $0x20] sm:$0xff]
    %v3282 = vld [vmem:[%s17 + $0x28] sm:$0xff]
    %v3283 = vld [vmem:[%s17 + $0x30] sm:$0xff]
    %v3284 = vld [vmem:[%s17 + $0x38] sm:$0xff]
    %v3285 = vld [vmem:[#allocation6] sm:$0x1]
    %v3287 = vlaneseq
    %v3288 = vshrl.u32 %v3287, 7
    %v3289 = vsub.s32 0, %v3288
    %v3290 = vrot.slane %v3285, %v3289
    %v3293 = vsel %vm372, %v3276, 0
    %3295 = vmatprep.subr.mxu0 0.0
    %3296 = vmatpush1.msra.mxu0 0.0
    %3297 = vmatprep.subr.mxu0 0.0
    %3298 = vmatpush1.msra.mxu0 0.0
    %3299 = vmatprep.subr.mxu0 0.0
    %3300 = vmatpush1.msra.mxu0 0.0
    %3301 = vmatprep.subr.mxu0 0.0
    %3302 = vmatpush1.msra.mxu0 0.0
    %3303 = vmatprep.subr.mxu0 0.0
    %3304 = vmatpush1.msra.mxu0 0.0
    %3305 = vmatprep.subr.mxu0 0.0
    %3306 = vmatpush1.msra.mxu0 0.0
    %3307 = vmatprep.subr.mxu0 0.0
    %3308 = vmatpush1.msra.mxu0 0.0
    %3309 = vmatprep.subr.mxu0 0.0
    %3310 = vmatpush1.msra.mxu0 0.0
    %3311 = vmatprep.subr.mxu0 0.0
    %3312 = vmatpush1.msra.mxu0 %v3284
    %3313 = vmatprep.subr.mxu0 0.0
    %3314 = vmatpush1.msra.mxu0 %v3283
    %3315 = vmatprep.subr.mxu0 0.0
    %3316 = vmatpush1.msra.mxu0 %v3282
    %3317 = vmatprep.subr.mxu0 0.0
    %3318 = vmatpush1.msra.mxu0 %v3281
    %3319 = vmatprep.subr.mxu0 0.0
    %3320 = vmatpush1.msra.mxu0 %v3280
    %3321 = vmatprep.subr.mxu0 0.0
    %3322 = vmatpush1.msra.mxu0 %v3279
    %3323 = vmatprep.subr.mxu0 0.0
    %3324 = vmatpush1.msra.mxu0 %v3278
    %3325 = vmatprep.subr.mxu0 0.0
    %3326 = vmatpush1.msra.mxu0 %v3277
    %3327 = vmatprep.subr.mxu0 0.0
    %3328 = vmatpush2.msra.mxu0 0.0
    %3329 = vmatprep.subr.mxu0 0.0
    %3330 = vmatpush2.msra.mxu0 0.0
    %3331 = vmatprep.subr.mxu0 0.0
    %3332 = vmatpush2.msra.mxu0 0.0
    %3333 = vmatprep.subr.mxu0 0.0
    %3334 = vmatpush2.msra.mxu0 0.0
    %3335 = vmatprep.subr.mxu0 0.0
    %3336 = vmatpush2.msra.mxu0 0.0
    %3337 = vmatprep.subr.mxu0 0.0
    %3338 = vmatpush2.msra.mxu0 0.0
    %3339 = vmatprep.subr.mxu0 0.0
    %3340 = vmatpush2.msra.mxu0 0.0
    %3341 = vmatprep.subr.mxu0 0.0
    %3342 = vmatpush2.msra.mxu0 0.0
    %3343 = vmatprep.subr.mxu0 0.0
    %3344 = vmatpush2.msra.mxu0 0.0
    %3345 = vmatprep.subr.mxu0 0.0
    %3346 = vmatpush2.msra.mxu0 0.0
    %3347 = vmatprep.subr.mxu0 0.0
    %3348 = vmatpush2.msra.mxu0 0.0
    %3349 = vmatprep.subr.mxu0 0.0
    %3350 = vmatpush2.msra.mxu0 0.0
    %3351 = vmatprep.subr.mxu0 0.0
    %3352 = vmatpush2.msra.mxu0 0.0
    %3353 = vmatprep.subr.mxu0 0.0
    %3354 = vmatpush2.msra.mxu0 0.0
    %3355 = vmatprep.subr.mxu0 0.0
    %3356 = vmatpush2.msra.mxu0 0.0
    %3357 = vmatprep.subr.mxu0 0.0
    %3358 = vmatpush2.msra.mxu0 0.0
    %3359 = vmatprep.mubr.f32.mxu0 0.0
    %3360 = vmatmul.mubr.f32.gmra.mxu0 %v3293
    %v3361 = vpop.f32.mrf.mxu0
    %v3362 = vadd.f32 %v3290, %v3361
    %v3363 = vpop.f32.mrf.mxu0
    %3364 = vdwg.mxu0
    %3365 = vst.msk [vmem:[%s21] sm:$0x3] %vm520, %v3362
    // Predicated region
    $region86: #{bsa_forward.1} parent=1 // pred_check
      _
    $region87: #{bsa_forward.1} parent=1 // pred_check_branch
      %3367 = sbr.rel (0) target = $region89
    $region88: #{bsa_forward.1} parent=1 // pred_region
      _
    $region89: #{bsa_forward.1} parent=1 // pred_fallthru
      _
    // Predicated region
    $region90: #{bsa_forward.1} parent=1 // pred_check
      _
    $region91: #{bsa_forward.1} parent=1 // pred_check_branch
      %3369 = sbr.rel (0) target = $region93
    $region92: #{bsa_forward.1} parent=1 // pred_region
      _
    $region93: #{bsa_forward.1} parent=1 // pred_fallthru
      _
    // Predicated region
    $region94: #{bsa_forward.1} parent=1 // pred_check
      _
    $region95: #{bsa_forward.1} parent=1 // pred_check_branch
      %3371 = sbr.rel (0) target = $region97
    $region96: #{bsa_forward.1} parent=1 // pred_region
      _
    $region97: #{bsa_forward.1} parent=1 // pred_fallthru
      _
    // Predicated region
    $region98: #{bsa_forward.1} parent=1 // pred_check
      _
    $region99: #{bsa_forward.1} parent=1 // pred_check_branch
      %3373 = sbr.rel (0) target = $region101
    $region100: #{bsa_forward.1} parent=1 // pred_region
      _
    $region101: #{bsa_forward.1} parent=1 // pred_fallthru
      _
    // Predicated region
    $region102: #{bsa_forward.1} parent=1 // pred_check
      _
    $region103: #{bsa_forward.1} parent=1 // pred_check_branch
      %3375 = sbr.rel (0) target = $region105
    $region104: #{bsa_forward.1} parent=1 // pred_region
      _
    $region105: #{bsa_forward.1} parent=1 // pred_fallthru
      _
    // Predicated region
    $region106: #{bsa_forward.1} parent=1 // pred_check
      _
    $region107: #{bsa_forward.1} parent=1 // pred_check_branch
      %3377 = sbr.rel (0) target = $region109
    $region108: #{bsa_forward.1} parent=1 // pred_region
      _
    $region109: #{bsa_forward.1} parent=1 // pred_fallthru
      _
    %3378 = vsyncpa [#allocation8], 1
    %3379 = vsyncpa [#allocation10], 1

</llo_original>
